<compile_context>
chip_gen: v5e
topology: v5e:2x2
jax: 0.10.0
libtpu: 0.0.40
codegen_flags: <defaults>
</compile_context>

<pallas_src>
import jax
import jax.numpy as jnp
from jax.experimental import pallas as pl
from jax.experimental.pallas import tpu as pltpu


# ----------------------------------------------------------------------------
# Fused Pallas kernel (built once per model instance; static config closed over)
# ----------------------------------------------------------------------------

def _make_fused_kernel(num_features, qf_activations, stats_pad):
    """Whole FDVAE forward in one kernel.

    Ref order (inputs):
      x_flat, f_0..f_{K-1}, eps_zeps, eps_zfq_0..K-1, eps_zfp_0..K-1,
      then weights in the fixed order:
        for each encoder (qzeps, qzf_0..K-1): W1(bf16), b1, W2_loc, b2_loc, W2_scale, b2_scale
        px: Wfc(bf16), gamma, beta, Wdec(bf16), bdec
        for each pzf_k: W_loc, b_loc, W_scale, b_scale
        for each qf_k:  W, b
    Outputs: x_recon (B, x_dim) f32, stats (B, stats_width) f32.
    """
    K = num_features
    qf_acts = tuple(bool(a) for a in qf_activations)

    def kernel(*refs):
        x_ref = refs[0]
        f_refs = refs[1:1 + K]
        eps_zeps_ref = refs[1 + K]
        eps_zfq_refs = refs[2 + K:2 + 2 * K]
        eps_zfp_refs = refs[2 + 2 * K:2 + 3 * K]
        w_refs = refs[2 + 3 * K:-2]
        x_recon_ref = refs[-2]
        stats_ref = refs[-1]

        wi = iter(w_refs)
        B = x_ref.shape[0]

        x_f32 = x_ref[...]                       # (B, x_dim) f32
        x_b = x_f32.astype(jnp.bfloat16)         # bf16 only feeds the MXU

        def encoder():
            W1 = next(wi)[...]                   # (x_dim, hidden) bf16
            b1 = next(wi)[...]
            W2l = next(wi)[...]
            b2l = next(wi)[...]
            W2s = next(wi)[...]
            b2s = next(wi)[...]
            h = jnp.dot(x_b, W1, preferred_element_type=jnp.float32) + b1
            h = jnp.maximum(h, 0.0)              # elementwise stays f32
            loc = jnp.dot(h, W2l, preferred_element_type=jnp.float32) + b2l
            raw = jnp.dot(h, W2s, preferred_element_type=jnp.float32) + b2s
            scale = jax.nn.softplus(raw) + 1e-6
            return loc, scale

        # q(z_eps | x) + rsample
        zeps_loc, zeps_scale = encoder()
        zeps_q = zeps_loc + zeps_scale * eps_zeps_ref[...]

        # q(z_fk | x) + rsample
        zf_q_loc, zf_q_scale, zf_q = [], [], []
        for k in range(K):
            loc, scale = encoder()
            z = loc + scale * eps_zfq_refs[k][...]
            zf_q_loc.append(loc)
            zf_q_scale.append(scale)
            zf_q.append(z)

        # px decoder: Linear(no bias) -> BatchNorm1d (batch stats) -> Linear -> sigmoid
        Wfc = next(wi)[...]                      # bf16
        gamma = next(wi)[...]
        beta = next(wi)[...]
        Wdec = next(wi)[...]                     # bf16
        bdec = next(wi)[...]
        z_cat = jnp.concatenate([zeps_q] + zf_q, axis=1)
        h = jnp.dot(z_cat.astype(jnp.bfloat16), Wfc,
                    preferred_element_type=jnp.float32)
        mean = jnp.mean(h, axis=0, keepdims=True)
        var = jnp.mean(jnp.square(h - mean), axis=0, keepdims=True)
        h = gamma * (h - mean) * jax.lax.rsqrt(var + 1e-5) + beta
        y = jnp.dot(h.astype(jnp.bfloat16), Wdec,
                    preferred_element_type=jnp.float32) + bdec
        x_recon_ref[...] = jax.nn.sigmoid(y)

        # p(z_fk | f_k) + rsample
        zf_p_loc, zf_p_scale, zf_p = [], [], []
        for k in range(K):
            Wl = next(wi)[...]
            bl = next(wi)[...]
            Ws = next(wi)[...]
            bs = next(wi)[...]
            fk = f_refs[k][...]
            loc = jnp.dot(fk, Wl, preferred_element_type=jnp.float32) + bl
            scale = jax.nn.softplus(
                jnp.dot(fk, Ws, preferred_element_type=jnp.float32) + bs) + 1e-6
            z = loc + scale * eps_zfp_refs[k][...]
            zf_p_loc.append(loc)
            zf_p_scale.append(scale)
            zf_p.append(z)

        # q(f_k | z_fk) heads on posterior and prior samples
        f_hat, f_hat2 = [], []
        for k in range(K):
            Wq = next(wi)[...]
            bq = next(wi)[...]
            a = jnp.dot(zf_q[k], Wq, preferred_element_type=jnp.float32) + bq
            b = jnp.dot(zf_p[k], Wq, preferred_element_type=jnp.float32) + bq
            if qf_acts[k]:
                a = jax.nn.sigmoid(a)
                b = jax.nn.sigmoid(b)
            f_hat.append(a)
            f_hat2.append(b)

        # Single lane-dense stats slab (padded to a multiple of 128 lanes).
        parts = [zeps_loc, zeps_scale, zeps_q]
        for k in range(K):
            parts += [zf_q_loc[k], zf_q_scale[k], zf_q[k],
                      zf_p_loc[k], zf_p_scale[k], zf_p[k],
                      f_hat[k], f_hat2[k]]
        if stats_pad:
            parts.append(jnp.zeros((B, stats_pad), jnp.float32))
        stats_ref[...] = jnp.concatenate(parts, axis=1)

    return kernel


# ----------------------------------------------------------------------------
# Parameter initialisation (deterministic, in-script)
# ----------------------------------------------------------------------------

def _xavier(key, fan_in, fan_out, dtype=jnp.float32):
    limit = jnp.sqrt(6.0 / (fan_in + fan_out))
    w = jax.random.uniform(key, (fan_in, fan_out), jnp.float32, -limit, limit)
    return w.astype(dtype)


class FDVAE:
    """JAX/Pallas re-implementation of the FDVAE forward pass (fully fused)."""

    def __init__(self, key, *, zf_dims, zeps_dim, f_dims, qf_activations,
                 prior_zeps_scale_train, prior_zf_full_scale_train_list,
                 img_shape=(3, 16, 16), hidden=32):
        self.zf_dims = list(zf_dims)
        self.zeps_dim = zeps_dim
        self.f_dims = list(f_dims)
        self.qf_activations = list(qf_activations)
        self.num_features = len(zf_dims)
        self.prior_zeps_scale_train = prior_zeps_scale_train
        self.prior_zf_full_scale_train_list = list(prior_zf_full_scale_train_list)
        self.img_shape = img_shape
        C, H, W = img_shape
        self.x_dim = C * H * W
        self.hidden = hidden
        K = self.num_features

        keys = iter(jax.random.split(key, 64))

        # Encoders (qzeps + qzf_k): W1 in bf16 (MXU/DMA win), small tails in f32.
        def enc_params(z_dim):
            return dict(
                W1=_xavier(next(keys), self.x_dim, hidden, jnp.bfloat16),
                b1=jnp.zeros((1, hidden), jnp.float32),
                W2_loc=_xavier(next(keys), hidden, z_dim),
                b2_loc=jnp.zeros((1, z_dim), jnp.float32),
                W2_scale=_xavier(next(keys), hidden, z_dim),
                b2_scale=jnp.zeros((1, z_dim), jnp.float32),
            )

        self.qzeps = enc_params(zeps_dim)
        self.qzf_list = [enc_params(d) for d in self.zf_dims]

        # px: Linear(sum(zf)+zeps -> 64*4*4, bias=False) + BN, then decoder tail.
        z_total = sum(self.zf_dims) + zeps_dim
        fc1_out = 64 * 4 * 4
        self.px_params = dict(
            Wfc=_xavier(next(keys), z_total, fc1_out, jnp.bfloat16),  # xavier_uniform_
            gamma=jnp.ones((1, fc1_out), jnp.float32),                # BatchNorm1d weight
            beta=jnp.zeros((1, fc1_out), jnp.float32),                # BatchNorm1d bias
            Wdec=_xavier(next(keys), fc1_out, self.x_dim, jnp.bfloat16),
            bdec=jnp.zeros((1, self.x_dim), jnp.float32),
        )

        # pzf_k: f_k -> (loc, scale) of z_f_k   (loc / scale heads split at init)
        self.pzf_list = [
            dict(W_loc=_xavier(next(keys), fd, zd),
                 b_loc=jnp.zeros((1, zd), jnp.float32),
                 W_scale=_xavier(next(keys), fd, zd),
                 b_scale=jnp.zeros((1, zd), jnp.float32))
            for fd, zd in zip(self.f_dims, self.zf_dims)
        ]

        # qf_k: z_f_k -> f_k_hat
        self.qf_list = [
            dict(W=_xavier(next(keys), zd, fd),
                 b=jnp.zeros((1, fd), jnp.float32))
            for fd, zd in zip(self.f_dims, self.zf_dims)
        ]

        # prior scale parameters (initialised to 0.0 as in the reference)
        self.prior_zeps_log_scale = jnp.zeros((zeps_dim,), jnp.float32)
        self.prior_zf_full_log_scales = [jnp.zeros((d,), jnp.float32) for d in self.zf_dims]

        # Flat weight-arg list in the exact order the kernel consumes them.
        weights = []
        for enc in [self.qzeps] + self.qzf_list:
            weights += [enc["W1"], enc["b1"], enc["W2_loc"], enc["b2_loc"],
                        enc["W2_scale"], enc["b2_scale"]]
        p = self.px_params
        weights += [p["Wfc"], p["gamma"], p["beta"], p["Wdec"], p["bdec"]]
        for pz in self.pzf_list:
            weights += [pz["W_loc"], pz["b_loc"], pz["W_scale"], pz["b_scale"]]
        for q in self.qf_list:
            weights += [q["W"], q["b"]]
        self._weights = weights

        # Layout of the concatenated lane-dense stats output.
        layout = {}
        off = 0

        def add(name, w):
            nonlocal off
            layout[name] = (off, w)
            off += w

        add("zeps_loc", zeps_dim)
        add("zeps_scale", zeps_dim)
        add("zeps_q", zeps_dim)
        for k in range(K):
            add(f"zf_q_loc_{k}", self.zf_dims[k])
            add(f"zf_q_scale_{k}", self.zf_dims[k])
            add(f"zf_q_{k}", self.zf_dims[k])
            add(f"zf_p_loc_{k}", self.zf_dims[k])
            add(f"zf_p_scale_{k}", self.zf_dims[k])
            add(f"zf_p_{k}", self.zf_dims[k])
            add(f"f_hat_{k}", self.f_dims[k])
            add(f"f_hat2_{k}", self.f_dims[k])
        self._stats_layout = layout
        self._stats_pad = (-off) % 128
        self.stats_width = off + self._stats_pad

        # Kernel function built ONCE (stable identity -> compile cache works).
        self._kernel = _make_fused_kernel(K, self.qf_activations, self._stats_pad)
        # Whole forward (kernel + tiny glue) is jitted once.
        self._forward_jit = jax.jit(self._forward_impl)

    # ------------------------------------------------------------------ helpers

    @staticmethod
    def _l2_normalize_sigmoid(v):
        s = jax.nn.sigmoid(v)
        return s / jnp.maximum(jnp.sqrt(jnp.sum(s * s)), 1e-12)

    # ------------------------------------------------------------------ forward

    def _forward_impl(self, x, fs, key):
        B = x.shape[0]
        K = self.num_features
        x_flat = x.reshape(B, -1)

        keys = jax.random.split(key, 1 + 2 * K)
        eps_zeps = jax.random.normal(keys[0], (B, self.zeps_dim), jnp.float32)
        eps_zfq = [jax.random.normal(keys[1 + k], (B, self.zf_dims[k]), jnp.float32)
                   for k in range(K)]
        eps_zfp = [jax.random.normal(keys[1 + K + k], (B, self.zf_dims[k]), jnp.float32)
                   for k in range(K)]

        args = ([x_flat]
                + [fs[k].astype(jnp.float32) for k in range(K)]
                + [eps_zeps] + eps_zfq + eps_zfp
                + self._weights)

        vmem = pl.BlockSpec(memory_space=pltpu.MemorySpace.VMEM)
        x_recon_flat, stats = pl.pallas_call(
            self._kernel,
            out_shape=(jax.ShapeDtypeStruct((B, self.x_dim), jnp.float32),
                       jax.ShapeDtypeStruct((B, self.stats_width), jnp.float32)),
            in_specs=[vmem] * len(args),
            out_specs=(vmem, vmem),
        )(*args)

        def sl(name):
            off, w = self._stats_layout[name]
            return stats[:, off:off + w]

        zeps_q_loc = sl("zeps_loc")
        zeps_q_scale = sl("zeps_scale")
        zeps_q = sl("zeps_q")

        qzf_params, zf_q_list = [], []
        pzf_params, zf_p_list = [], []
        f_hat_list, f_hat_list2 = [], []
        for k in range(K):
            qzf_params.append((sl(f"zf_q_loc_{k}"), sl(f"zf_q_scale_{k}")))
            zf_q_list.append(sl(f"zf_q_{k}"))
            pzf_params.append((sl(f"zf_p_loc_{k}"), sl(f"zf_p_scale_{k}")))
            zf_p_list.append(sl(f"zf_p_{k}"))
            f_hat_list.append(sl(f"f_hat_{k}"))
            f_hat_list2.append(sl(f"f_hat2_{k}"))

        # Full priors p(z_fk) (tiny plain-JAX glue; broadcast instead of tile).
        pzf_full_params = []
        for k in range(K):
            full_loc = jnp.zeros((B, self.zf_dims[k]), jnp.float32)
            if self.prior_zf_full_scale_train_list[k]:
                s = self._l2_normalize_sigmoid(self.prior_zf_full_log_scales[k])
                full_scale = jnp.broadcast_to(s.reshape(1, -1), (B, self.zf_dims[k]))
            else:
                full_scale = jnp.ones((B, self.zf_dims[k]), jnp.float32)
            pzf_full_params.append((full_loc, full_scale))

        zeps_p_loc = jnp.zeros((B, self.zeps_dim), jnp.float32)
        if self.prior_zeps_scale_train:
            s = self._l2_normalize_sigmoid(self.prior_zeps_log_scale)
            zeps_p_scale = jnp.broadcast_to(s.reshape(1, -1), (B, self.zeps_dim))
        else:
            zeps_p_scale = jnp.ones((B, self.zeps_dim), jnp.float32)

        C, H, W = self.img_shape
        x_recon = x_recon_flat.reshape(B, C, H, W)

        return (x_recon, f_hat_list, f_hat_list2,
                qzf_params, pzf_params, pzf_full_params,
                zf_q_list, zf_p_list,
                (zeps_q_loc, zeps_q_scale), (zeps_p_loc, zeps_p_scale), zeps_q)

    def forward(self, x, fs, key):
        """x: (B, 3, H, W) float32; fs: list of (B, f_dim_k) float32."""
        return self._forward_jit(x, list(fs), key)


# ----------------------------------------------------------------------------
# main
# ----------------------------------------------------------------------------

if __name__ == "__main__":
    key = jax.random.PRNGKey(0)
    k_param, k_x, k_f1, k_f2, k_fwd = jax.random.split(key, 5)

    # small shapes consistent with the module's forward interface
    B, C, H, W = 4, 3, 16, 16
    zf_dims = [8, 8]
    zeps_dim = 8
    f_dims = [1, 3]                       # one scalar feature, one 3-way categorical (one-hot)
    qf_activations = [True, False]

    model = FDVAE(
        k_param,
        zf_dims=zf_dims,
        zeps_dim=zeps_dim,
        f_dims=f_dims,
        qf_activations=qf_activations,
        prior_zeps_scale_train=True,
        prior_zf_full_scale_train_list=[True, False],
        img_shape=(C, H, W),
        hidden=32,
    )

    x = jax.random.normal(k_x, (B, C, H, W), jnp.float32)
    f1 = jax.random.uniform(k_f1, (B, 1), jnp.float32)
    f2 = jax.nn.one_hot(jax.random.randint(k_f2, (B,), 0, 3), 3, dtype=jnp.float32)
    fs = [f1, f2]

    outputs = model.forward(x, fs, k_fwd)
    x_recon = outputs[0]
    jax.block_until_ready(x_recon)
    for fh in outputs[1] + outputs[2]:
        jax.block_until_ready(fh)

    assert x_recon.shape == (B, C, H, W)
    assert outputs[1][0].shape == (B, 1) and outputs[1][1].shape == (B, 3)
    assert outputs[6][0].shape == (B, zf_dims[0]) and outputs[7][1].shape == (B, zf_dims[1])
    assert bool(jnp.all(jnp.isfinite(x_recon)))
    print("KERNEL_OK")
</pallas_src>

<mosaic_0001>
module attributes {stable_mosaic.version = 11 : i64} {
  func.func @kernel(%arg0: memref<4x768xf32, #tpu.memory_space<vmem>>, %arg1: memref<4x1xf32, #tpu.memory_space<vmem>>, %arg2: memref<4x3xf32, #tpu.memory_space<vmem>>, %arg3: memref<4x8xf32, #tpu.memory_space<vmem>>, %arg4: memref<4x8xf32, #tpu.memory_space<vmem>>, %arg5: memref<4x8xf32, #tpu.memory_space<vmem>>, %arg6: memref<4x8xf32, #tpu.memory_space<vmem>>, %arg7: memref<4x8xf32, #tpu.memory_space<vmem>>, %arg8: memref<768x32xbf16, #tpu.memory_space<vmem>>, %arg9: memref<1x32xf32, #tpu.memory_space<vmem>>, %arg10: memref<32x8xf32, #tpu.memory_space<vmem>>, %arg11: memref<1x8xf32, #tpu.memory_space<vmem>>, %arg12: memref<32x8xf32, #tpu.memory_space<vmem>>, %arg13: memref<1x8xf32, #tpu.memory_space<vmem>>, %arg14: memref<768x32xbf16, #tpu.memory_space<vmem>>, %arg15: memref<1x32xf32, #tpu.memory_space<vmem>>, %arg16: memref<32x8xf32, #tpu.memory_space<vmem>>, %arg17: memref<1x8xf32, #tpu.memory_space<vmem>>, %arg18: memref<32x8xf32, #tpu.memory_space<vmem>>, %arg19: memref<1x8xf32, #tpu.memory_space<vmem>>, %arg20: memref<768x32xbf16, #tpu.memory_space<vmem>>, %arg21: memref<1x32xf32, #tpu.memory_space<vmem>>, %arg22: memref<32x8xf32, #tpu.memory_space<vmem>>, %arg23: memref<1x8xf32, #tpu.memory_space<vmem>>, %arg24: memref<32x8xf32, #tpu.memory_space<vmem>>, %arg25: memref<1x8xf32, #tpu.memory_space<vmem>>, %arg26: memref<24x1024xbf16, #tpu.memory_space<vmem>>, %arg27: memref<1x1024xf32, #tpu.memory_space<vmem>>, %arg28: memref<1x1024xf32, #tpu.memory_space<vmem>>, %arg29: memref<1024x768xbf16, #tpu.memory_space<vmem>>, %arg30: memref<1x768xf32, #tpu.memory_space<vmem>>, %arg31: memref<1x8xf32, #tpu.memory_space<vmem>>, %arg32: memref<1x8xf32, #tpu.memory_space<vmem>>, %arg33: memref<1x8xf32, #tpu.memory_space<vmem>>, %arg34: memref<1x8xf32, #tpu.memory_space<vmem>>, %arg35: memref<3x8xf32, #tpu.memory_space<vmem>>, %arg36: memref<1x8xf32, #tpu.memory_space<vmem>>, %arg37: memref<3x8xf32, #tpu.memory_space<vmem>>, %arg38: memref<1x8xf32, #tpu.memory_space<vmem>>, %arg39: memref<8x1xf32, #tpu.memory_space<vmem>>, %arg40: memref<1x1xf32, #tpu.memory_space<vmem>>, %arg41: memref<8x3xf32, #tpu.memory_space<vmem>>, %arg42: memref<1x3xf32, #tpu.memory_space<vmem>>, %arg43: memref<4x768xf32, #tpu.memory_space<vmem>>, %arg44: memref<4x128xf32, #tpu.memory_space<vmem>>) attributes {dimension_semantics = [], scalar_prefetch = 0 : i64, scratch_operands = 0 : i64, tpu.core_type = #tpu.core_type<tc>} {
    %c0 = arith.constant 0 : index
    %c0_0 = arith.constant 0 : index
    %0 = vector.load %arg0[%c0, %c0_0] : memref<4x768xf32, #tpu.memory_space<vmem>>, vector<4x768xf32>
    %1 = arith.truncf %0 : vector<4x768xf32> to vector<4x768xbf16>
    %c0_1 = arith.constant 0 : index
    %c0_2 = arith.constant 0 : index
    %2 = vector.load %arg8[%c0_1, %c0_2] : memref<768x32xbf16, #tpu.memory_space<vmem>>, vector<768x32xbf16>
    %c0_3 = arith.constant 0 : index
    %c0_4 = arith.constant 0 : index
    %3 = vector.load %arg9[%c0_3, %c0_4] : memref<1x32xf32, #tpu.memory_space<vmem>>, vector<1x32xf32>
    %c0_5 = arith.constant 0 : index
    %c0_6 = arith.constant 0 : index
    %4 = vector.load %arg10[%c0_5, %c0_6] : memref<32x8xf32, #tpu.memory_space<vmem>>, vector<32x8xf32>
    %c0_7 = arith.constant 0 : index
    %c0_8 = arith.constant 0 : index
    %5 = vector.load %arg11[%c0_7, %c0_8] : memref<1x8xf32, #tpu.memory_space<vmem>>, vector<1x8xf32>
    %c0_9 = arith.constant 0 : index
    %c0_10 = arith.constant 0 : index
    %6 = vector.load %arg12[%c0_9, %c0_10] : memref<32x8xf32, #tpu.memory_space<vmem>>, vector<32x8xf32>
    %c0_11 = arith.constant 0 : index
    %c0_12 = arith.constant 0 : index
    %7 = vector.load %arg13[%c0_11, %c0_12] : memref<1x8xf32, #tpu.memory_space<vmem>>, vector<1x8xf32>
    %cst = arith.constant dense<0.000000e+00> : vector<4x32xf32>
    %8 = tpu.matmul %1, %2, %cst {dimension_numbers = #tpu.dot_dimension_numbers<[1], [0], [0], [1], [0, 0, 1, 1], [], []>} : vector<4x768xbf16>, vector<768x32xbf16>, vector<4x32xf32> -> vector<4x32xf32>
    %9 = vector.broadcast %3 : vector<1x32xf32> to vector<4x32xf32>
    %10 = arith.addf %8, %9 : vector<4x32xf32>
    %cst_13 = arith.constant 0.000000e+00 : f32
    %11 = vector.broadcast %cst_13 : f32 to vector<4x32xf32>
    %12 = arith.maximumf %10, %11 : vector<4x32xf32>
    %cst_14 = arith.constant dense<0.000000e+00> : vector<4x8xf32>
    %13 = tpu.matmul %12, %4, %cst_14 {dimension_numbers = #tpu.dot_dimension_numbers<[1], [0], [0], [1], [0, 0, 1, 1], [], []>} : vector<4x32xf32>, vector<32x8xf32>, vector<4x8xf32> -> vector<4x8xf32>
    %14 = vector.broadcast %5 : vector<1x8xf32> to vector<4x8xf32>
    %15 = arith.addf %13, %14 : vector<4x8xf32>
    %cst_15 = arith.constant dense<0.000000e+00> : vector<4x8xf32>
    %16 = tpu.matmul %12, %6, %cst_15 {dimension_numbers = #tpu.dot_dimension_numbers<[1], [0], [0], [1], [0, 0, 1, 1], [], []>} : vector<4x32xf32>, vector<32x8xf32>, vector<4x8xf32> -> vector<4x8xf32>
    %17 = vector.broadcast %7 : vector<1x8xf32> to vector<4x8xf32>
    %18 = arith.addf %16, %17 : vector<4x8xf32>
    %cst_16 = arith.constant 0.000000e+00 : f32
    %19 = vector.broadcast %cst_16 : f32 to vector<4x8xf32>
    %20 = arith.maximumf %18, %19 : vector<4x8xf32>
    %21 = vector.broadcast %cst_16 : f32 to vector<4x8xf32>
    %22 = arith.subf %18, %21 : vector<4x8xf32>
    %23 = arith.cmpf one, %22, %22 : vector<4x8xf32>
    %24 = vector.broadcast %cst_16 : f32 to vector<4x8xf32>
    %25 = arith.addf %18, %24 : vector<4x8xf32>
    %26 = math.absf %22 : vector<4x8xf32>
    %cst_17 = arith.constant 0.000000e+00 : f32
    %27 = vector.broadcast %cst_17 : f32 to vector<4x8xf32>
    %28 = arith.subf %27, %26 : vector<4x8xf32>
    %29 = math.exp %28 : vector<4x8xf32>
    %30 = math.log1p %29 : vector<4x8xf32>
    %31 = arith.addf %20, %30 : vector<4x8xf32>
    %32 = arith.select %23, %25, %31 : vector<4x8xi1>, vector<4x8xf32>
    %cst_18 = arith.constant 9.99999997E-7 : f32
    %33 = vector.broadcast %cst_18 : f32 to vector<4x8xf32>
    %34 = arith.addf %32, %33 : vector<4x8xf32>
    %c0_19 = arith.constant 0 : index
    %c0_20 = arith.constant 0 : index
    %35 = vector.load %arg3[%c0_19, %c0_20] : memref<4x8xf32, #tpu.memory_space<vmem>>, vector<4x8xf32>
    %36 = arith.mulf %34, %35 : vector<4x8xf32>
    %37 = arith.addf %15, %36 : vector<4x8xf32>
    %c0_21 = arith.constant 0 : index
    %c0_22 = arith.constant 0 : index
    %38 = vector.load %arg14[%c0_21, %c0_22] : memref<768x32xbf16, #tpu.memory_space<vmem>>, vector<768x32xbf16>
    %c0_23 = arith.constant 0 : index
    %c0_24 = arith.constant 0 : index
    %39 = vector.load %arg15[%c0_23, %c0_24] : memref<1x32xf32, #tpu.memory_space<vmem>>, vector<1x32xf32>
    %c0_25 = arith.constant 0 : index
    %c0_26 = arith.constant 0 : index
    %40 = vector.load %arg16[%c0_25, %c0_26] : memref<32x8xf32, #tpu.memory_space<vmem>>, vector<32x8xf32>
    %c0_27 = arith.constant 0 : index
    %c0_28 = arith.constant 0 : index
    %41 = vector.load %arg17[%c0_27, %c0_28] : memref<1x8xf32, #tpu.memory_space<vmem>>, vector<1x8xf32>
    %c0_29 = arith.constant 0 : index
    %c0_30 = arith.constant 0 : index
    %42 = vector.load %arg18[%c0_29, %c0_30] : memref<32x8xf32, #tpu.memory_space<vmem>>, vector<32x8xf32>
    %c0_31 = arith.constant 0 : index
    %c0_32 = arith.constant 0 : index
    %43 = vector.load %arg19[%c0_31, %c0_32] : memref<1x8xf32, #tpu.memory_space<vmem>>, vector<1x8xf32>
    %cst_33 = arith.constant dense<0.000000e+00> : vector<4x32xf32>
    %44 = tpu.matmul %1, %38, %cst_33 {dimension_numbers = #tpu.dot_dimension_numbers<[1], [0], [0], [1], [0, 0, 1, 1], [], []>} : vector<4x768xbf16>, vector<768x32xbf16>, vector<4x32xf32> -> vector<4x32xf32>
    %45 = vector.broadcast %39 : vector<1x32xf32> to vector<4x32xf32>
    %46 = arith.addf %44, %45 : vector<4x32xf32>
    %cst_34 = arith.constant 0.000000e+00 : f32
    %47 = vector.broadcast %cst_34 : f32 to vector<4x32xf32>
    %48 = arith.maximumf %46, %47 : vector<4x32xf32>
    %cst_35 = arith.constant dense<0.000000e+00> : vector<4x8xf32>
    %49 = tpu.matmul %48, %40, %cst_35 {dimension_numbers = #tpu.dot_dimension_numbers<[1], [0], [0], [1], [0, 0, 1, 1], [], []>} : vector<4x32xf32>, vector<32x8xf32>, vector<4x8xf32> -> vector<4x8xf32>
    %50 = vector.broadcast %41 : vector<1x8xf32> to vector<4x8xf32>
    %51 = arith.addf %49, %50 : vector<4x8xf32>
    %cst_36 = arith.constant dense<0.000000e+00> : vector<4x8xf32>
    %52 = tpu.matmul %48, %42, %cst_36 {dimension_numbers = #tpu.dot_dimension_numbers<[1], [0], [0], [1], [0, 0, 1, 1], [], []>} : vector<4x32xf32>, vector<32x8xf32>, vector<4x8xf32> -> vector<4x8xf32>
    %53 = vector.broadcast %43 : vector<1x8xf32> to vector<4x8xf32>
    %54 = arith.addf %52, %53 : vector<4x8xf32>
    %cst_37 = arith.constant 0.000000e+00 : f32
    %55 = vector.broadcast %cst_37 : f32 to vector<4x8xf32>
    %56 = arith.maximumf %54, %55 : vector<4x8xf32>
    %57 = vector.broadcast %cst_37 : f32 to vector<4x8xf32>
    %58 = arith.subf %54, %57 : vector<4x8xf32>
    %59 = arith.cmpf one, %58, %58 : vector<4x8xf32>
    %60 = vector.broadcast %cst_37 : f32 to vector<4x8xf32>
    %61 = arith.addf %54, %60 : vector<4x8xf32>
    %62 = math.absf %58 : vector<4x8xf32>
    %cst_38 = arith.constant 0.000000e+00 : f32
    %63 = vector.broadcast %cst_38 : f32 to vector<4x8xf32>
    %64 = arith.subf %63, %62 : vector<4x8xf32>
    %65 = math.exp %64 : vector<4x8xf32>
    %66 = math.log1p %65 : vector<4x8xf32>
    %67 = arith.addf %56, %66 : vector<4x8xf32>
    %68 = arith.select %59, %61, %67 : vector<4x8xi1>, vector<4x8xf32>
    %cst_39 = arith.constant 9.99999997E-7 : f32
    %69 = vector.broadcast %cst_39 : f32 to vector<4x8xf32>
    %70 = arith.addf %68, %69 : vector<4x8xf32>
    %c0_40 = arith.constant 0 : index
    %c0_41 = arith.constant 0 : index
    %71 = vector.load %arg4[%c0_40, %c0_41] : memref<4x8xf32, #tpu.memory_space<vmem>>, vector<4x8xf32>
    %72 = arith.mulf %70, %71 : vector<4x8xf32>
    %73 = arith.addf %51, %72 : vector<4x8xf32>
    %c0_42 = arith.constant 0 : index
    %c0_43 = arith.constant 0 : index
    %74 = vector.load %arg20[%c0_42, %c0_43] : memref<768x32xbf16, #tpu.memory_space<vmem>>, vector<768x32xbf16>
    %c0_44 = arith.constant 0 : index
    %c0_45 = arith.constant 0 : index
    %75 = vector.load %arg21[%c0_44, %c0_45] : memref<1x32xf32, #tpu.memory_space<vmem>>, vector<1x32xf32>
    %c0_46 = arith.constant 0 : index
    %c0_47 = arith.constant 0 : index
    %76 = vector.load %arg22[%c0_46, %c0_47] : memref<32x8xf32, #tpu.memory_space<vmem>>, vector<32x8xf32>
    %c0_48 = arith.constant 0 : index
    %c0_49 = arith.constant 0 : index
    %77 = vector.load %arg23[%c0_48, %c0_49] : memref<1x8xf32, #tpu.memory_space<vmem>>, vector<1x8xf32>
    %c0_50 = arith.constant 0 : index
    %c0_51 = arith.constant 0 : index
    %78 = vector.load %arg24[%c0_50, %c0_51] : memref<32x8xf32, #tpu.memory_space<vmem>>, vector<32x8xf32>
    %c0_52 = arith.constant 0 : index
    %c0_53 = arith.constant 0 : index
    %79 = vector.load %arg25[%c0_52, %c0_53] : memref<1x8xf32, #tpu.memory_space<vmem>>, vector<1x8xf32>
    %cst_54 = arith.constant dense<0.000000e+00> : vector<4x32xf32>
    %80 = tpu.matmul %1, %74, %cst_54 {dimension_numbers = #tpu.dot_dimension_numbers<[1], [0], [0], [1], [0, 0, 1, 1], [], []>} : vector<4x768xbf16>, vector<768x32xbf16>, vector<4x32xf32> -> vector<4x32xf32>
    %81 = vector.broadcast %75 : vector<1x32xf32> to vector<4x32xf32>
    %82 = arith.addf %80, %81 : vector<4x32xf32>
    %cst_55 = arith.constant 0.000000e+00 : f32
    %83 = vector.broadcast %cst_55 : f32 to vector<4x32xf32>
    %84 = arith.maximumf %82, %83 : vector<4x32xf32>
    %cst_56 = arith.constant dense<0.000000e+00> : vector<4x8xf32>
    %85 = tpu.matmul %84, %76, %cst_56 {dimension_numbers = #tpu.dot_dimension_numbers<[1], [0], [0], [1], [0, 0, 1, 1], [], []>} : vector<4x32xf32>, vector<32x8xf32>, vector<4x8xf32> -> vector<4x8xf32>
    %86 = vector.broadcast %77 : vector<1x8xf32> to vector<4x8xf32>
    %87 = arith.addf %85, %86 : vector<4x8xf32>
    %cst_57 = arith.constant dense<0.000000e+00> : vector<4x8xf32>
    %88 = tpu.matmul %84, %78, %cst_57 {dimension_numbers = #tpu.dot_dimension_numbers<[1], [0], [0], [1], [0, 0, 1, 1], [], []>} : vector<4x32xf32>, vector<32x8xf32>, vector<4x8xf32> -> vector<4x8xf32>
    %89 = vector.broadcast %79 : vector<1x8xf32> to vector<4x8xf32>
    %90 = arith.addf %88, %89 : vector<4x8xf32>
    %cst_58 = arith.constant 0.000000e+00 : f32
    %91 = vector.broadcast %cst_58 : f32 to vector<4x8xf32>
    %92 = arith.maximumf %90, %91 : vector<4x8xf32>
    %93 = vector.broadcast %cst_58 : f32 to vector<4x8xf32>
    %94 = arith.subf %90, %93 : vector<4x8xf32>
    %95 = arith.cmpf one, %94, %94 : vector<4x8xf32>
    %96 = vector.broadcast %cst_58 : f32 to vector<4x8xf32>
    %97 = arith.addf %90, %96 : vector<4x8xf32>
    %98 = math.absf %94 : vector<4x8xf32>
    %cst_59 = arith.constant 0.000000e+00 : f32
    %99 = vector.broadcast %cst_59 : f32 to vector<4x8xf32>
    %100 = arith.subf %99, %98 : vector<4x8xf32>
    %101 = math.exp %100 : vector<4x8xf32>
    %102 = math.log1p %101 : vector<4x8xf32>
    %103 = arith.addf %92, %102 : vector<4x8xf32>
    %104 = arith.select %95, %97, %103 : vector<4x8xi1>, vector<4x8xf32>
    %cst_60 = arith.constant 9.99999997E-7 : f32
    %105 = vector.broadcast %cst_60 : f32 to vector<4x8xf32>
    %106 = arith.addf %104, %105 : vector<4x8xf32>
    %c0_61 = arith.constant 0 : index
    %c0_62 = arith.constant 0 : index
    %107 = vector.load %arg5[%c0_61, %c0_62] : memref<4x8xf32, #tpu.memory_space<vmem>>, vector<4x8xf32>
    %108 = arith.mulf %106, %107 : vector<4x8xf32>
    %109 = arith.addf %87, %108 : vector<4x8xf32>
    %c0_63 = arith.constant 0 : index
    %c0_64 = arith.constant 0 : index
    %110 = vector.load %arg26[%c0_63, %c0_64] : memref<24x1024xbf16, #tpu.memory_space<vmem>>, vector<24x1024xbf16>
    %c0_65 = arith.constant 0 : index
    %c0_66 = arith.constant 0 : index
    %111 = vector.load %arg27[%c0_65, %c0_66] : memref<1x1024xf32, #tpu.memory_space<vmem>>, vector<1x1024xf32>
    %c0_67 = arith.constant 0 : index
    %c0_68 = arith.constant 0 : index
    %112 = vector.load %arg28[%c0_67, %c0_68] : memref<1x1024xf32, #tpu.memory_space<vmem>>, vector<1x1024xf32>
    %c0_69 = arith.constant 0 : index
    %c0_70 = arith.constant 0 : index
    %113 = vector.load %arg29[%c0_69, %c0_70] : memref<1024x768xbf16, #tpu.memory_space<vmem>>, vector<1024x768xbf16>
    %c0_71 = arith.constant 0 : index
    %c0_72 = arith.constant 0 : index
    %114 = vector.load %arg30[%c0_71, %c0_72] : memref<1x768xf32, #tpu.memory_space<vmem>>, vector<1x768xf32>
    %115 = tpu.concatenate %37, %73, %109 in 1 : vector<4x8xf32>, vector<4x8xf32>, vector<4x8xf32> -> vector<4x24xf32>
    %116 = arith.truncf %115 : vector<4x24xf32> to vector<4x24xbf16>
    %cst_73 = arith.constant dense<0.000000e+00> : vector<4x1024xf32>
    %117 = tpu.matmul %116, %110, %cst_73 {dimension_numbers = #tpu.dot_dimension_numbers<[1], [0], [0], [1], [0, 0, 1, 1], [], []>} : vector<4x24xbf16>, vector<24x1024xbf16>, vector<4x1024xf32> -> vector<4x1024xf32>
    %cst_74 = arith.constant dense<0.000000e+00> : vector<1024xf32>
    %118 = vector.multi_reduction <add>, %117, %cst_74 [0] : vector<4x1024xf32> to vector<1024xf32>
    %119 = vector.shape_cast %118 : vector<1024xf32> to vector<1x1024xf32>
    %cst_75 = arith.constant 4.000000e+00 : f32
    %120 = vector.broadcast %cst_75 : f32 to vector<1x1024xf32>
    %121 = arith.divf %119, %120 : vector<1x1024xf32>
    %122 = vector.broadcast %121 : vector<1x1024xf32> to vector<4x1024xf32>
    %123 = arith.subf %117, %122 : vector<4x1024xf32>
    %124 = arith.mulf %123, %123 : vector<4x1024xf32>
    %cst_76 = arith.constant dense<0.000000e+00> : vector<1024xf32>
    %125 = vector.multi_reduction <add>, %124, %cst_76 [0] : vector<4x1024xf32> to vector<1024xf32>
    %126 = vector.shape_cast %125 : vector<1024xf32> to vector<1x1024xf32>
    %cst_77 = arith.constant 4.000000e+00 : f32
    %127 = vector.broadcast %cst_77 : f32 to vector<1x1024xf32>
    %128 = arith.divf %126, %127 : vector<1x1024xf32>
    %129 = vector.broadcast %121 : vector<1x1024xf32> to vector<4x1024xf32>
    %130 = arith.subf %117, %129 : vector<4x1024xf32>
    %131 = vector.broadcast %111 : vector<1x1024xf32> to vector<4x1024xf32>
    %132 = arith.mulf %131, %130 : vector<4x1024xf32>
    %cst_78 = arith.constant 9.99999974E-6 : f32
    %133 = vector.broadcast %cst_78 : f32 to vector<1x1024xf32>
    %134 = arith.addf %128, %133 : vector<1x1024xf32>
    %135 = math.rsqrt %134 : vector<1x1024xf32>
    %136 = vector.broadcast %135 : vector<1x1024xf32> to vector<4x1024xf32>
    %137 = arith.mulf %132, %136 : vector<4x1024xf32>
    %138 = vector.broadcast %112 : vector<1x1024xf32> to vector<4x1024xf32>
    %139 = arith.addf %137, %138 : vector<4x1024xf32>
    %140 = arith.truncf %139 : vector<4x1024xf32> to vector<4x1024xbf16>
    %cst_79 = arith.constant dense<0.000000e+00> : vector<4x768xf32>
    %141 = tpu.matmul %140, %113, %cst_79 {dimension_numbers = #tpu.dot_dimension_numbers<[1], [0], [0], [1], [0, 0, 1, 1], [], []>} : vector<4x1024xbf16>, vector<1024x768xbf16>, vector<4x768xf32> -> vector<4x768xf32>
    %142 = vector.broadcast %114 : vector<1x768xf32> to vector<4x768xf32>
    %143 = arith.addf %141, %142 : vector<4x768xf32>
    %144 = arith.negf %143 : vector<4x768xf32>
    %145 = math.exp %144 : vector<4x768xf32>
    %cst_80 = arith.constant 1.000000e+00 : f32
    %146 = vector.broadcast %cst_80 : f32 to vector<4x768xf32>
    %147 = arith.addf %146, %145 : vector<4x768xf32>
    %148 = arith.divf %146, %147 : vector<4x768xf32>
    %c0_81 = arith.constant 0 : index
    %c0_82 = arith.constant 0 : index
    %149 = vector.load %arg43[%c0_81, %c0_82] : memref<4x768xf32, #tpu.memory_space<vmem>>, vector<4x768xf32>
    tpu.vector_store %arg43[%c0_81, %c0_82], %148 {strides = array<i32>} : memref<4x768xf32, #tpu.memory_space<vmem>>, vector<4x768xf32>,
    %c0_83 = arith.constant 0 : index
    %c0_84 = arith.constant 0 : index
    %150 = vector.load %arg31[%c0_83, %c0_84] : memref<1x8xf32, #tpu.memory_space<vmem>>, vector<1x8xf32>
    %c0_85 = arith.constant 0 : index
    %c0_86 = arith.constant 0 : index
    %151 = vector.load %arg32[%c0_85, %c0_86] : memref<1x8xf32, #tpu.memory_space<vmem>>, vector<1x8xf32>
    %c0_87 = arith.constant 0 : index
    %c0_88 = arith.constant 0 : index
    %152 = vector.load %arg33[%c0_87, %c0_88] : memref<1x8xf32, #tpu.memory_space<vmem>>, vector<1x8xf32>
    %c0_89 = arith.constant 0 : index
    %c0_90 = arith.constant 0 : index
    %153 = vector.load %arg34[%c0_89, %c0_90] : memref<1x8xf32, #tpu.memory_space<vmem>>, vector<1x8xf32>
    %c0_91 = arith.constant 0 : index
    %c0_92 = arith.constant 0 : index
    %154 = vector.load %arg1[%c0_91, %c0_92] : memref<4x1xf32, #tpu.memory_space<vmem>>, vector<4x1xf32>
    %cst_93 = arith.constant dense<0.000000e+00> : vector<4x8xf32>
    %155 = tpu.matmul %154, %150, %cst_93 {dimension_numbers = #tpu.dot_dimension_numbers<[1], [0], [0], [1], [0, 0, 1, 1], [], []>} : vector<4x1xf32>, vector<1x8xf32>, vector<4x8xf32> -> vector<4x8xf32>
    %156 = vector.broadcast %151 : vector<1x8xf32> to vector<4x8xf32>
    %157 = arith.addf %155, %156 : vector<4x8xf32>
    %cst_94 = arith.constant dense<0.000000e+00> : vector<4x8xf32>
    %158 = tpu.matmul %154, %152, %cst_94 {dimension_numbers = #tpu.dot_dimension_numbers<[1], [0], [0], [1], [0, 0, 1, 1], [], []>} : vector<4x1xf32>, vector<1x8xf32>, vector<4x8xf32> -> vector<4x8xf32>
    %159 = vector.broadcast %153 : vector<1x8xf32> to vector<4x8xf32>
    %160 = arith.addf %158, %159 : vector<4x8xf32>
    %cst_95 = arith.constant 0.000000e+00 : f32
    %161 = vector.broadcast %cst_95 : f32 to vector<4x8xf32>
    %162 = arith.maximumf %160, %161 : vector<4x8xf32>
    %163 = vector.broadcast %cst_95 : f32 to vector<4x8xf32>
    %164 = arith.subf %160, %163 : vector<4x8xf32>
    %165 = arith.cmpf one, %164, %164 : vector<4x8xf32>
    %166 = vector.broadcast %cst_95 : f32 to vector<4x8xf32>
    %167 = arith.addf %160, %166 : vector<4x8xf32>
    %168 = math.absf %164 : vector<4x8xf32>
    %cst_96 = arith.constant 0.000000e+00 : f32
    %169 = vector.broadcast %cst_96 : f32 to vector<4x8xf32>
    %170 = arith.subf %169, %168 : vector<4x8xf32>
    %171 = math.exp %170 : vector<4x8xf32>
    %172 = math.log1p %171 : vector<4x8xf32>
    %173 = arith.addf %162, %172 : vector<4x8xf32>
    %174 = arith.select %165, %167, %173 : vector<4x8xi1>, vector<4x8xf32>
    %cst_97 = arith.constant 9.99999997E-7 : f32
    %175 = vector.broadcast %cst_97 : f32 to vector<4x8xf32>
    %176 = arith.addf %174, %175 : vector<4x8xf32>
    %c0_98 = arith.constant 0 : index
    %c0_99 = arith.constant 0 : index
    %177 = vector.load %arg6[%c0_98, %c0_99] : memref<4x8xf32, #tpu.memory_space<vmem>>, vector<4x8xf32>
    %178 = arith.mulf %176, %177 : vector<4x8xf32>
    %179 = arith.addf %157, %178 : vector<4x8xf32>
    %c0_100 = arith.constant 0 : index
    %c0_101 = arith.constant 0 : index
    %180 = vector.load %arg35[%c0_100, %c0_101] : memref<3x8xf32, #tpu.memory_space<vmem>>, vector<3x8xf32>
    %c0_102 = arith.constant 0 : index
    %c0_103 = arith.constant 0 : index
    %181 = vector.load %arg36[%c0_102, %c0_103] : memref<1x8xf32, #tpu.memory_space<vmem>>, vector<1x8xf32>
    %c0_104 = arith.constant 0 : index
    %c0_105 = arith.constant 0 : index
    %182 = vector.load %arg37[%c0_104, %c0_105] : memref<3x8xf32, #tpu.memory_space<vmem>>, vector<3x8xf32>
    %c0_106 = arith.constant 0 : index
    %c0_107 = arith.constant 0 : index
    %183 = vector.load %arg38[%c0_106, %c0_107] : memref<1x8xf32, #tpu.memory_space<vmem>>, vector<1x8xf32>
    %c0_108 = arith.constant 0 : index
    %c0_109 = arith.constant 0 : index
    %184 = vector.load %arg2[%c0_108, %c0_109] : memref<4x3xf32, #tpu.memory_space<vmem>>, vector<4x3xf32>
    %cst_110 = arith.constant dense<0.000000e+00> : vector<4x8xf32>
    %185 = tpu.matmul %184, %180, %cst_110 {dimension_numbers = #tpu.dot_dimension_numbers<[1], [0], [0], [1], [0, 0, 1, 1], [], []>} : vector<4x3xf32>, vector<3x8xf32>, vector<4x8xf32> -> vector<4x8xf32>
    %186 = vector.broadcast %181 : vector<1x8xf32> to vector<4x8xf32>
    %187 = arith.addf %185, %186 : vector<4x8xf32>
    %cst_111 = arith.constant dense<0.000000e+00> : vector<4x8xf32>
    %188 = tpu.matmul %184, %182, %cst_111 {dimension_numbers = #tpu.dot_dimension_numbers<[1], [0], [0], [1], [0, 0, 1, 1], [], []>} : vector<4x3xf32>, vector<3x8xf32>, vector<4x8xf32> -> vector<4x8xf32>
    %189 = vector.broadcast %183 : vector<1x8xf32> to vector<4x8xf32>
    %190 = arith.addf %188, %189 : vector<4x8xf32>
    %cst_112 = arith.constant 0.000000e+00 : f32
    %191 = vector.broadcast %cst_112 : f32 to vector<4x8xf32>
    %192 = arith.maximumf %190, %191 : vector<4x8xf32>
    %193 = vector.broadcast %cst_112 : f32 to vector<4x8xf32>
    %194 = arith.subf %190, %193 : vector<4x8xf32>
    %195 = arith.cmpf one, %194, %194 : vector<4x8xf32>
    %196 = vector.broadcast %cst_112 : f32 to vector<4x8xf32>
    %197 = arith.addf %190, %196 : vector<4x8xf32>
    %198 = math.absf %194 : vector<4x8xf32>
    %cst_113 = arith.constant 0.000000e+00 : f32
    %199 = vector.broadcast %cst_113 : f32 to vector<4x8xf32>
    %200 = arith.subf %199, %198 : vector<4x8xf32>
    %201 = math.exp %200 : vector<4x8xf32>
    %202 = math.log1p %201 : vector<4x8xf32>
    %203 = arith.addf %192, %202 : vector<4x8xf32>
    %204 = arith.select %195, %197, %203 : vector<4x8xi1>, vector<4x8xf32>
    %cst_114 = arith.constant 9.99999997E-7 : f32
    %205 = vector.broadcast %cst_114 : f32 to vector<4x8xf32>
    %206 = arith.addf %204, %205 : vector<4x8xf32>
    %c0_115 = arith.constant 0 : index
    %c0_116 = arith.constant 0 : index
    %207 = vector.load %arg7[%c0_115, %c0_116] : memref<4x8xf32, #tpu.memory_space<vmem>>, vector<4x8xf32>
    %208 = arith.mulf %206, %207 : vector<4x8xf32>
    %209 = arith.addf %187, %208 : vector<4x8xf32>
    %c0_117 = arith.constant 0 : index
    %c0_118 = arith.constant 0 : index
    %210 = vector.load %arg39[%c0_117, %c0_118] : memref<8x1xf32, #tpu.memory_space<vmem>>, vector<8x1xf32>
    %c0_119 = arith.constant 0 : index
    %c0_120 = arith.constant 0 : index
    %211 = vector.load %arg40[%c0_119, %c0_120] : memref<1x1xf32, #tpu.memory_space<vmem>>, vector<1x1xf32>
    %cst_121 = arith.constant dense<0.000000e+00> : vector<4x1xf32>
    %212 = tpu.matmul %73, %210, %cst_121 {dimension_numbers = #tpu.dot_dimension_numbers<[1], [0], [0], [1], [0, 0, 1, 1], [], []>} : vector<4x8xf32>, vector<8x1xf32>, vector<4x1xf32> -> vector<4x1xf32>
    %213 = vector.broadcast %211 : vector<1x1xf32> to vector<4x1xf32>
    %214 = arith.addf %212, %213 : vector<4x1xf32>
    %cst_122 = arith.constant dense<0.000000e+00> : vector<4x1xf32>
    %215 = tpu.matmul %179, %210, %cst_122 {dimension_numbers = #tpu.dot_dimension_numbers<[1], [0], [0], [1], [0, 0, 1, 1], [], []>} : vector<4x8xf32>, vector<8x1xf32>, vector<4x1xf32> -> vector<4x1xf32>
    %216 = vector.broadcast %211 : vector<1x1xf32> to vector<4x1xf32>
    %217 = arith.addf %215, %216 : vector<4x1xf32>
    %218 = arith.negf %214 : vector<4x1xf32>
    %219 = math.exp %218 : vector<4x1xf32>
    %cst_123 = arith.constant 1.000000e+00 : f32
    %220 = vector.broadcast %cst_123 : f32 to vector<4x1xf32>
    %221 = arith.addf %220, %219 : vector<4x1xf32>
    %222 = arith.divf %220, %221 : vector<4x1xf32>
    %223 = arith.negf %217 : vector<4x1xf32>
    %224 = math.exp %223 : vector<4x1xf32>
    %cst_124 = arith.constant 1.000000e+00 : f32
    %225 = vector.broadcast %cst_124 : f32 to vector<4x1xf32>
    %226 = arith.addf %225, %224 : vector<4x1xf32>
    %227 = arith.divf %225, %226 : vector<4x1xf32>
    %c0_125 = arith.constant 0 : index
    %c0_126 = arith.constant 0 : index
    %228 = vector.load %arg41[%c0_125, %c0_126] : memref<8x3xf32, #tpu.memory_space<vmem>>, vector<8x3xf32>
    %c0_127 = arith.constant 0 : index
    %c0_128 = arith.constant 0 : index
    %229 = vector.load %arg42[%c0_127, %c0_128] : memref<1x3xf32, #tpu.memory_space<vmem>>, vector<1x3xf32>
    %cst_129 = arith.constant dense<0.000000e+00> : vector<4x3xf32>
    %230 = tpu.matmul %109, %228, %cst_129 {dimension_numbers = #tpu.dot_dimension_numbers<[1], [0], [0], [1], [0, 0, 1, 1], [], []>} : vector<4x8xf32>, vector<8x3xf32>, vector<4x3xf32> -> vector<4x3xf32>
    %231 = vector.broadcast %229 : vector<1x3xf32> to vector<4x3xf32>
    %232 = arith.addf %230, %231 : vector<4x3xf32>
    %cst_130 = arith.constant dense<0.000000e+00> : vector<4x3xf32>
    %233 = tpu.matmul %209, %228, %cst_130 {dimension_numbers = #tpu.dot_dimension_numbers<[1], [0], [0], [1], [0, 0, 1, 1], [], []>} : vector<4x8xf32>, vector<8x3xf32>, vector<4x3xf32> -> vector<4x3xf32>
    %234 = vector.broadcast %229 : vector<1x3xf32> to vector<4x3xf32>
    %235 = arith.addf %233, %234 : vector<4x3xf32>
    %236 = tpu.concatenate %15, %34, %37, %51, %70, %73, %157, %176, %179, %222, %227, %87, %106, %109, %187, %206 in 1 : vector<4x8xf32>, vector<4x8xf32>, vector<4x8xf32>, vector<4x8xf32>, vector<4x8xf32>, vector<4x8xf32>, vector<4x8xf32>, vector<4x8xf32>, vector<4x8xf32>, vector<4x1xf32>, vector<4x1xf32>, vector<4x8xf32>, vector<4x8xf32>, vector<4x8xf32>, vector<4x8xf32>, vector<4x8xf32> -> vector<4x114xf32>
    %237 = tpu.concatenate %209, %232, %235 in 1 : vector<4x8xf32>, vector<4x3xf32>, vector<4x3xf32> -> vector<4x14xf32>
    %238 = tpu.concatenate %236, %237 in 1 : vector<4x114xf32>, vector<4x14xf32> -> vector<4x128xf32>
    %c0_131 = arith.constant 0 : index
    %c0_132 = arith.constant 0 : index
    %239 = vector.load %arg44[%c0_131, %c0_132] : memref<4x128xf32, #tpu.memory_space<vmem>>, vector<4x128xf32>
    tpu.vector_store %arg44[%c0_131, %c0_132], %238 {strides = array<i32>} : memref<4x128xf32, #tpu.memory_space<vmem>>, vector<4x128xf32>,
    return
  }
}

</mosaic_0001>

<llo_original>
// kernel: _forward_impl.1
$region0: #{_forward_impl.1}
  #allocation0 [shape = 'u32[]', space=smem, size = 0x4, offset = 0x4, fixed_abs, tag = 'smem constant byte address 0x4 - core index']
  #allocation1 [shape = 'u32[72,128]{1,0:T(1,128)}', space=vmem, size = 0x9000, scoped, tag = 'internal scratch']
  #allocation2 [shape = 'f32[1,1]{1,0:T(1,128)S(1)}', space=vmem, size = 0x200, scoped, tag = 'scoped memory for _forward_impl.1']
  %s0 = inlined_call_operand.smem [shape: u32[45], index: -1, kind: input, shape index: {}]
  %s1 = sld [smem:[%s0]]
  %s2 = scalar_lea.smem %s0, 1
  %s3 = sld [smem:[%s2]]
  %s4 = scalar_lea.smem %s0, 2
  %s5 = sld [smem:[%s4]]
  %s6 = scalar_lea.smem %s0, 3
  %s7 = sld [smem:[%s6]]
  %s8 = scalar_lea.smem %s0, 4
  %s9 = sld [smem:[%s8]]
  %s10 = scalar_lea.smem %s0, 5
  %s11 = sld [smem:[%s10]]
  %s12 = scalar_lea.smem %s0, 6
  %s13 = sld [smem:[%s12]]
  %s14 = scalar_lea.smem %s0, 7
  %s15 = sld [smem:[%s14]]
  %s16 = scalar_lea.smem %s0, 8
  %s17 = sld [smem:[%s16]]
  %s18 = scalar_lea.smem %s0, 9
  %s19 = sld [smem:[%s18]]
  %s20 = scalar_lea.smem %s0, 10
  %s21 = sld [smem:[%s20]]
  %s22 = scalar_lea.smem %s0, 11
  %s23 = sld [smem:[%s22]]
  %s24 = scalar_lea.smem %s0, 12
  %s25 = sld [smem:[%s24]]
  %s26 = scalar_lea.smem %s0, 13
  %s27 = sld [smem:[%s26]]
  %s28 = scalar_lea.smem %s0, 14
  %s29 = sld [smem:[%s28]]
  %s30 = scalar_lea.smem %s0, 15
  %s31 = sld [smem:[%s30]]
  %s32 = scalar_lea.smem %s0, 16
  %s33 = sld [smem:[%s32]]
  %s34 = scalar_lea.smem %s0, 17
  %s35 = sld [smem:[%s34]]
  %s36 = scalar_lea.smem %s0, 18
  %s37 = sld [smem:[%s36]]
  %s38 = scalar_lea.smem %s0, 19
  %s39 = sld [smem:[%s38]]
  %s40 = scalar_lea.smem %s0, 20
  %s41 = sld [smem:[%s40]]
  %s42 = scalar_lea.smem %s0, 21
  %s43 = sld [smem:[%s42]]
  %s44 = scalar_lea.smem %s0, 22
  %s45 = sld [smem:[%s44]]
  %s46 = scalar_lea.smem %s0, 23
  %s47 = sld [smem:[%s46]]
  %s48 = scalar_lea.smem %s0, 24
  %s49 = sld [smem:[%s48]]
  %s50 = scalar_lea.smem %s0, 25
  %s51 = sld [smem:[%s50]]
  %s52 = scalar_lea.smem %s0, 26
  %s53 = sld [smem:[%s52]]
  %s54 = scalar_lea.smem %s0, 27
  %s55 = sld [smem:[%s54]]
  %s56 = scalar_lea.smem %s0, 28
  %s57 = sld [smem:[%s56]]
  %s58 = scalar_lea.smem %s0, 29
  %s59 = sld [smem:[%s58]]
  %s60 = scalar_lea.smem %s0, 30
  %s61 = sld [smem:[%s60]]
  %s62 = scalar_lea.smem %s0, 31
  %s63 = sld [smem:[%s62]]
  %s64 = scalar_lea.smem %s0, 32
  %s65 = sld [smem:[%s64]]
  %s66 = scalar_lea.smem %s0, 33
  %s67 = sld [smem:[%s66]]
  %s68 = scalar_lea.smem %s0, 34
  %s69 = sld [smem:[%s68]]
  %s70 = scalar_lea.smem %s0, 35
  %s71 = sld [smem:[%s70]]
  %s72 = scalar_lea.smem %s0, 36
  %s73 = sld [smem:[%s72]]
  %s74 = scalar_lea.smem %s0, 37
  %s75 = sld [smem:[%s74]]
  %s76 = scalar_lea.smem %s0, 38
  %s77 = sld [smem:[%s76]]
  %s78 = scalar_lea.smem %s0, 39
  %s79 = sld [smem:[%s78]]
  %s80 = scalar_lea.smem %s0, 40
  %s81 = sld [smem:[%s80]]
  %s82 = scalar_lea.smem %s0, 41
  %s83 = sld [smem:[%s82]]
  %s84 = scalar_lea.smem %s0, 42
  %s85 = sld [smem:[%s84]]
  %s86 = scalar_lea.smem %s0, 43
  %s87 = sld [smem:[%s86]]
  %s88 = scalar_lea.smem %s0, 44
  %s89 = sld [smem:[%s88]]
  %90 = xla_tuple %s87, %s89
  %s91 = sld [smem:[#allocation0]]
  $region262: #{_forward_impl.1} parent=0
    _
  %s93 = ssub.s32 1, %s91
  %s94 = scalar_select 0, %s93, %s91
  %v95 = vstv %s81
  %96 = vst [vmem:[#allocation2] sm:$0x1] %v95
  $region1: #{_forward_impl.1} parent=0
    #allocation3 [shape = 'u8[2048]{0}', space=vmem, size = 0x800, scoped, tag = 'input window, operand 2, single buffered']
    #allocation4 [shape = 's32[1]{0}', space=sflag, size = 0x4, scoped, tag = 'scoped memory for _forward_impl.1']
    #allocation5 [shape = 'u8[196608]{0}', space=vmem, size = 0x30000, scoped, tag = 'input window, operand 8, single buffered']
    #allocation6 [shape = 's32[1]{0}', space=sflag, size = 0x4, scoped, tag = 'scoped memory for _forward_impl.1']
    #allocation7 [shape = 'u8[16384]{0}', space=vmem, size = 0x4000, scoped, tag = 'input window, operand 10, single buffered']
    #allocation8 [shape = 'u8[16384]{0}', space=vmem, size = 0x4000, scoped, tag = 'input window, operand 12, single buffered']
    #allocation9 [shape = 's32[1]{0}', space=sflag, size = 0x4, scoped, tag = 'scoped memory for _forward_impl.1']
    #allocation10 [shape = 'u8[196608]{0}', space=vmem, size = 0x30000, scoped, tag = 'input window, operand 14, single buffered']
    #allocation11 [shape = 'u8[16384]{0}', space=vmem, size = 0x4000, scoped, tag = 'input window, operand 16, single buffered']
    #allocation12 [shape = 's32[1]{0}', space=sflag, size = 0x4, scoped, tag = 'scoped memory for _forward_impl.1']
    #allocation13 [shape = 'u8[16384]{0}', space=vmem, size = 0x4000, scoped, tag = 'input window, operand 18, single buffered']
    #allocation14 [shape = 'u8[196608]{0}', space=vmem, size = 0x30000, scoped, tag = 'input window, operand 20, single buffered']
    #allocation15 [shape = 's32[1]{0}', space=sflag, size = 0x4, scoped, tag = 'scoped memory for _forward_impl.1']
    #allocation16 [shape = 'u8[16384]{0}', space=vmem, size = 0x4000, scoped, tag = 'input window, operand 22, single buffered']
    #allocation17 [shape = 'u8[16384]{0}', space=vmem, size = 0x4000, scoped, tag = 'input window, operand 24, single buffered']
    #allocation18 [shape = 's32[1]{0}', space=sflag, size = 0x4, scoped, tag = 'scoped memory for _forward_impl.1']
    #allocation19 [shape = 'u8[49152]{0}', space=vmem, size = 0xc000, scoped, tag = 'input window, operand 26, single buffered']
    #allocation20 [shape = 'u8[1572864]{0}', space=vmem, size = 0x180000, scoped, tag = 'input window, operand 29, single buffered']
    #allocation21 [shape = 's32[1]{0}', space=sflag, size = 0x4, scoped, tag = 'scoped memory for _forward_impl.1']
    #allocation22 [shape = 'u8[512]{0}', space=vmem, size = 0x400, scoped, tag = 'input window, operand 31, single buffered']
    #allocation23 [shape = 'u8[512]{0}', space=vmem, size = 0x400, scoped, tag = 'input window, operand 33, single buffered']
    #allocation24 [shape = 's32[1]{0}', space=sflag, size = 0x4, scoped, tag = 'scoped memory for _forward_impl.1']
    #allocation25 [shape = 'u8[2048]{0}', space=vmem, size = 0x800, scoped, tag = 'input window, operand 35, single buffered']
    #allocation26 [shape = 'u8[2048]{0}', space=vmem, size = 0x800, scoped, tag = 'input window, operand 37, single buffered']
    #allocation27 [shape = 's32[1]{0}', space=sflag, size = 0x4, scoped, tag = 'scoped memory for _forward_impl.1']
    #allocation28 [shape = 'u8[4096]{0}', space=vmem, size = 0x1000, scoped, tag = 'input window, operand 39, single buffered']
    #allocation29 [shape = 'u8[4096]{0}', space=vmem, size = 0x1000, scoped, tag = 'input window, operand 41, single buffered']
    #allocation30 [shape = 's32[1]{0}', space=sflag, size = 0x4, scoped, tag = 'scoped memory for _forward_impl.1']
    %97 = vsyncpa [#allocation4], 0
    %98 = vsyncpa [#allocation6], 0
    %99 = vsyncpa [#allocation9], 0
    %100 = vsyncpa [#allocation12], 0
    %101 = vsyncpa [#allocation15], 0
    %102 = vsyncpa [#allocation18], 0
    %103 = vsyncpa [#allocation21], 0
    %104 = vsyncpa [#allocation24], 0
    %105 = vsyncpa [#allocation27], 0
    %106 = vsyncpa [#allocation30], 0
    // Predicated region
    $region2: #{_forward_impl.1} parent=1 // pred_check
      _
    $region3: #{_forward_impl.1} parent=1 // pred_check_branch
      %108 = sbr.rel (0) target = $region5
    $region4: #{_forward_impl.1} parent=1 // pred_region
      _
    $region5: #{_forward_impl.1} parent=1 // pred_fallthru
      _
    // Predicated region
    $region6: #{_forward_impl.1} parent=1 // pred_check
      _
    $region7: #{_forward_impl.1} parent=1 // pred_check_branch
      %110 = sbr.rel (0) target = $region9
    $region8: #{_forward_impl.1} parent=1 // pred_region
      _
    $region9: #{_forward_impl.1} parent=1 // pred_fallthru
      _
    // Predicated region
    $region10: #{_forward_impl.1} parent=1 // pred_check
      _
    $region11: #{_forward_impl.1} parent=1 // pred_check_branch
      %112 = sbr.rel (0) target = $region13
    $region12: #{_forward_impl.1} parent=1 // pred_region
      %114 = vsyncadd [#allocation4], 0
      %s116 = sshll.u32 %s5, 4
      %s117 = int_to_ptr.hbm [resolvable:$true] %s116
      %s118 = sshll.u32 [#allocation3], 4
      %s119 = int_to_ptr.vmem [resolvable:$true] %s118
      %121 = dma.hbm_to_vmem [thread:$0]  %s117, 64, %s119, [#allocation4]
    $region13: #{_forward_impl.1} parent=1 // pred_fallthru
      _
    // Predicated region
    $region14: #{_forward_impl.1} parent=1 // pred_check
      _
    $region15: #{_forward_impl.1} parent=1 // pred_check_branch
      %123 = sbr.rel (0) target = $region17
    $region16: #{_forward_impl.1} parent=1 // pred_region
      _
    $region17: #{_forward_impl.1} parent=1 // pred_fallthru
      _
    // Predicated region
    $region18: #{_forward_impl.1} parent=1 // pred_check
      _
    $region19: #{_forward_impl.1} parent=1 // pred_check_branch
      %125 = sbr.rel (0) target = $region21
    $region20: #{_forward_impl.1} parent=1 // pred_region
      _
    $region21: #{_forward_impl.1} parent=1 // pred_fallthru
      _
    // Predicated region
    $region22: #{_forward_impl.1} parent=1 // pred_check
      _
    $region23: #{_forward_impl.1} parent=1 // pred_check_branch
      %127 = sbr.rel (0) target = $region25
    $region24: #{_forward_impl.1} parent=1 // pred_region
      _
    $region25: #{_forward_impl.1} parent=1 // pred_fallthru
      _
    // Predicated region
    $region26: #{_forward_impl.1} parent=1 // pred_check
      _
    $region27: #{_forward_impl.1} parent=1 // pred_check_branch
      %129 = sbr.rel (0) target = $region29
    $region28: #{_forward_impl.1} parent=1 // pred_region
      _
    $region29: #{_forward_impl.1} parent=1 // pred_fallthru
      _
    // Predicated region
    $region30: #{_forward_impl.1} parent=1 // pred_check
      _
    $region31: #{_forward_impl.1} parent=1 // pred_check_branch
      %131 = sbr.rel (0) target = $region33
    $region32: #{_forward_impl.1} parent=1 // pred_region
      _
    $region33: #{_forward_impl.1} parent=1 // pred_fallthru
      _
    // Predicated region
    $region34: #{_forward_impl.1} parent=1 // pred_check
      _
    $region35: #{_forward_impl.1} parent=1 // pred_check_branch
      %133 = sbr.rel (0) target = $region37
    $region36: #{_forward_impl.1} parent=1 // pred_region
      %135 = vsyncadd [#allocation6], 0
      %s136 = sshll.u32 %s17, 4
      %s137 = int_to_ptr.hbm [resolvable:$true] %s136
      %s138 = sshll.u32 [#allocation5], 4
      %s139 = int_to_ptr.vmem [resolvable:$true] %s138
      %144 = dma.hbm_to_vmem [thread:$0]  %s137, 6144, %s139, [#allocation6], 64, 64, 4
    $region37: #{_forward_impl.1} parent=1 // pred_fallthru
      _
    // Predicated region
    $region38: #{_forward_impl.1} parent=1 // pred_check
      _
    $region39: #{_forward_impl.1} parent=1 // pred_check_branch
      %146 = sbr.rel (0) target = $region41
    $region40: #{_forward_impl.1} parent=1 // pred_region
      _
    $region41: #{_forward_impl.1} parent=1 // pred_fallthru
      _
    // Predicated region
    $region42: #{_forward_impl.1} parent=1 // pred_check
      _
    $region43: #{_forward_impl.1} parent=1 // pred_check_branch
      %148 = sbr.rel (0) target = $region45
    $region44: #{_forward_impl.1} parent=1 // pred_region
      %150 = vsyncadd [#allocation6], 0
      %s151 = sshll.u32 %s21, 4
      %s152 = int_to_ptr.hbm [resolvable:$true] %s151
      %s153 = sshll.u32 [#allocation7], 4
      %s154 = int_to_ptr.vmem [resolvable:$true] %s153
      %159 = dma.hbm_to_vmem [thread:$0]  %s152, 512, %s154, [#allocation6], 128, 128, 8
    $region45: #{_forward_impl.1} parent=1 // pred_fallthru
      _
    // Predicated region
    $region46: #{_forward_impl.1} parent=1 // pred_check
      _
    $region47: #{_forward_impl.1} parent=1 // pred_check_branch
      %161 = sbr.rel (0) target = $region49
    $region48: #{_forward_impl.1} parent=1 // pred_region
      _
    $region49: #{_forward_impl.1} parent=1 // pred_fallthru
      _
    // Predicated region
    $region50: #{_forward_impl.1} parent=1 // pred_check
      _
    $region51: #{_forward_impl.1} parent=1 // pred_check_branch
      %163 = sbr.rel (0) target = $region53
    $region52: #{_forward_impl.1} parent=1 // pred_region
      %165 = vsyncadd [#allocation9], 0
      %s166 = sshll.u32 %s25, 4
      %s167 = int_to_ptr.hbm [resolvable:$true] %s166
      %s168 = sshll.u32 [#allocation8], 4
      %s169 = int_to_ptr.vmem [resolvable:$true] %s168
      %174 = dma.hbm_to_vmem [thread:$0]  %s167, 512, %s169, [#allocation9], 128, 128, 8
    $region53: #{_forward_impl.1} parent=1 // pred_fallthru
      _
    // Predicated region
    $region54: #{_forward_impl.1} parent=1 // pred_check
      _
    $region55: #{_forward_impl.1} parent=1 // pred_check_branch
      %176 = sbr.rel (0) target = $region57
    $region56: #{_forward_impl.1} parent=1 // pred_region
      _
    $region57: #{_forward_impl.1} parent=1 // pred_fallthru
      _
    // Predicated region
    $region58: #{_forward_impl.1} parent=1 // pred_check
      _
    $region59: #{_forward_impl.1} parent=1 // pred_check_branch
      %178 = sbr.rel (0) target = $region61
    $region60: #{_forward_impl.1} parent=1 // pred_region
      %180 = vsyncadd [#allocation9], 0
      %s181 = sshll.u32 %s29, 4
      %s182 = int_to_ptr.hbm [resolvable:$true] %s181
      %s183 = sshll.u32 [#allocation10], 4
      %s184 = int_to_ptr.vmem [resolvable:$true] %s183
      %189 = dma.hbm_to_vmem [thread:$0]  %s182, 6144, %s184, [#allocation9], 64, 64, 4
    $region61: #{_forward_impl.1} parent=1 // pred_fallthru
      _
    // Predicated region
    $region62: #{_forward_impl.1} parent=1 // pred_check
      _
    $region63: #{_forward_impl.1} parent=1 // pred_check_branch
      %191 = sbr.rel (0) target = $region65
    $region64: #{_forward_impl.1} parent=1 // pred_region
      _
    $region65: #{_forward_impl.1} parent=1 // pred_fallthru
      _
    // Predicated region
    $region66: #{_forward_impl.1} parent=1 // pred_check
      _
    $region67: #{_forward_impl.1} parent=1 // pred_check_branch
      %193 = sbr.rel (0) target = $region69
    $region68: #{_forward_impl.1} parent=1 // pred_region
      %195 = vsyncadd [#allocation12], 0
      %s196 = sshll.u32 %s33, 4
      %s197 = int_to_ptr.hbm [resolvable:$true] %s196
      %s198 = sshll.u32 [#allocation11], 4
      %s199 = int_to_ptr.vmem [resolvable:$true] %s198
      %204 = dma.hbm_to_vmem [thread:$0]  %s197, 512, %s199, [#allocation12], 128, 128, 8
    $region69: #{_forward_impl.1} parent=1 // pred_fallthru
      _
    // Predicated region
    $region70: #{_forward_impl.1} parent=1 // pred_check
      _
    $region71: #{_forward_impl.1} parent=1 // pred_check_branch
      %206 = sbr.rel (0) target = $region73
    $region72: #{_forward_impl.1} parent=1 // pred_region
      _
    $region73: #{_forward_impl.1} parent=1 // pred_fallthru
      _
    // Predicated region
    $region74: #{_forward_impl.1} parent=1 // pred_check
      _
    $region75: #{_forward_impl.1} parent=1 // pred_check_branch
      %208 = sbr.rel (0) target = $region77
    $region76: #{_forward_impl.1} parent=1 // pred_region
      %210 = vsyncadd [#allocation12], 0
      %s211 = sshll.u32 %s37, 4
      %s212 = int_to_ptr.hbm [resolvable:$true] %s211
      %s213 = sshll.u32 [#allocation13], 4
      %s214 = int_to_ptr.vmem [resolvable:$true] %s213
      %219 = dma.hbm_to_vmem [thread:$0]  %s212, 512, %s214, [#allocation12], 128, 128, 8
    $region77: #{_forward_impl.1} parent=1 // pred_fallthru
      _
    // Predicated region
    $region78: #{_forward_impl.1} parent=1 // pred_check
      _
    $region79: #{_forward_impl.1} parent=1 // pred_check_branch
      %221 = sbr.rel (0) target = $region81
    $region80: #{_forward_impl.1} parent=1 // pred_region
      _
    $region81: #{_forward_impl.1} parent=1 // pred_fallthru
      _
    // Predicated region
    $region82: #{_forward_impl.1} parent=1 // pred_check
      _
    $region83: #{_forward_impl.1} parent=1 // pred_check_branch
      %223 = sbr.rel (0) target = $region85
    $region84: #{_forward_impl.1} parent=1 // pred_region
      %225 = vsyncadd [#allocation15], 0
      %s226 = sshll.u32 %s41, 4
      %s227 = int_to_ptr.hbm [resolvable:$true] %s226
      %s228 = sshll.u32 [#allocation14], 4
      %s229 = int_to_ptr.vmem [resolvable:$true] %s228
      %234 = dma.hbm_to_vmem [thread:$0]  %s227, 6144, %s229, [#allocation15], 64, 64, 4
    $region85: #{_forward_impl.1} parent=1 // pred_fallthru
      _
    // Predicated region
    $region86: #{_forward_impl.1} parent=1 // pred_check
      _
    $region87: #{_forward_impl.1} parent=1 // pred_check_branch
      %236 = sbr.rel (0) target = $region89
    $region88: #{_forward_impl.1} parent=1 // pred_region
      _
    $region89: #{_forward_impl.1} parent=1 // pred_fallthru
      _
    // Predicated region
    $region90: #{_forward_impl.1} parent=1 // pred_check
      _
    $region91: #{_forward_impl.1} parent=1 // pred_check_branch
      %238 = sbr.rel (0) target = $region93
    $region92: #{_forward_impl.1} parent=1 // pred_region
      %240 = vsyncadd [#allocation15], 0
      %s241 = sshll.u32 %s45, 4
      %s242 = int_to_ptr.hbm [resolvable:$true] %s241
      %s243 = sshll.u32 [#allocation16], 4
      %s244 = int_to_ptr.vmem [resolvable:$true] %s243
      %249 = dma.hbm_to_vmem [thread:$0]  %s242, 512, %s244, [#allocation15], 128, 128, 8
    $region93: #{_forward_impl.1} parent=1 // pred_fallthru
      _
    // Predicated region
    $region94: #{_forward_impl.1} parent=1 // pred_check
      _
    $region95: #{_forward_impl.1} parent=1 // pred_check_branch
      %251 = sbr.rel (0) target = $region97
    $region96: #{_forward_impl.1} parent=1 // pred_region
      _
    $region97: #{_forward_impl.1} parent=1 // pred_fallthru
      _
    // Predicated region
    $region98: #{_forward_impl.1} parent=1 // pred_check
      _
    $region99: #{_forward_impl.1} parent=1 // pred_check_branch
      %253 = sbr.rel (0) target = $region101
    $region100: #{_forward_impl.1} parent=1 // pred_region
      %255 = vsyncadd [#allocation18], 0
      %s256 = sshll.u32 %s49, 4
      %s257 = int_to_ptr.hbm [resolvable:$true] %s256
      %s258 = sshll.u32 [#allocation17], 4
      %s259 = int_to_ptr.vmem [resolvable:$true] %s258
      %264 = dma.hbm_to_vmem [thread:$0]  %s257, 512, %s259, [#allocation18], 128, 128, 8
    $region101: #{_forward_impl.1} parent=1 // pred_fallthru
      _
    // Predicated region
    $region102: #{_forward_impl.1} parent=1 // pred_check
      _
    $region103: #{_forward_impl.1} parent=1 // pred_check_branch
      %266 = sbr.rel (0) target = $region105
    $region104: #{_forward_impl.1} parent=1 // pred_region
      _
    $region105: #{_forward_impl.1} parent=1 // pred_fallthru
      _
    // Predicated region
    $region106: #{_forward_impl.1} parent=1 // pred_check
      _
    $region107: #{_forward_impl.1} parent=1 // pred_check_branch
      %268 = sbr.rel (0) target = $region109
    $region108: #{_forward_impl.1} parent=1 // pred_region
      %270 = vsyncadd [#allocation18], 0
      %s271 = sshll.u32 %s53, 4
      %s272 = int_to_ptr.hbm [resolvable:$true] %s271
      %s273 = sshll.u32 [#allocation19], 4
      %s274 = int_to_ptr.vmem [resolvable:$true] %s273
      %279 = dma.hbm_to_vmem [thread:$0]  %s272, 1536, %s274, [#allocation18], 512, 512, 32
    $region109: #{_forward_impl.1} parent=1 // pred_fallthru
      _
    // Predicated region
    $region110: #{_forward_impl.1} parent=1 // pred_check
      _
    $region111: #{_forward_impl.1} parent=1 // pred_check_branch
      %281 = sbr.rel (0) target = $region113
    $region112: #{_forward_impl.1} parent=1 // pred_region
      _
    $region113: #{_forward_impl.1} parent=1 // pred_fallthru
      _
    // Predicated region
    $region114: #{_forward_impl.1} parent=1 // pred_check
      _
    $region115: #{_forward_impl.1} parent=1 // pred_check_branch
      %283 = sbr.rel (0) target = $region117
    $region116: #{_forward_impl.1} parent=1 // pred_region
      _
    $region117: #{_forward_impl.1} parent=1 // pred_fallthru
      _
    // Predicated region
    $region118: #{_forward_impl.1} parent=1 // pred_check
      _
    $region119: #{_forward_impl.1} parent=1 // pred_check_branch
      %285 = sbr.rel (0) target = $region121
    $region120: #{_forward_impl.1} parent=1 // pred_region
      %287 = vsyncadd [#allocation21], 0
      %s288 = sshll.u32 %s59, 4
      %s289 = int_to_ptr.hbm [resolvable:$true] %s288
      %s290 = sshll.u32 [#allocation20], 4
      %s291 = int_to_ptr.vmem [resolvable:$true] %s290
      %296 = dma.hbm_to_vmem [thread:$0]  %s289, 49152, %s291, [#allocation21], 384, 384, 24
    $region121: #{_forward_impl.1} parent=1 // pred_fallthru
      _
    // Predicated region
    $region122: #{_forward_impl.1} parent=1 // pred_check
      _
    $region123: #{_forward_impl.1} parent=1 // pred_check_branch
      %298 = sbr.rel (0) target = $region125
    $region124: #{_forward_impl.1} parent=1 // pred_region
      _
    $region125: #{_forward_impl.1} parent=1 // pred_fallthru
      _
    // Predicated region
    $region126: #{_forward_impl.1} parent=1 // pred_check
      _
    $region127: #{_forward_impl.1} parent=1 // pred_check_branch
      %300 = sbr.rel (0) target = $region129
    $region128: #{_forward_impl.1} parent=1 // pred_region
      %302 = vsyncadd [#allocation21], 0
      %s304 = sshll.u32 %s63, 4
      %s305 = int_to_ptr.hbm [resolvable:$true] %s304
      %s306 = sshll.u32 [#allocation22], 4
      %s307 = int_to_ptr.vmem [resolvable:$true] %s306
      %309 = dma.hbm_to_vmem [thread:$0]  %s305, 16, %s307, [#allocation21]
    $region129: #{_forward_impl.1} parent=1 // pred_fallthru
      _
    // Predicated region
    $region130: #{_forward_impl.1} parent=1 // pred_check
      _
    $region131: #{_forward_impl.1} parent=1 // pred_check_branch
      %311 = sbr.rel (0) target = $region133
    $region132: #{_forward_impl.1} parent=1 // pred_region
      _
    $region133: #{_forward_impl.1} parent=1 // pred_fallthru
      _
    // Predicated region
    $region134: #{_forward_impl.1} parent=1 // pred_check
      _
    $region135: #{_forward_impl.1} parent=1 // pred_check_branch
      %313 = sbr.rel (0) target = $region137
    $region136: #{_forward_impl.1} parent=1 // pred_region
      %315 = vsyncadd [#allocation24], 0
      %s317 = sshll.u32 %s67, 4
      %s318 = int_to_ptr.hbm [resolvable:$true] %s317
      %s319 = sshll.u32 [#allocation23], 4
      %s320 = int_to_ptr.vmem [resolvable:$true] %s319
      %322 = dma.hbm_to_vmem [thread:$0]  %s318, 16, %s320, [#allocation24]
    $region137: #{_forward_impl.1} parent=1 // pred_fallthru
      _
    // Predicated region
    $region138: #{_forward_impl.1} parent=1 // pred_check
      _
    $region139: #{_forward_impl.1} parent=1 // pred_check_branch
      %324 = sbr.rel (0) target = $region141
    $region140: #{_forward_impl.1} parent=1 // pred_region
      _
    $region141: #{_forward_impl.1} parent=1 // pred_fallthru
      _
    // Predicated region
    $region142: #{_forward_impl.1} parent=1 // pred_check
      _
    $region143: #{_forward_impl.1} parent=1 // pred_check_branch
      %326 = sbr.rel (0) target = $region145
    $region144: #{_forward_impl.1} parent=1 // pred_region
      %328 = vsyncadd [#allocation24], 0
      %s330 = sshll.u32 %s71, 4
      %s331 = int_to_ptr.hbm [resolvable:$true] %s330
      %s332 = sshll.u32 [#allocation25], 4
      %s333 = int_to_ptr.vmem [resolvable:$true] %s332
      %335 = dma.hbm_to_vmem [thread:$0]  %s331, 64, %s333, [#allocation24]
    $region145: #{_forward_impl.1} parent=1 // pred_fallthru
      _
    // Predicated region
    $region146: #{_forward_impl.1} parent=1 // pred_check
      _
    $region147: #{_forward_impl.1} parent=1 // pred_check_branch
      %337 = sbr.rel (0) target = $region149
    $region148: #{_forward_impl.1} parent=1 // pred_region
      _
    $region149: #{_forward_impl.1} parent=1 // pred_fallthru
      _
    // Predicated region
    $region150: #{_forward_impl.1} parent=1 // pred_check
      _
    $region151: #{_forward_impl.1} parent=1 // pred_check_branch
      %339 = sbr.rel (0) target = $region153
    $region152: #{_forward_impl.1} parent=1 // pred_region
      %341 = vsyncadd [#allocation27], 0
      %s343 = sshll.u32 %s75, 4
      %s344 = int_to_ptr.hbm [resolvable:$true] %s343
      %s345 = sshll.u32 [#allocation26], 4
      %s346 = int_to_ptr.vmem [resolvable:$true] %s345
      %348 = dma.hbm_to_vmem [thread:$0]  %s344, 64, %s346, [#allocation27]
    $region153: #{_forward_impl.1} parent=1 // pred_fallthru
      _
    // Predicated region
    $region154: #{_forward_impl.1} parent=1 // pred_check
      _
    $region155: #{_forward_impl.1} parent=1 // pred_check_branch
      %350 = sbr.rel (0) target = $region157
    $region156: #{_forward_impl.1} parent=1 // pred_region
      _
    $region157: #{_forward_impl.1} parent=1 // pred_fallthru
      _
    // Predicated region
    $region158: #{_forward_impl.1} parent=1 // pred_check
      _
    $region159: #{_forward_impl.1} parent=1 // pred_check_branch
      %352 = sbr.rel (0) target = $region161
    $region160: #{_forward_impl.1} parent=1 // pred_region
      %354 = vsyncadd [#allocation27], 0
      %s356 = sshll.u32 %s79, 4
      %s357 = int_to_ptr.hbm [resolvable:$true] %s356
      %s358 = sshll.u32 [#allocation28], 4
      %s359 = int_to_ptr.vmem [resolvable:$true] %s358
      %361 = dma.hbm_to_vmem [thread:$0]  %s357, 128, %s359, [#allocation27]
    $region161: #{_forward_impl.1} parent=1 // pred_fallthru
      _
    // Predicated region
    $region162: #{_forward_impl.1} parent=1 // pred_check
      _
    $region163: #{_forward_impl.1} parent=1 // pred_check_branch
      %363 = sbr.rel (0) target = $region165
    $region164: #{_forward_impl.1} parent=1 // pred_region
      _
    $region165: #{_forward_impl.1} parent=1 // pred_fallthru
      _
    // Predicated region
    $region166: #{_forward_impl.1} parent=1 // pred_check
      _
    $region167: #{_forward_impl.1} parent=1 // pred_check_branch
      %365 = sbr.rel (0) target = $region169
    $region168: #{_forward_impl.1} parent=1 // pred_region
      %367 = vsyncadd [#allocation30], 0
      %s369 = sshll.u32 %s83, 4
      %s370 = int_to_ptr.hbm [resolvable:$true] %s369
      %s371 = sshll.u32 [#allocation29], 4
      %s372 = int_to_ptr.vmem [resolvable:$true] %s371
      %374 = dma.hbm_to_vmem [thread:$0]  %s370, 128, %s372, [#allocation30]
    $region169: #{_forward_impl.1} parent=1 // pred_fallthru
      _
    // Predicated region
    $region170: #{_forward_impl.1} parent=1 // pred_check
      _
    $region171: #{_forward_impl.1} parent=1 // pred_check_branch
      %376 = sbr.rel (0) target = $region173
    $region172: #{_forward_impl.1} parent=1 // pred_region
      _
    $region173: #{_forward_impl.1} parent=1 // pred_fallthru
      _
    // Predicated region
    $region174: #{_forward_impl.1} parent=1 // pred_check
      _
    $region175: #{_forward_impl.1} parent=1 // pred_check_branch
      %378 = sbr.rel (0) target = $region177
    $region176: #{_forward_impl.1} parent=1 // pred_region
      %380 = dma.done [#allocation4], 64
    $region177: #{_forward_impl.1} parent=1 // pred_fallthru
      _
    // Predicated region
    $region178: #{_forward_impl.1} parent=1 // pred_check
      _
    $region179: #{_forward_impl.1} parent=1 // pred_check_branch
      %382 = sbr.rel (0) target = $region181
    $region180: #{_forward_impl.1} parent=1 // pred_region
      %384 = dma.done [#allocation6], 6144
    $region181: #{_forward_impl.1} parent=1 // pred_fallthru
      _
    // Predicated region
    $region182: #{_forward_impl.1} parent=1 // pred_check
      _
    $region183: #{_forward_impl.1} parent=1 // pred_check_branch
      %386 = sbr.rel (0) target = $region185
    $region184: #{_forward_impl.1} parent=1 // pred_region
      %388 = dma.done [#allocation6], 512
    $region185: #{_forward_impl.1} parent=1 // pred_fallthru
      _
    // Predicated region
    $region186: #{_forward_impl.1} parent=1 // pred_check
      _
    $region187: #{_forward_impl.1} parent=1 // pred_check_branch
      %390 = sbr.rel (0) target = $region189
    $region188: #{_forward_impl.1} parent=1 // pred_region
      %392 = dma.done [#allocation9], 512
    $region189: #{_forward_impl.1} parent=1 // pred_fallthru
      _
    // Predicated region
    $region190: #{_forward_impl.1} parent=1 // pred_check
      _
    $region191: #{_forward_impl.1} parent=1 // pred_check_branch
      %394 = sbr.rel (0) target = $region193
    $region192: #{_forward_impl.1} parent=1 // pred_region
      %396 = dma.done [#allocation9], 6144
    $region193: #{_forward_impl.1} parent=1 // pred_fallthru
      _
    // Predicated region
    $region194: #{_forward_impl.1} parent=1 // pred_check
      _
    $region195: #{_forward_impl.1} parent=1 // pred_check_branch
      %398 = sbr.rel (0) target = $region197
    $region196: #{_forward_impl.1} parent=1 // pred_region
      %400 = dma.done [#allocation12], 512
    $region197: #{_forward_impl.1} parent=1 // pred_fallthru
      _
    // Predicated region
    $region198: #{_forward_impl.1} parent=1 // pred_check
      _
    $region199: #{_forward_impl.1} parent=1 // pred_check_branch
      %402 = sbr.rel (0) target = $region201
    $region200: #{_forward_impl.1} parent=1 // pred_region
      %404 = dma.done [#allocation12], 512
    $region201: #{_forward_impl.1} parent=1 // pred_fallthru
      _
    // Predicated region
    $region202: #{_forward_impl.1} parent=1 // pred_check
      _
    $region203: #{_forward_impl.1} parent=1 // pred_check_branch
      %406 = sbr.rel (0) target = $region205
    $region204: #{_forward_impl.1} parent=1 // pred_region
      %408 = dma.done [#allocation15], 6144
    $region205: #{_forward_impl.1} parent=1 // pred_fallthru
      _
    // Predicated region
    $region206: #{_forward_impl.1} parent=1 // pred_check
      _
    $region207: #{_forward_impl.1} parent=1 // pred_check_branch
      %410 = sbr.rel (0) target = $region209
    $region208: #{_forward_impl.1} parent=1 // pred_region
      %412 = dma.done [#allocation15], 512
    $region209: #{_forward_impl.1} parent=1 // pred_fallthru
      _
    // Predicated region
    $region210: #{_forward_impl.1} parent=1 // pred_check
      _
    $region211: #{_forward_impl.1} parent=1 // pred_check_branch
      %414 = sbr.rel (0) target = $region213
    $region212: #{_forward_impl.1} parent=1 // pred_region
      %416 = dma.done [#allocation18], 512
    $region213: #{_forward_impl.1} parent=1 // pred_fallthru
      _
    // Predicated region
    $region214: #{_forward_impl.1} parent=1 // pred_check
      _
    $region215: #{_forward_impl.1} parent=1 // pred_check_branch
      %418 = sbr.rel (0) target = $region217
    $region216: #{_forward_impl.1} parent=1 // pred_region
      %420 = dma.done [#allocation18], 1536
    $region217: #{_forward_impl.1} parent=1 // pred_fallthru
      _
    // Predicated region
    $region218: #{_forward_impl.1} parent=1 // pred_check
      _
    $region219: #{_forward_impl.1} parent=1 // pred_check_branch
      %422 = sbr.rel (0) target = $region221
    $region220: #{_forward_impl.1} parent=1 // pred_region
      %424 = dma.done [#allocation21], 49152
    $region221: #{_forward_impl.1} parent=1 // pred_fallthru
      _
    // Predicated region
    $region222: #{_forward_impl.1} parent=1 // pred_check
      _
    $region223: #{_forward_impl.1} parent=1 // pred_check_branch
      %426 = sbr.rel (0) target = $region225
    $region224: #{_forward_impl.1} parent=1 // pred_region
      %428 = dma.done [#allocation21], 16
    $region225: #{_forward_impl.1} parent=1 // pred_fallthru
      _
    // Predicated region
    $region226: #{_forward_impl.1} parent=1 // pred_check
      _
    $region227: #{_forward_impl.1} parent=1 // pred_check_branch
      %430 = sbr.rel (0) target = $region229
    $region228: #{_forward_impl.1} parent=1 // pred_region
      %432 = dma.done [#allocation24], 16
    $region229: #{_forward_impl.1} parent=1 // pred_fallthru
      _
    // Predicated region
    $region230: #{_forward_impl.1} parent=1 // pred_check
      _
    $region231: #{_forward_impl.1} parent=1 // pred_check_branch
      %434 = sbr.rel (0) target = $region233
    $region232: #{_forward_impl.1} parent=1 // pred_region
      %436 = dma.done [#allocation24], 64
    $region233: #{_forward_impl.1} parent=1 // pred_fallthru
      _
    // Predicated region
    $region234: #{_forward_impl.1} parent=1 // pred_check
      _
    $region235: #{_forward_impl.1} parent=1 // pred_check_branch
      %438 = sbr.rel (0) target = $region237
    $region236: #{_forward_impl.1} parent=1 // pred_region
      %440 = dma.done [#allocation27], 64
    $region237: #{_forward_impl.1} parent=1 // pred_fallthru
      _
    // Predicated region
    $region238: #{_forward_impl.1} parent=1 // pred_check
      _
    $region239: #{_forward_impl.1} parent=1 // pred_check_branch
      %442 = sbr.rel (0) target = $region241
    $region240: #{_forward_impl.1} parent=1 // pred_region
      %444 = dma.done [#allocation27], 128
    $region241: #{_forward_impl.1} parent=1 // pred_fallthru
      _
    // Predicated region
    $region242: #{_forward_impl.1} parent=1 // pred_check
      _
    $region243: #{_forward_impl.1} parent=1 // pred_check_branch
      %446 = sbr.rel (0) target = $region245
    $region244: #{_forward_impl.1} parent=1 // pred_region
      %448 = dma.done [#allocation30], 128
    $region245: #{_forward_impl.1} parent=1 // pred_fallthru
      _
    %v450 = vld [vmem:[%s1] sm:$0xff]
    %v451 = vld [vmem:[%s1 + $0x8] sm:$0xff]
    %v452 = vld [vmem:[%s1 + $0x10] sm:$0xff]
    %456 = vst [vmem:[#allocation1] ss:$2 sm:$0xff] %v450
    %s457 = scalar_lea.vmem [#allocation1], 16
    %458 = vst [vmem:[%s457] ss:$2 sm:$0xff] %v451
    %s459 = scalar_lea.vmem [#allocation1], 32
    %460 = vst [vmem:[%s459] ss:$2 sm:$0xff] %v452
    %v461 = vld.sshfl [vmem:[#allocation1] sm:$0xff pattern:$0x75316420]
    %v462 = vld.sshfl [vmem:[#allocation1 + $0x8] sm:$0xff pattern:$0x75316420]
    %v463 = vld.sshfl [vmem:[#allocation1 + $0x10] sm:$0xff pattern:$0x75316420]
    %v464 = vld.sshfl [vmem:[#allocation1 + $0x18] sm:$0xff pattern:$0x75316420]
    %v465 = vld.sshfl [vmem:[#allocation1 + $0x20] sm:$0xff pattern:$0x75316420]
    %v466 = vld.sshfl [vmem:[#allocation1 + $0x28] sm:$0xff pattern:$0x75316420]
    %v473 = vpack.c.bf16 %v461, %v461
    %v474 = vpack.c.bf16 %v462, %v462
    %v475 = vpack.c.bf16 %v463, %v463
    %v476 = vpack.c.bf16 %v464, %v464
    %v477 = vpack.c.bf16 %v465, %v465
    %v478 = vpack.c.bf16 %v466, %v466
    %v479 = vld [vmem:[#allocation5] sm:$0xf]
    %v480 = vld [vmem:[#allocation5 + $0x4] sm:$0xf]
    %v481 = vld [vmem:[#allocation5 + $0x8] sm:$0xf]
    %v482 = vld [vmem:[#allocation5 + $0xc] sm:$0xf]
    %v483 = vld [vmem:[#allocation5 + $0x10] sm:$0xf]
    %v484 = vld [vmem:[#allocation5 + $0x14] sm:$0xf]
    %v485 = vld [vmem:[#allocation5 + $0x18] sm:$0xf]
    %v486 = vld [vmem:[#allocation5 + $0x1c] sm:$0xf]
    %v487 = vld [vmem:[#allocation5 + $0x20] sm:$0xf]
    %v488 = vld [vmem:[#allocation5 + $0x24] sm:$0xf]
    %v489 = vld [vmem:[#allocation5 + $0x28] sm:$0xf]
    %v490 = vld [vmem:[#allocation5 + $0x2c] sm:$0xf]
    %v491 = vld [vmem:[#allocation5 + $0x30] sm:$0xf]
    %v492 = vld [vmem:[#allocation5 + $0x34] sm:$0xf]
    %v493 = vld [vmem:[#allocation5 + $0x38] sm:$0xf]
    %v494 = vld [vmem:[#allocation5 + $0x3c] sm:$0xf]
    %v495 = vld [vmem:[#allocation5 + $0x40] sm:$0xf]
    %v496 = vld [vmem:[#allocation5 + $0x44] sm:$0xf]
    %v497 = vld [vmem:[#allocation5 + $0x48] sm:$0xf]
    %v498 = vld [vmem:[#allocation5 + $0x4c] sm:$0xf]
    %v499 = vld [vmem:[#allocation5 + $0x50] sm:$0xf]
    %v500 = vld [vmem:[#allocation5 + $0x54] sm:$0xf]
    %v501 = vld [vmem:[#allocation5 + $0x58] sm:$0xf]
    %v502 = vld [vmem:[#allocation5 + $0x5c] sm:$0xf]
    %v503 = vld [vmem:[#allocation5 + $0x60] sm:$0xf]
    %v504 = vld [vmem:[#allocation5 + $0x64] sm:$0xf]
    %v505 = vld [vmem:[#allocation5 + $0x68] sm:$0xf]
    %v506 = vld [vmem:[#allocation5 + $0x6c] sm:$0xf]
    %v507 = vld [vmem:[#allocation5 + $0x70] sm:$0xf]
    %v508 = vld [vmem:[#allocation5 + $0x74] sm:$0xf]
    %v509 = vld [vmem:[#allocation5 + $0x78] sm:$0xf]
    %v510 = vld [vmem:[#allocation5 + $0x7c] sm:$0xf]
    %v511 = vld [vmem:[#allocation5 + $0x80] sm:$0xf]
    %v512 = vld [vmem:[#allocation5 + $0x84] sm:$0xf]
    %v513 = vld [vmem:[#allocation5 + $0x88] sm:$0xf]
    %v514 = vld [vmem:[#allocation5 + $0x8c] sm:$0xf]
    %v515 = vld [vmem:[#allocation5 + $0x90] sm:$0xf]
    %v516 = vld [vmem:[#allocation5 + $0x94] sm:$0xf]
    %v517 = vld [vmem:[#allocation5 + $0x98] sm:$0xf]
    %v518 = vld [vmem:[#allocation5 + $0x9c] sm:$0xf]
    %v519 = vld [vmem:[#allocation5 + $0xa0] sm:$0xf]
    %v520 = vld [vmem:[#allocation5 + $0xa4] sm:$0xf]
    %v521 = vld [vmem:[#allocation5 + $0xa8] sm:$0xf]
    %v522 = vld [vmem:[#allocation5 + $0xac] sm:$0xf]
    %v523 = vld [vmem:[#allocation5 + $0xb0] sm:$0xf]
    %v524 = vld [vmem:[#allocation5 + $0xb4] sm:$0xf]
    %v525 = vld [vmem:[#allocation5 + $0xb8] sm:$0xf]
    %v526 = vld [vmem:[#allocation5 + $0xbc] sm:$0xf]
    %v527 = vld [vmem:[#allocation5 + $0xc0] sm:$0xf]
    %v528 = vld [vmem:[#allocation5 + $0xc4] sm:$0xf]
    %v529 = vld [vmem:[#allocation5 + $0xc8] sm:$0xf]
    %v530 = vld [vmem:[#allocation5 + $0xcc] sm:$0xf]
    %v531 = vld [vmem:[#allocation5 + $0xd0] sm:$0xf]
    %v532 = vld [vmem:[#allocation5 + $0xd4] sm:$0xf]
    %v533 = vld [vmem:[#allocation5 + $0xd8] sm:$0xf]
    %v534 = vld [vmem:[#allocation5 + $0xdc] sm:$0xf]
    %v535 = vld [vmem:[#allocation5 + $0xe0] sm:$0xf]
    %v536 = vld [vmem:[#allocation5 + $0xe4] sm:$0xf]
    %v537 = vld [vmem:[#allocation5 + $0xe8] sm:$0xf]
    %v538 = vld [vmem:[#allocation5 + $0xec] sm:$0xf]
    %v539 = vld [vmem:[#allocation5 + $0xf0] sm:$0xf]
    %v540 = vld [vmem:[#allocation5 + $0xf4] sm:$0xf]
    %v541 = vld [vmem:[#allocation5 + $0xf8] sm:$0xf]
    %v542 = vld [vmem:[#allocation5 + $0xfc] sm:$0xf]
    %v543 = vld [vmem:[#allocation5 + $0x100] sm:$0xf]
    %v544 = vld [vmem:[#allocation5 + $0x104] sm:$0xf]
    %v545 = vld [vmem:[#allocation5 + $0x108] sm:$0xf]
    %v546 = vld [vmem:[#allocation5 + $0x10c] sm:$0xf]
    %v547 = vld [vmem:[#allocation5 + $0x110] sm:$0xf]
    %v548 = vld [vmem:[#allocation5 + $0x114] sm:$0xf]
    %v549 = vld [vmem:[#allocation5 + $0x118] sm:$0xf]
    %v550 = vld [vmem:[#allocation5 + $0x11c] sm:$0xf]
    %v551 = vld [vmem:[#allocation5 + $0x120] sm:$0xf]
    %v552 = vld [vmem:[#allocation5 + $0x124] sm:$0xf]
    %v553 = vld [vmem:[#allocation5 + $0x128] sm:$0xf]
    %v554 = vld [vmem:[#allocation5 + $0x12c] sm:$0xf]
    %v555 = vld [vmem:[#allocation5 + $0x130] sm:$0xf]
    %v556 = vld [vmem:[#allocation5 + $0x134] sm:$0xf]
    %v557 = vld [vmem:[#allocation5 + $0x138] sm:$0xf]
    %v558 = vld [vmem:[#allocation5 + $0x13c] sm:$0xf]
    %v559 = vld [vmem:[#allocation5 + $0x140] sm:$0xf]
    %v560 = vld [vmem:[#allocation5 + $0x144] sm:$0xf]
    %v561 = vld [vmem:[#allocation5 + $0x148] sm:$0xf]
    %v562 = vld [vmem:[#allocation5 + $0x14c] sm:$0xf]
    %v563 = vld [vmem:[#allocation5 + $0x150] sm:$0xf]
    %v564 = vld [vmem:[#allocation5 + $0x154] sm:$0xf]
    %v565 = vld [vmem:[#allocation5 + $0x158] sm:$0xf]
    %v566 = vld [vmem:[#allocation5 + $0x15c] sm:$0xf]
    %v567 = vld [vmem:[#allocation5 + $0x160] sm:$0xf]
    %v568 = vld [vmem:[#allocation5 + $0x164] sm:$0xf]
    %v569 = vld [vmem:[#allocation5 + $0x168] sm:$0xf]
    %v570 = vld [vmem:[#allocation5 + $0x16c] sm:$0xf]
    %v571 = vld [vmem:[#allocation5 + $0x170] sm:$0xf]
    %v572 = vld [vmem:[#allocation5 + $0x174] sm:$0xf]
    %v573 = vld [vmem:[#allocation5 + $0x178] sm:$0xf]
    %v574 = vld [vmem:[#allocation5 + $0x17c] sm:$0xf]
    %v575 = vld [vmem:[%s19] sm:$0x1]
    %v576 = vld [vmem:[#allocation7] sm:$0xff]
    %v577 = vld [vmem:[#allocation7 + $0x8] sm:$0xff]
    %v578 = vld [vmem:[#allocation7 + $0x10] sm:$0xff]
    %v579 = vld [vmem:[#allocation7 + $0x18] sm:$0xff]
    %v580 = vld [vmem:[%s23] sm:$0x1]
    %v581 = vld [vmem:[#allocation8] sm:$0xff]
    %v582 = vld [vmem:[#allocation8 + $0x8] sm:$0xff]
    %v583 = vld [vmem:[#allocation8 + $0x10] sm:$0xff]
    %v584 = vld [vmem:[#allocation8 + $0x18] sm:$0xff]
    %v585 = vld [vmem:[%s27] sm:$0x1]
    %v587 = vperm.slane %v575, 0
    %v685 = vunpack.c.l.b16 %v479
    %v686 = vunpack.c.l.b16 %v480
    %v687 = vunpack.c.l.b16 %v481
    %v688 = vunpack.c.l.b16 %v482
    %v689 = vunpack.c.l.b16 %v483
    %v690 = vunpack.c.l.b16 %v484
    %v691 = vunpack.c.l.b16 %v485
    %v692 = vunpack.c.l.b16 %v486
    %v693 = vunpack.c.l.b16 %v487
    %v694 = vunpack.c.l.b16 %v488
    %v695 = vunpack.c.l.b16 %v489
    %v696 = vunpack.c.l.b16 %v490
    %v697 = vunpack.c.l.b16 %v491
    %v698 = vunpack.c.l.b16 %v492
    %v699 = vunpack.c.l.b16 %v493
    %v700 = vunpack.c.l.b16 %v494
    %v701 = vunpack.c.l.b16 %v495
    %v702 = vunpack.c.l.b16 %v496
    %v703 = vunpack.c.l.b16 %v497
    %v704 = vunpack.c.l.b16 %v498
    %v705 = vunpack.c.l.b16 %v499
    %v706 = vunpack.c.l.b16 %v500
    %v707 = vunpack.c.l.b16 %v501
    %v708 = vunpack.c.l.b16 %v502
    %v709 = vunpack.c.l.b16 %v503
    %v710 = vunpack.c.l.b16 %v504
    %v711 = vunpack.c.l.b16 %v505
    %v712 = vunpack.c.l.b16 %v506
    %v713 = vunpack.c.l.b16 %v507
    %v714 = vunpack.c.l.b16 %v508
    %v715 = vunpack.c.l.b16 %v509
    %v716 = vunpack.c.l.b16 %v510
    %v717 = vunpack.c.l.b16 %v511
    %v718 = vunpack.c.l.b16 %v512
    %v719 = vunpack.c.l.b16 %v513
    %v720 = vunpack.c.l.b16 %v514
    %v721 = vunpack.c.l.b16 %v515
    %v722 = vunpack.c.l.b16 %v516
    %v723 = vunpack.c.l.b16 %v517
    %v724 = vunpack.c.l.b16 %v518
    %v725 = vunpack.c.l.b16 %v519
    %v726 = vunpack.c.l.b16 %v520
    %v727 = vunpack.c.l.b16 %v521
    %v728 = vunpack.c.l.b16 %v522
    %v729 = vunpack.c.l.b16 %v523
    %v730 = vunpack.c.l.b16 %v524
    %v731 = vunpack.c.l.b16 %v525
    %v732 = vunpack.c.l.b16 %v526
    %v733 = vunpack.c.l.b16 %v527
    %v734 = vunpack.c.l.b16 %v528
    %v735 = vunpack.c.l.b16 %v529
    %v736 = vunpack.c.l.b16 %v530
    %v737 = vunpack.c.l.b16 %v531
    %v738 = vunpack.c.l.b16 %v532
    %v739 = vunpack.c.l.b16 %v533
    %v740 = vunpack.c.l.b16 %v534
    %v741 = vunpack.c.l.b16 %v535
    %v742 = vunpack.c.l.b16 %v536
    %v743 = vunpack.c.l.b16 %v537
    %v744 = vunpack.c.l.b16 %v538
    %v745 = vunpack.c.l.b16 %v539
    %v746 = vunpack.c.l.b16 %v540
    %v747 = vunpack.c.l.b16 %v541
    %v748 = vunpack.c.l.b16 %v542
    %v749 = vunpack.c.l.b16 %v543
    %v750 = vunpack.c.l.b16 %v544
    %v751 = vunpack.c.l.b16 %v545
    %v752 = vunpack.c.l.b16 %v546
    %v753 = vunpack.c.l.b16 %v547
    %v754 = vunpack.c.l.b16 %v548
    %v755 = vunpack.c.l.b16 %v549
    %v756 = vunpack.c.l.b16 %v550
    %v757 = vunpack.c.l.b16 %v551
    %v758 = vunpack.c.l.b16 %v552
    %v759 = vunpack.c.l.b16 %v553
    %v760 = vunpack.c.l.b16 %v554
    %v761 = vunpack.c.l.b16 %v555
    %v762 = vunpack.c.l.b16 %v556
    %v763 = vunpack.c.l.b16 %v557
    %v764 = vunpack.c.l.b16 %v558
    %v765 = vunpack.c.l.b16 %v559
    %v766 = vunpack.c.l.b16 %v560
    %v767 = vunpack.c.l.b16 %v561
    %v768 = vunpack.c.l.b16 %v562
    %v769 = vunpack.c.l.b16 %v563
    %v770 = vunpack.c.l.b16 %v564
    %v771 = vunpack.c.l.b16 %v565
    %v772 = vunpack.c.l.b16 %v566
    %v773 = vunpack.c.l.b16 %v567
    %v774 = vunpack.c.l.b16 %v568
    %v775 = vunpack.c.l.b16 %v569
    %v776 = vunpack.c.l.b16 %v570
    %v777 = vunpack.c.l.b16 %v571
    %v778 = vunpack.c.l.b16 %v572
    %v779 = vunpack.c.l.b16 %v573
    %v780 = vunpack.c.l.b16 %v574
    %v781 = vpack.c.b16 %v686, %v685
    %v782 = vpack.c.b16 %v688, %v687
    %v783 = vpack.c.b16 %v690, %v689
    %v784 = vpack.c.b16 %v692, %v691
    %v785 = vpack.c.b16 %v694, %v693
    %v786 = vpack.c.b16 %v696, %v695
    %v787 = vpack.c.b16 %v698, %v697
    %v788 = vpack.c.b16 %v700, %v699
    %v789 = vpack.c.b16 %v702, %v701
    %v790 = vpack.c.b16 %v704, %v703
    %v791 = vpack.c.b16 %v706, %v705
    %v792 = vpack.c.b16 %v708, %v707
    %v793 = vpack.c.b16 %v710, %v709
    %v794 = vpack.c.b16 %v712, %v711
    %v795 = vpack.c.b16 %v714, %v713
    %v796 = vpack.c.b16 %v716, %v715
    %v797 = vpack.c.b16 %v718, %v717
    %v798 = vpack.c.b16 %v720, %v719
    %v799 = vpack.c.b16 %v722, %v721
    %v800 = vpack.c.b16 %v724, %v723
    %v801 = vpack.c.b16 %v726, %v725
    %v802 = vpack.c.b16 %v728, %v727
    %v803 = vpack.c.b16 %v730, %v729
    %v804 = vpack.c.b16 %v732, %v731
    %v805 = vpack.c.b16 %v734, %v733
    %v806 = vpack.c.b16 %v736, %v735
    %v807 = vpack.c.b16 %v738, %v737
    %v808 = vpack.c.b16 %v740, %v739
    %v809 = vpack.c.b16 %v742, %v741
    %v810 = vpack.c.b16 %v744, %v743
    %v811 = vpack.c.b16 %v746, %v745
    %v812 = vpack.c.b16 %v748, %v747
    %v813 = vpack.c.b16 %v750, %v749
    %v814 = vpack.c.b16 %v752, %v751
    %v815 = vpack.c.b16 %v754, %v753
    %v816 = vpack.c.b16 %v756, %v755
    %v817 = vpack.c.b16 %v758, %v757
    %v818 = vpack.c.b16 %v760, %v759
    %v819 = vpack.c.b16 %v762, %v761
    %v820 = vpack.c.b16 %v764, %v763
    %v821 = vpack.c.b16 %v766, %v765
    %v822 = vpack.c.b16 %v768, %v767
    %v823 = vpack.c.b16 %v770, %v769
    %v824 = vpack.c.b16 %v772, %v771
    %v825 = vpack.c.b16 %v774, %v773
    %v826 = vpack.c.b16 %v776, %v775
    %v827 = vpack.c.b16 %v778, %v777
    %v828 = vpack.c.b16 %v780, %v779
    %877 = vmatpush.bf16.msra.mxu0 %v788
    %878 = vmatpush.bf16.msra.mxu0 %v787
    %879 = vmatpush.bf16.msra.mxu0 %v786
    %880 = vmatpush.bf16.msra.mxu0 %v785
    %881 = vmatpush.bf16.msra.mxu0 %v784
    %882 = vmatpush.bf16.msra.mxu0 %v783
    %883 = vmatpush.bf16.msra.mxu0 %v782
    %884 = vmatpush.bf16.msra.mxu0 %v781
    %885 = vmatmul.bf16.gmra.mxu0 %v473
    %v886 = vpop.f32.mrf.mxu0
    %v887 = vadd.f32 %v587, %v886
    %v888 = vpop.f32.mrf.mxu0
    %889 = vdwg.mxu0
    %890 = vmatpush.bf16.msra.mxu0 %v796
    %891 = vmatpush.bf16.msra.mxu0 %v795
    %892 = vmatpush.bf16.msra.mxu0 %v794
    %893 = vmatpush.bf16.msra.mxu0 %v793
    %894 = vmatpush.bf16.msra.mxu0 %v792
    %895 = vmatpush.bf16.msra.mxu0 %v791
    %896 = vmatpush.bf16.msra.mxu0 %v790
    %897 = vmatpush.bf16.msra.mxu0 %v789
    %898 = vmatmul.bf16.gmra.mxu0 %v474
    %v899 = vpop.f32.mrf.mxu0
    %v900 = vadd.f32 %v887, %v899
    %v901 = vpop.f32.mrf.mxu0
    %902 = vdwg.mxu0
    %903 = vmatpush.bf16.msra.mxu0 %v804
    %904 = vmatpush.bf16.msra.mxu0 %v803
    %905 = vmatpush.bf16.msra.mxu0 %v802
    %906 = vmatpush.bf16.msra.mxu0 %v801
    %907 = vmatpush.bf16.msra.mxu0 %v800
    %908 = vmatpush.bf16.msra.mxu0 %v799
    %909 = vmatpush.bf16.msra.mxu0 %v798
    %910 = vmatpush.bf16.msra.mxu0 %v797
    %911 = vmatmul.bf16.gmra.mxu0 %v475
    %v912 = vpop.f32.mrf.mxu0
    %v913 = vadd.f32 %v900, %v912
    %v914 = vpop.f32.mrf.mxu0
    %915 = vdwg.mxu0
    %916 = vmatpush.bf16.msra.mxu0 %v812
    %917 = vmatpush.bf16.msra.mxu0 %v811
    %918 = vmatpush.bf16.msra.mxu0 %v810
    %919 = vmatpush.bf16.msra.mxu0 %v809
    %920 = vmatpush.bf16.msra.mxu0 %v808
    %921 = vmatpush.bf16.msra.mxu0 %v807
    %922 = vmatpush.bf16.msra.mxu0 %v806
    %923 = vmatpush.bf16.msra.mxu0 %v805
    %924 = vmatmul.bf16.gmra.mxu0 %v476
    %v925 = vpop.f32.mrf.mxu0
    %v926 = vadd.f32 %v913, %v925
    %v927 = vpop.f32.mrf.mxu0
    %928 = vdwg.mxu0
    %929 = vmatpush.bf16.msra.mxu0 %v820
    %930 = vmatpush.bf16.msra.mxu0 %v819
    %931 = vmatpush.bf16.msra.mxu0 %v818
    %932 = vmatpush.bf16.msra.mxu0 %v817
    %933 = vmatpush.bf16.msra.mxu0 %v816
    %934 = vmatpush.bf16.msra.mxu0 %v815
    %935 = vmatpush.bf16.msra.mxu0 %v814
    %936 = vmatpush.bf16.msra.mxu0 %v813
    %937 = vmatmul.bf16.gmra.mxu0 %v477
    %v938 = vpop.f32.mrf.mxu0
    %v939 = vadd.f32 %v926, %v938
    %v940 = vpop.f32.mrf.mxu0
    %941 = vdwg.mxu0
    %942 = vmatpush.bf16.msra.mxu0 %v828
    %943 = vmatpush.bf16.msra.mxu0 %v827
    %944 = vmatpush.bf16.msra.mxu0 %v826
    %945 = vmatpush.bf16.msra.mxu0 %v825
    %946 = vmatpush.bf16.msra.mxu0 %v824
    %947 = vmatpush.bf16.msra.mxu0 %v823
    %948 = vmatpush.bf16.msra.mxu0 %v822
    %949 = vmatpush.bf16.msra.mxu0 %v821
    %950 = vmatmul.bf16.gmra.mxu0 %v478
    %v951 = vpop.f32.mrf.mxu0
    %v952 = vadd.f32 %v939, %v951
    %v953 = vpop.f32.mrf.mxu0
    %954 = vdwg.mxu0
    %v955 = vmax.f32 %v952, 0.0
    %v957 = vperm.slane %v580, 0
    %vm959 = vcmask 261120
    %v961 = vsel %vm959, %v955, 0
    %963 = vmatpush.msra.mxu0 0.0
    %964 = vmatpush.msra.mxu0 0.0
    %965 = vmatpush.msra.mxu0 0.0
    %966 = vmatpush.msra.mxu0 0.0
    %967 = vmatpush.msra.mxu0 0.0
    %968 = vmatpush.msra.mxu0 0.0
    %969 = vmatpush.msra.mxu0 0.0
    %970 = vmatpush.msra.mxu0 0.0
    %971 = vmatpush.msra.mxu0 0.0
    %972 = vmatpush.msra.mxu0 0.0
    %973 = vmatpush.msra.mxu0 0.0
    %974 = vmatpush.msra.mxu0 0.0
    %975 = vmatpush.msra.mxu0 %v579
    %976 = vmatpush.msra.mxu0 %v578
    %977 = vmatpush.msra.mxu0 %v577
    %978 = vmatpush.msra.mxu0 %v576
    %979 = vmatmul.f32.gmra.mxu0 %v961
    %v980 = vpop.f32.mrf.mxu0
    %v981 = vadd.f32 %v957, %v980
    %982 = vdwg.mxu0
    %v984 = vperm.slane %v585, 0
    %986 = vmatpush.msra.mxu0 0.0
    %987 = vmatpush.msra.mxu0 0.0
    %988 = vmatpush.msra.mxu0 0.0
    %989 = vmatpush.msra.mxu0 0.0
    %990 = vmatpush.msra.mxu0 0.0
    %991 = vmatpush.msra.mxu0 0.0
    %992 = vmatpush.msra.mxu0 0.0
    %993 = vmatpush.msra.mxu0 0.0
    %994 = vmatpush.msra.mxu0 0.0
    %995 = vmatpush.msra.mxu0 0.0
    %996 = vmatpush.msra.mxu0 0.0
    %997 = vmatpush.msra.mxu0 0.0
    %998 = vmatpush.msra.mxu0 %v584
    %999 = vmatpush.msra.mxu0 %v583
    %1000 = vmatpush.msra.mxu0 %v582
    %1001 = vmatpush.msra.mxu0 %v581
    %1002 = vmatmul.f32.gmra.mxu0 %v961
    %v1003 = vpop.f32.mrf.mxu0
    %v1004 = vadd.f32 %v984, %v1003
    %1005 = vdwg.mxu0
    %v1006 = vmax.f32 %v1004, 0.0
    %vm1007 = vcmp.ne.f32.partialorder %v1004, %v1004
    %v1008 = vadd.f32 %v1004, 0.0
    %v1009 = vand.u32 2147483647, %v1004
    %v1010 = vsub.f32 0.0, %v1009
    %v1011 = vmul.f32 %v1010, 1.442695
    %v1012 = vpow.pop %v1011
    %v1013 = vadd.f32 %v1012, 1.0
    %v1014 = vlog2.pop %v1013
    %v1015 = vmul.f32 %v1014, 0.6931472
    %v1016 = vmul.f32 -0.5, %v1012
    %v1017 = vadd.f32 %v1016, 1.0
    %v1018 = vmul.f32 %v1017, %v1012
    %v1019 = vand.u32 2147483647, %v1012
    %vm1020 = vcmp.lt.f32.partialorder %v1019, 0.0004427343
    %v1021 = vsel %vm1020, %v1018, %v1015
    %v1022 = vadd.f32 %v1006, %v1021
    %v1023 = vsel %vm1007, %v1008, %v1022
    %v1024 = vadd.f32 %v1023, 1e-06
    %v1025 = vld [vmem:[%s7] sm:$0xf]
    %v1026 = vmul.f32 %v1024, %v1025
    %v1027 = vadd.f32 %v981, %v1026
    %v1028 = vld [vmem:[#allocation10] sm:$0xf]
    %v1029 = vld [vmem:[#allocation10 + $0x4] sm:$0xf]
    %v1030 = vld [vmem:[#allocation10 + $0x8] sm:$0xf]
    %v1031 = vld [vmem:[#allocation10 + $0xc] sm:$0xf]
    %v1032 = vld [vmem:[#allocation10 + $0x10] sm:$0xf]
    %v1033 = vld [vmem:[#allocation10 + $0x14] sm:$0xf]
    %v1034 = vld [vmem:[#allocation10 + $0x18] sm:$0xf]
    %v1035 = vld [vmem:[#allocation10 + $0x1c] sm:$0xf]
    %v1036 = vld [vmem:[#allocation10 + $0x20] sm:$0xf]
    %v1037 = vld [vmem:[#allocation10 + $0x24] sm:$0xf]
    %v1038 = vld [vmem:[#allocation10 + $0x28] sm:$0xf]
    %v1039 = vld [vmem:[#allocation10 + $0x2c] sm:$0xf]
    %v1040 = vld [vmem:[#allocation10 + $0x30] sm:$0xf]
    %v1041 = vld [vmem:[#allocation10 + $0x34] sm:$0xf]
    %v1042 = vld [vmem:[#allocation10 + $0x38] sm:$0xf]
    %v1043 = vld [vmem:[#allocation10 + $0x3c] sm:$0xf]
    %v1044 = vld [vmem:[#allocation10 + $0x40] sm:$0xf]
    %v1045 = vld [vmem:[#allocation10 + $0x44] sm:$0xf]
    %v1046 = vld [vmem:[#allocation10 + $0x48] sm:$0xf]
    %v1047 = vld [vmem:[#allocation10 + $0x4c] sm:$0xf]
    %v1048 = vld [vmem:[#allocation10 + $0x50] sm:$0xf]
    %v1049 = vld [vmem:[#allocation10 + $0x54] sm:$0xf]
    %v1050 = vld [vmem:[#allocation10 + $0x58] sm:$0xf]
    %v1051 = vld [vmem:[#allocation10 + $0x5c] sm:$0xf]
    %v1052 = vld [vmem:[#allocation10 + $0x60] sm:$0xf]
    %v1053 = vld [vmem:[#allocation10 + $0x64] sm:$0xf]
    %v1054 = vld [vmem:[#allocation10 + $0x68] sm:$0xf]
    %v1055 = vld [vmem:[#allocation10 + $0x6c] sm:$0xf]
    %v1056 = vld [vmem:[#allocation10 + $0x70] sm:$0xf]
    %v1057 = vld [vmem:[#allocation10 + $0x74] sm:$0xf]
    %v1058 = vld [vmem:[#allocation10 + $0x78] sm:$0xf]
    %v1059 = vld [vmem:[#allocation10 + $0x7c] sm:$0xf]
    %v1060 = vld [vmem:[#allocation10 + $0x80] sm:$0xf]
    %v1061 = vld [vmem:[#allocation10 + $0x84] sm:$0xf]
    %v1062 = vld [vmem:[#allocation10 + $0x88] sm:$0xf]
    %v1063 = vld [vmem:[#allocation10 + $0x8c] sm:$0xf]
    %v1064 = vld [vmem:[#allocation10 + $0x90] sm:$0xf]
    %v1065 = vld [vmem:[#allocation10 + $0x94] sm:$0xf]
    %v1066 = vld [vmem:[#allocation10 + $0x98] sm:$0xf]
    %v1067 = vld [vmem:[#allocation10 + $0x9c] sm:$0xf]
    %v1068 = vld [vmem:[#allocation10 + $0xa0] sm:$0xf]
    %v1069 = vld [vmem:[#allocation10 + $0xa4] sm:$0xf]
    %v1070 = vld [vmem:[#allocation10 + $0xa8] sm:$0xf]
    %v1071 = vld [vmem:[#allocation10 + $0xac] sm:$0xf]
    %v1072 = vld [vmem:[#allocation10 + $0xb0] sm:$0xf]
    %v1073 = vld [vmem:[#allocation10 + $0xb4] sm:$0xf]
    %v1074 = vld [vmem:[#allocation10 + $0xb8] sm:$0xf]
    %v1075 = vld [vmem:[#allocation10 + $0xbc] sm:$0xf]
    %v1076 = vld [vmem:[#allocation10 + $0xc0] sm:$0xf]
    %v1077 = vld [vmem:[#allocation10 + $0xc4] sm:$0xf]
    %v1078 = vld [vmem:[#allocation10 + $0xc8] sm:$0xf]
    %v1079 = vld [vmem:[#allocation10 + $0xcc] sm:$0xf]
    %v1080 = vld [vmem:[#allocation10 + $0xd0] sm:$0xf]
    %v1081 = vld [vmem:[#allocation10 + $0xd4] sm:$0xf]
    %v1082 = vld [vmem:[#allocation10 + $0xd8] sm:$0xf]
    %v1083 = vld [vmem:[#allocation10 + $0xdc] sm:$0xf]
    %v1084 = vld [vmem:[#allocation10 + $0xe0] sm:$0xf]
    %v1085 = vld [vmem:[#allocation10 + $0xe4] sm:$0xf]
    %v1086 = vld [vmem:[#allocation10 + $0xe8] sm:$0xf]
    %v1087 = vld [vmem:[#allocation10 + $0xec] sm:$0xf]
    %v1088 = vld [vmem:[#allocation10 + $0xf0] sm:$0xf]
    %v1089 = vld [vmem:[#allocation10 + $0xf4] sm:$0xf]
    %v1090 = vld [vmem:[#allocation10 + $0xf8] sm:$0xf]
    %v1091 = vld [vmem:[#allocation10 + $0xfc] sm:$0xf]
    %v1092 = vld [vmem:[#allocation10 + $0x100] sm:$0xf]
    %v1093 = vld [vmem:[#allocation10 + $0x104] sm:$0xf]
    %v1094 = vld [vmem:[#allocation10 + $0x108] sm:$0xf]
    %v1095 = vld [vmem:[#allocation10 + $0x10c] sm:$0xf]
    %v1096 = vld [vmem:[#allocation10 + $0x110] sm:$0xf]
    %v1097 = vld [vmem:[#allocation10 + $0x114] sm:$0xf]
    %v1098 = vld [vmem:[#allocation10 + $0x118] sm:$0xf]
    %v1099 = vld [vmem:[#allocation10 + $0x11c] sm:$0xf]
    %v1100 = vld [vmem:[#allocation10 + $0x120] sm:$0xf]
    %v1101 = vld [vmem:[#allocation10 + $0x124] sm:$0xf]
    %v1102 = vld [vmem:[#allocation10 + $0x128] sm:$0xf]
    %v1103 = vld [vmem:[#allocation10 + $0x12c] sm:$0xf]
    %v1104 = vld [vmem:[#allocation10 + $0x130] sm:$0xf]
    %v1105 = vld [vmem:[#allocation10 + $0x134] sm:$0xf]
    %v1106 = vld [vmem:[#allocation10 + $0x138] sm:$0xf]
    %v1107 = vld [vmem:[#allocation10 + $0x13c] sm:$0xf]
    %v1108 = vld [vmem:[#allocation10 + $0x140] sm:$0xf]
    %v1109 = vld [vmem:[#allocation10 + $0x144] sm:$0xf]
    %v1110 = vld [vmem:[#allocation10 + $0x148] sm:$0xf]
    %v1111 = vld [vmem:[#allocation10 + $0x14c] sm:$0xf]
    %v1112 = vld [vmem:[#allocation10 + $0x150] sm:$0xf]
    %v1113 = vld [vmem:[#allocation10 + $0x154] sm:$0xf]
    %v1114 = vld [vmem:[#allocation10 + $0x158] sm:$0xf]
    %v1115 = vld [vmem:[#allocation10 + $0x15c] sm:$0xf]
    %v1116 = vld [vmem:[#allocation10 + $0x160] sm:$0xf]
    %v1117 = vld [vmem:[#allocation10 + $0x164] sm:$0xf]
    %v1118 = vld [vmem:[#allocation10 + $0x168] sm:$0xf]
    %v1119 = vld [vmem:[#allocation10 + $0x16c] sm:$0xf]
    %v1120 = vld [vmem:[#allocation10 + $0x170] sm:$0xf]
    %v1121 = vld [vmem:[#allocation10 + $0x174] sm:$0xf]
    %v1122 = vld [vmem:[#allocation10 + $0x178] sm:$0xf]
    %v1123 = vld [vmem:[#allocation10 + $0x17c] sm:$0xf]
    %v1124 = vld [vmem:[%s31] sm:$0x1]
    %v1125 = vld [vmem:[#allocation11] sm:$0xff]
    %v1126 = vld [vmem:[#allocation11 + $0x8] sm:$0xff]
    %v1127 = vld [vmem:[#allocation11 + $0x10] sm:$0xff]
    %v1128 = vld [vmem:[#allocation11 + $0x18] sm:$0xff]
    %v1129 = vld [vmem:[%s35] sm:$0x1]
    %v1130 = vld [vmem:[#allocation13] sm:$0xff]
    %v1131 = vld [vmem:[#allocation13 + $0x8] sm:$0xff]
    %v1132 = vld [vmem:[#allocation13 + $0x10] sm:$0xff]
    %v1133 = vld [vmem:[#allocation13 + $0x18] sm:$0xff]
    %v1134 = vld [vmem:[%s39] sm:$0x1]
    %v1136 = vperm.slane %v1124, 0
    %v1234 = vunpack.c.l.b16 %v1028
    %v1235 = vunpack.c.l.b16 %v1029
    %v1236 = vunpack.c.l.b16 %v1030
    %v1237 = vunpack.c.l.b16 %v1031
    %v1238 = vunpack.c.l.b16 %v1032
    %v1239 = vunpack.c.l.b16 %v1033
    %v1240 = vunpack.c.l.b16 %v1034
    %v1241 = vunpack.c.l.b16 %v1035
    %v1242 = vunpack.c.l.b16 %v1036
    %v1243 = vunpack.c.l.b16 %v1037
    %v1244 = vunpack.c.l.b16 %v1038
    %v1245 = vunpack.c.l.b16 %v1039
    %v1246 = vunpack.c.l.b16 %v1040
    %v1247 = vunpack.c.l.b16 %v1041
    %v1248 = vunpack.c.l.b16 %v1042
    %v1249 = vunpack.c.l.b16 %v1043
    %v1250 = vunpack.c.l.b16 %v1044
    %v1251 = vunpack.c.l.b16 %v1045
    %v1252 = vunpack.c.l.b16 %v1046
    %v1253 = vunpack.c.l.b16 %v1047
    %v1254 = vunpack.c.l.b16 %v1048
    %v1255 = vunpack.c.l.b16 %v1049
    %v1256 = vunpack.c.l.b16 %v1050
    %v1257 = vunpack.c.l.b16 %v1051
    %v1258 = vunpack.c.l.b16 %v1052
    %v1259 = vunpack.c.l.b16 %v1053
    %v1260 = vunpack.c.l.b16 %v1054
    %v1261 = vunpack.c.l.b16 %v1055
    %v1262 = vunpack.c.l.b16 %v1056
    %v1263 = vunpack.c.l.b16 %v1057
    %v1264 = vunpack.c.l.b16 %v1058
    %v1265 = vunpack.c.l.b16 %v1059
    %v1266 = vunpack.c.l.b16 %v1060
    %v1267 = vunpack.c.l.b16 %v1061
    %v1268 = vunpack.c.l.b16 %v1062
    %v1269 = vunpack.c.l.b16 %v1063
    %v1270 = vunpack.c.l.b16 %v1064
    %v1271 = vunpack.c.l.b16 %v1065
    %v1272 = vunpack.c.l.b16 %v1066
    %v1273 = vunpack.c.l.b16 %v1067
    %v1274 = vunpack.c.l.b16 %v1068
    %v1275 = vunpack.c.l.b16 %v1069
    %v1276 = vunpack.c.l.b16 %v1070
    %v1277 = vunpack.c.l.b16 %v1071
    %v1278 = vunpack.c.l.b16 %v1072
    %v1279 = vunpack.c.l.b16 %v1073
    %v1280 = vunpack.c.l.b16 %v1074
    %v1281 = vunpack.c.l.b16 %v1075
    %v1282 = vunpack.c.l.b16 %v1076
    %v1283 = vunpack.c.l.b16 %v1077
    %v1284 = vunpack.c.l.b16 %v1078
    %v1285 = vunpack.c.l.b16 %v1079
    %v1286 = vunpack.c.l.b16 %v1080
    %v1287 = vunpack.c.l.b16 %v1081
    %v1288 = vunpack.c.l.b16 %v1082
    %v1289 = vunpack.c.l.b16 %v1083
    %v1290 = vunpack.c.l.b16 %v1084
    %v1291 = vunpack.c.l.b16 %v1085
    %v1292 = vunpack.c.l.b16 %v1086
    %v1293 = vunpack.c.l.b16 %v1087
    %v1294 = vunpack.c.l.b16 %v1088
    %v1295 = vunpack.c.l.b16 %v1089
    %v1296 = vunpack.c.l.b16 %v1090
    %v1297 = vunpack.c.l.b16 %v1091
    %v1298 = vunpack.c.l.b16 %v1092
    %v1299 = vunpack.c.l.b16 %v1093
    %v1300 = vunpack.c.l.b16 %v1094
    %v1301 = vunpack.c.l.b16 %v1095
    %v1302 = vunpack.c.l.b16 %v1096
    %v1303 = vunpack.c.l.b16 %v1097
    %v1304 = vunpack.c.l.b16 %v1098
    %v1305 = vunpack.c.l.b16 %v1099
    %v1306 = vunpack.c.l.b16 %v1100
    %v1307 = vunpack.c.l.b16 %v1101
    %v1308 = vunpack.c.l.b16 %v1102
    %v1309 = vunpack.c.l.b16 %v1103
    %v1310 = vunpack.c.l.b16 %v1104
    %v1311 = vunpack.c.l.b16 %v1105
    %v1312 = vunpack.c.l.b16 %v1106
    %v1313 = vunpack.c.l.b16 %v1107
    %v1314 = vunpack.c.l.b16 %v1108
    %v1315 = vunpack.c.l.b16 %v1109
    %v1316 = vunpack.c.l.b16 %v1110
    %v1317 = vunpack.c.l.b16 %v1111
    %v1318 = vunpack.c.l.b16 %v1112
    %v1319 = vunpack.c.l.b16 %v1113
    %v1320 = vunpack.c.l.b16 %v1114
    %v1321 = vunpack.c.l.b16 %v1115
    %v1322 = vunpack.c.l.b16 %v1116
    %v1323 = vunpack.c.l.b16 %v1117
    %v1324 = vunpack.c.l.b16 %v1118
    %v1325 = vunpack.c.l.b16 %v1119
    %v1326 = vunpack.c.l.b16 %v1120
    %v1327 = vunpack.c.l.b16 %v1121
    %v1328 = vunpack.c.l.b16 %v1122
    %v1329 = vunpack.c.l.b16 %v1123
    %v1330 = vpack.c.b16 %v1235, %v1234
    %v1331 = vpack.c.b16 %v1237, %v1236
    %v1332 = vpack.c.b16 %v1239, %v1238
    %v1333 = vpack.c.b16 %v1241, %v1240
    %v1334 = vpack.c.b16 %v1243, %v1242
    %v1335 = vpack.c.b16 %v1245, %v1244
    %v1336 = vpack.c.b16 %v1247, %v1246
    %v1337 = vpack.c.b16 %v1249, %v1248
    %v1338 = vpack.c.b16 %v1251, %v1250
    %v1339 = vpack.c.b16 %v1253, %v1252
    %v1340 = vpack.c.b16 %v1255, %v1254
    %v1341 = vpack.c.b16 %v1257, %v1256
    %v1342 = vpack.c.b16 %v1259, %v1258
    %v1343 = vpack.c.b16 %v1261, %v1260
    %v1344 = vpack.c.b16 %v1263, %v1262
    %v1345 = vpack.c.b16 %v1265, %v1264
    %v1346 = vpack.c.b16 %v1267, %v1266
    %v1347 = vpack.c.b16 %v1269, %v1268
    %v1348 = vpack.c.b16 %v1271, %v1270
    %v1349 = vpack.c.b16 %v1273, %v1272
    %v1350 = vpack.c.b16 %v1275, %v1274
    %v1351 = vpack.c.b16 %v1277, %v1276
    %v1352 = vpack.c.b16 %v1279, %v1278
    %v1353 = vpack.c.b16 %v1281, %v1280
    %v1354 = vpack.c.b16 %v1283, %v1282
    %v1355 = vpack.c.b16 %v1285, %v1284
    %v1356 = vpack.c.b16 %v1287, %v1286
    %v1357 = vpack.c.b16 %v1289, %v1288
    %v1358 = vpack.c.b16 %v1291, %v1290
    %v1359 = vpack.c.b16 %v1293, %v1292
    %v1360 = vpack.c.b16 %v1295, %v1294
    %v1361 = vpack.c.b16 %v1297, %v1296
    %v1362 = vpack.c.b16 %v1299, %v1298
    %v1363 = vpack.c.b16 %v1301, %v1300
    %v1364 = vpack.c.b16 %v1303, %v1302
    %v1365 = vpack.c.b16 %v1305, %v1304
    %v1366 = vpack.c.b16 %v1307, %v1306
    %v1367 = vpack.c.b16 %v1309, %v1308
    %v1368 = vpack.c.b16 %v1311, %v1310
    %v1369 = vpack.c.b16 %v1313, %v1312
    %v1370 = vpack.c.b16 %v1315, %v1314
    %v1371 = vpack.c.b16 %v1317, %v1316
    %v1372 = vpack.c.b16 %v1319, %v1318
    %v1373 = vpack.c.b16 %v1321, %v1320
    %v1374 = vpack.c.b16 %v1323, %v1322
    %v1375 = vpack.c.b16 %v1325, %v1324
    %v1376 = vpack.c.b16 %v1327, %v1326
    %v1377 = vpack.c.b16 %v1329, %v1328
    %1426 = vmatpush.bf16.msra.mxu0 %v1337
    %1427 = vmatpush.bf16.msra.mxu0 %v1336
    %1428 = vmatpush.bf16.msra.mxu0 %v1335
    %1429 = vmatpush.bf16.msra.mxu0 %v1334
    %1430 = vmatpush.bf16.msra.mxu0 %v1333
    %1431 = vmatpush.bf16.msra.mxu0 %v1332
    %1432 = vmatpush.bf16.msra.mxu0 %v1331
    %1433 = vmatpush.bf16.msra.mxu0 %v1330
    %1434 = vmatmul.bf16.gmra.mxu0 %v473
    %v1435 = vpop.f32.mrf.mxu0
    %v1436 = vadd.f32 %v1136, %v1435
    %v1437 = vpop.f32.mrf.mxu0
    %1438 = vdwg.mxu0
    %1439 = vmatpush.bf16.msra.mxu0 %v1345
    %1440 = vmatpush.bf16.msra.mxu0 %v1344
    %1441 = vmatpush.bf16.msra.mxu0 %v1343
    %1442 = vmatpush.bf16.msra.mxu0 %v1342
    %1443 = vmatpush.bf16.msra.mxu0 %v1341
    %1444 = vmatpush.bf16.msra.mxu0 %v1340
    %1445 = vmatpush.bf16.msra.mxu0 %v1339
    %1446 = vmatpush.bf16.msra.mxu0 %v1338
    %1447 = vmatmul.bf16.gmra.mxu0 %v474
    %v1448 = vpop.f32.mrf.mxu0
    %v1449 = vadd.f32 %v1436, %v1448
    %v1450 = vpop.f32.mrf.mxu0
    %1451 = vdwg.mxu0
    %1452 = vmatpush.bf16.msra.mxu0 %v1353
    %1453 = vmatpush.bf16.msra.mxu0 %v1352
    %1454 = vmatpush.bf16.msra.mxu0 %v1351
    %1455 = vmatpush.bf16.msra.mxu0 %v1350
    %1456 = vmatpush.bf16.msra.mxu0 %v1349
    %1457 = vmatpush.bf16.msra.mxu0 %v1348
    %1458 = vmatpush.bf16.msra.mxu0 %v1347
    %1459 = vmatpush.bf16.msra.mxu0 %v1346
    %1460 = vmatmul.bf16.gmra.mxu0 %v475
    %v1461 = vpop.f32.mrf.mxu0
    %v1462 = vadd.f32 %v1449, %v1461
    %v1463 = vpop.f32.mrf.mxu0
    %1464 = vdwg.mxu0
    %1465 = vmatpush.bf16.msra.mxu0 %v1361
    %1466 = vmatpush.bf16.msra.mxu0 %v1360
    %1467 = vmatpush.bf16.msra.mxu0 %v1359
    %1468 = vmatpush.bf16.msra.mxu0 %v1358
    %1469 = vmatpush.bf16.msra.mxu0 %v1357
    %1470 = vmatpush.bf16.msra.mxu0 %v1356
    %1471 = vmatpush.bf16.msra.mxu0 %v1355
    %1472 = vmatpush.bf16.msra.mxu0 %v1354
    %1473 = vmatmul.bf16.gmra.mxu0 %v476
    %v1474 = vpop.f32.mrf.mxu0
    %v1475 = vadd.f32 %v1462, %v1474
    %v1476 = vpop.f32.mrf.mxu0
    %1477 = vdwg.mxu0
    %1478 = vmatpush.bf16.msra.mxu0 %v1369
    %1479 = vmatpush.bf16.msra.mxu0 %v1368
    %1480 = vmatpush.bf16.msra.mxu0 %v1367
    %1481 = vmatpush.bf16.msra.mxu0 %v1366
    %1482 = vmatpush.bf16.msra.mxu0 %v1365
    %1483 = vmatpush.bf16.msra.mxu0 %v1364
    %1484 = vmatpush.bf16.msra.mxu0 %v1363
    %1485 = vmatpush.bf16.msra.mxu0 %v1362
    %1486 = vmatmul.bf16.gmra.mxu0 %v477
    %v1487 = vpop.f32.mrf.mxu0
    %v1488 = vadd.f32 %v1475, %v1487
    %v1489 = vpop.f32.mrf.mxu0
    %1490 = vdwg.mxu0
    %1491 = vmatpush.bf16.msra.mxu0 %v1377
    %1492 = vmatpush.bf16.msra.mxu0 %v1376
    %1493 = vmatpush.bf16.msra.mxu0 %v1375
    %1494 = vmatpush.bf16.msra.mxu0 %v1374
    %1495 = vmatpush.bf16.msra.mxu0 %v1373
    %1496 = vmatpush.bf16.msra.mxu0 %v1372
    %1497 = vmatpush.bf16.msra.mxu0 %v1371
    %1498 = vmatpush.bf16.msra.mxu0 %v1370
    %1499 = vmatmul.bf16.gmra.mxu0 %v478
    %v1500 = vpop.f32.mrf.mxu0
    %v1501 = vadd.f32 %v1488, %v1500
    %v1502 = vpop.f32.mrf.mxu0
    %1503 = vdwg.mxu0
    %v1504 = vmax.f32 %v1501, 0.0
    %v1506 = vperm.slane %v1129, 0
    %v1509 = vsel %vm959, %v1504, 0
    %1511 = vmatpush.msra.mxu0 0.0
    %1512 = vmatpush.msra.mxu0 0.0
    %1513 = vmatpush.msra.mxu0 0.0
    %1514 = vmatpush.msra.mxu0 0.0
    %1515 = vmatpush.msra.mxu0 0.0
    %1516 = vmatpush.msra.mxu0 0.0
    %1517 = vmatpush.msra.mxu0 0.0
    %1518 = vmatpush.msra.mxu0 0.0
    %1519 = vmatpush.msra.mxu0 0.0
    %1520 = vmatpush.msra.mxu0 0.0
    %1521 = vmatpush.msra.mxu0 0.0
    %1522 = vmatpush.msra.mxu0 0.0
    %1523 = vmatpush.msra.mxu0 %v1128
    %1524 = vmatpush.msra.mxu0 %v1127
    %1525 = vmatpush.msra.mxu0 %v1126
    %1526 = vmatpush.msra.mxu0 %v1125
    %1527 = vmatmul.f32.gmra.mxu0 %v1509
    %v1528 = vpop.f32.mrf.mxu0
    %v1529 = vadd.f32 %v1506, %v1528
    %1530 = vdwg.mxu0
    %v1532 = vperm.slane %v1134, 0
    %1534 = vmatpush.msra.mxu0 0.0
    %1535 = vmatpush.msra.mxu0 0.0
    %1536 = vmatpush.msra.mxu0 0.0
    %1537 = vmatpush.msra.mxu0 0.0
    %1538 = vmatpush.msra.mxu0 0.0
    %1539 = vmatpush.msra.mxu0 0.0
    %1540 = vmatpush.msra.mxu0 0.0
    %1541 = vmatpush.msra.mxu0 0.0
    %1542 = vmatpush.msra.mxu0 0.0
    %1543 = vmatpush.msra.mxu0 0.0
    %1544 = vmatpush.msra.mxu0 0.0
    %1545 = vmatpush.msra.mxu0 0.0
    %1546 = vmatpush.msra.mxu0 %v1133
    %1547 = vmatpush.msra.mxu0 %v1132
    %1548 = vmatpush.msra.mxu0 %v1131
    %1549 = vmatpush.msra.mxu0 %v1130
    %1550 = vmatmul.f32.gmra.mxu0 %v1509
    %v1551 = vpop.f32.mrf.mxu0
    %v1552 = vadd.f32 %v1532, %v1551
    %1553 = vdwg.mxu0
    %v1554 = vmax.f32 %v1552, 0.0
    %vm1555 = vcmp.ne.f32.partialorder %v1552, %v1552
    %v1556 = vadd.f32 %v1552, 0.0
    %v1557 = vand.u32 2147483647, %v1552
    %v1558 = vsub.f32 0.0, %v1557
    %v1559 = vmul.f32 %v1558, 1.442695
    %v1560 = vpow.pop %v1559
    %v1561 = vadd.f32 %v1560, 1.0
    %v1562 = vlog2.pop %v1561
    %v1563 = vmul.f32 %v1562, 0.6931472
    %v1564 = vmul.f32 -0.5, %v1560
    %v1565 = vadd.f32 %v1564, 1.0
    %v1566 = vmul.f32 %v1565, %v1560
    %v1567 = vand.u32 2147483647, %v1560
    %vm1568 = vcmp.lt.f32.partialorder %v1567, 0.0004427343
    %v1569 = vsel %vm1568, %v1566, %v1563
    %v1570 = vadd.f32 %v1554, %v1569
    %v1571 = vsel %vm1555, %v1556, %v1570
    %v1572 = vadd.f32 %v1571, 1e-06
    %v1573 = vld [vmem:[%s9] sm:$0xf]
    %v1574 = vmul.f32 %v1572, %v1573
    %v1575 = vadd.f32 %v1529, %v1574
    %v1576 = vld [vmem:[#allocation14] sm:$0xf]
    %v1577 = vld [vmem:[#allocation14 + $0x4] sm:$0xf]
    %v1578 = vld [vmem:[#allocation14 + $0x8] sm:$0xf]
    %v1579 = vld [vmem:[#allocation14 + $0xc] sm:$0xf]
    %v1580 = vld [vmem:[#allocation14 + $0x10] sm:$0xf]
    %v1581 = vld [vmem:[#allocation14 + $0x14] sm:$0xf]
    %v1582 = vld [vmem:[#allocation14 + $0x18] sm:$0xf]
    %v1583 = vld [vmem:[#allocation14 + $0x1c] sm:$0xf]
    %v1584 = vld [vmem:[#allocation14 + $0x20] sm:$0xf]
    %v1585 = vld [vmem:[#allocation14 + $0x24] sm:$0xf]
    %v1586 = vld [vmem:[#allocation14 + $0x28] sm:$0xf]
    %v1587 = vld [vmem:[#allocation14 + $0x2c] sm:$0xf]
    %v1588 = vld [vmem:[#allocation14 + $0x30] sm:$0xf]
    %v1589 = vld [vmem:[#allocation14 + $0x34] sm:$0xf]
    %v1590 = vld [vmem:[#allocation14 + $0x38] sm:$0xf]
    %v1591 = vld [vmem:[#allocation14 + $0x3c] sm:$0xf]
    %v1592 = vld [vmem:[#allocation14 + $0x40] sm:$0xf]
    %v1593 = vld [vmem:[#allocation14 + $0x44] sm:$0xf]
    %v1594 = vld [vmem:[#allocation14 + $0x48] sm:$0xf]
    %v1595 = vld [vmem:[#allocation14 + $0x4c] sm:$0xf]
    %v1596 = vld [vmem:[#allocation14 + $0x50] sm:$0xf]
    %v1597 = vld [vmem:[#allocation14 + $0x54] sm:$0xf]
    %v1598 = vld [vmem:[#allocation14 + $0x58] sm:$0xf]
    %v1599 = vld [vmem:[#allocation14 + $0x5c] sm:$0xf]
    %v1600 = vld [vmem:[#allocation14 + $0x60] sm:$0xf]
    %v1601 = vld [vmem:[#allocation14 + $0x64] sm:$0xf]
    %v1602 = vld [vmem:[#allocation14 + $0x68] sm:$0xf]
    %v1603 = vld [vmem:[#allocation14 + $0x6c] sm:$0xf]
    %v1604 = vld [vmem:[#allocation14 + $0x70] sm:$0xf]
    %v1605 = vld [vmem:[#allocation14 + $0x74] sm:$0xf]
    %v1606 = vld [vmem:[#allocation14 + $0x78] sm:$0xf]
    %v1607 = vld [vmem:[#allocation14 + $0x7c] sm:$0xf]
    %v1608 = vld [vmem:[#allocation14 + $0x80] sm:$0xf]
    %v1609 = vld [vmem:[#allocation14 + $0x84] sm:$0xf]
    %v1610 = vld [vmem:[#allocation14 + $0x88] sm:$0xf]
    %v1611 = vld [vmem:[#allocation14 + $0x8c] sm:$0xf]
    %v1612 = vld [vmem:[#allocation14 + $0x90] sm:$0xf]
    %v1613 = vld [vmem:[#allocation14 + $0x94] sm:$0xf]
    %v1614 = vld [vmem:[#allocation14 + $0x98] sm:$0xf]
    %v1615 = vld [vmem:[#allocation14 + $0x9c] sm:$0xf]
    %v1616 = vld [vmem:[#allocation14 + $0xa0] sm:$0xf]
    %v1617 = vld [vmem:[#allocation14 + $0xa4] sm:$0xf]
    %v1618 = vld [vmem:[#allocation14 + $0xa8] sm:$0xf]
    %v1619 = vld [vmem:[#allocation14 + $0xac] sm:$0xf]
    %v1620 = vld [vmem:[#allocation14 + $0xb0] sm:$0xf]
    %v1621 = vld [vmem:[#allocation14 + $0xb4] sm:$0xf]
    %v1622 = vld [vmem:[#allocation14 + $0xb8] sm:$0xf]
    %v1623 = vld [vmem:[#allocation14 + $0xbc] sm:$0xf]
    %v1624 = vld [vmem:[#allocation14 + $0xc0] sm:$0xf]
    %v1625 = vld [vmem:[#allocation14 + $0xc4] sm:$0xf]
    %v1626 = vld [vmem:[#allocation14 + $0xc8] sm:$0xf]
    %v1627 = vld [vmem:[#allocation14 + $0xcc] sm:$0xf]
    %v1628 = vld [vmem:[#allocation14 + $0xd0] sm:$0xf]
    %v1629 = vld [vmem:[#allocation14 + $0xd4] sm:$0xf]
    %v1630 = vld [vmem:[#allocation14 + $0xd8] sm:$0xf]
    %v1631 = vld [vmem:[#allocation14 + $0xdc] sm:$0xf]
    %v1632 = vld [vmem:[#allocation14 + $0xe0] sm:$0xf]
    %v1633 = vld [vmem:[#allocation14 + $0xe4] sm:$0xf]
    %v1634 = vld [vmem:[#allocation14 + $0xe8] sm:$0xf]
    %v1635 = vld [vmem:[#allocation14 + $0xec] sm:$0xf]
    %v1636 = vld [vmem:[#allocation14 + $0xf0] sm:$0xf]
    %v1637 = vld [vmem:[#allocation14 + $0xf4] sm:$0xf]
    %v1638 = vld [vmem:[#allocation14 + $0xf8] sm:$0xf]
    %v1639 = vld [vmem:[#allocation14 + $0xfc] sm:$0xf]
    %v1640 = vld [vmem:[#allocation14 + $0x100] sm:$0xf]
    %v1641 = vld [vmem:[#allocation14 + $0x104] sm:$0xf]
    %v1642 = vld [vmem:[#allocation14 + $0x108] sm:$0xf]
    %v1643 = vld [vmem:[#allocation14 + $0x10c] sm:$0xf]
    %v1644 = vld [vmem:[#allocation14 + $0x110] sm:$0xf]
    %v1645 = vld [vmem:[#allocation14 + $0x114] sm:$0xf]
    %v1646 = vld [vmem:[#allocation14 + $0x118] sm:$0xf]
    %v1647 = vld [vmem:[#allocation14 + $0x11c] sm:$0xf]
    %v1648 = vld [vmem:[#allocation14 + $0x120] sm:$0xf]
    %v1649 = vld [vmem:[#allocation14 + $0x124] sm:$0xf]
    %v1650 = vld [vmem:[#allocation14 + $0x128] sm:$0xf]
    %v1651 = vld [vmem:[#allocation14 + $0x12c] sm:$0xf]
    %v1652 = vld [vmem:[#allocation14 + $0x130] sm:$0xf]
    %v1653 = vld [vmem:[#allocation14 + $0x134] sm:$0xf]
    %v1654 = vld [vmem:[#allocation14 + $0x138] sm:$0xf]
    %v1655 = vld [vmem:[#allocation14 + $0x13c] sm:$0xf]
    %v1656 = vld [vmem:[#allocation14 + $0x140] sm:$0xf]
    %v1657 = vld [vmem:[#allocation14 + $0x144] sm:$0xf]
    %v1658 = vld [vmem:[#allocation14 + $0x148] sm:$0xf]
    %v1659 = vld [vmem:[#allocation14 + $0x14c] sm:$0xf]
    %v1660 = vld [vmem:[#allocation14 + $0x150] sm:$0xf]
    %v1661 = vld [vmem:[#allocation14 + $0x154] sm:$0xf]
    %v1662 = vld [vmem:[#allocation14 + $0x158] sm:$0xf]
    %v1663 = vld [vmem:[#allocation14 + $0x15c] sm:$0xf]
    %v1664 = vld [vmem:[#allocation14 + $0x160] sm:$0xf]
    %v1665 = vld [vmem:[#allocation14 + $0x164] sm:$0xf]
    %v1666 = vld [vmem:[#allocation14 + $0x168] sm:$0xf]
    %v1667 = vld [vmem:[#allocation14 + $0x16c] sm:$0xf]
    %v1668 = vld [vmem:[#allocation14 + $0x170] sm:$0xf]
    %v1669 = vld [vmem:[#allocation14 + $0x174] sm:$0xf]
    %v1670 = vld [vmem:[#allocation14 + $0x178] sm:$0xf]
    %v1671 = vld [vmem:[#allocation14 + $0x17c] sm:$0xf]
    %v1672 = vld [vmem:[%s43] sm:$0x1]
    %v1673 = vld [vmem:[#allocation16] sm:$0xff]
    %v1674 = vld [vmem:[#allocation16 + $0x8] sm:$0xff]
    %v1675 = vld [vmem:[#allocation16 + $0x10] sm:$0xff]
    %v1676 = vld [vmem:[#allocation16 + $0x18] sm:$0xff]
    %v1677 = vld [vmem:[%s47] sm:$0x1]
    %v1678 = vld [vmem:[#allocation17] sm:$0xff]
    %v1679 = vld [vmem:[#allocation17 + $0x8] sm:$0xff]
    %v1680 = vld [vmem:[#allocation17 + $0x10] sm:$0xff]
    %v1681 = vld [vmem:[#allocation17 + $0x18] sm:$0xff]
    %v1682 = vld [vmem:[%s51] sm:$0x1]
    %v1684 = vperm.slane %v1672, 0
    %v1782 = vunpack.c.l.b16 %v1576
    %v1783 = vunpack.c.l.b16 %v1577
    %v1784 = vunpack.c.l.b16 %v1578
    %v1785 = vunpack.c.l.b16 %v1579
    %v1786 = vunpack.c.l.b16 %v1580
    %v1787 = vunpack.c.l.b16 %v1581
    %v1788 = vunpack.c.l.b16 %v1582
    %v1789 = vunpack.c.l.b16 %v1583
    %v1790 = vunpack.c.l.b16 %v1584
    %v1791 = vunpack.c.l.b16 %v1585
    %v1792 = vunpack.c.l.b16 %v1586
    %v1793 = vunpack.c.l.b16 %v1587
    %v1794 = vunpack.c.l.b16 %v1588
    %v1795 = vunpack.c.l.b16 %v1589
    %v1796 = vunpack.c.l.b16 %v1590
    %v1797 = vunpack.c.l.b16 %v1591
    %v1798 = vunpack.c.l.b16 %v1592
    %v1799 = vunpack.c.l.b16 %v1593
    %v1800 = vunpack.c.l.b16 %v1594
    %v1801 = vunpack.c.l.b16 %v1595
    %v1802 = vunpack.c.l.b16 %v1596
    %v1803 = vunpack.c.l.b16 %v1597
    %v1804 = vunpack.c.l.b16 %v1598
    %v1805 = vunpack.c.l.b16 %v1599
    %v1806 = vunpack.c.l.b16 %v1600
    %v1807 = vunpack.c.l.b16 %v1601
    %v1808 = vunpack.c.l.b16 %v1602
    %v1809 = vunpack.c.l.b16 %v1603
    %v1810 = vunpack.c.l.b16 %v1604
    %v1811 = vunpack.c.l.b16 %v1605
    %v1812 = vunpack.c.l.b16 %v1606
    %v1813 = vunpack.c.l.b16 %v1607
    %v1814 = vunpack.c.l.b16 %v1608
    %v1815 = vunpack.c.l.b16 %v1609
    %v1816 = vunpack.c.l.b16 %v1610
    %v1817 = vunpack.c.l.b16 %v1611
    %v1818 = vunpack.c.l.b16 %v1612
    %v1819 = vunpack.c.l.b16 %v1613
    %v1820 = vunpack.c.l.b16 %v1614
    %v1821 = vunpack.c.l.b16 %v1615
    %v1822 = vunpack.c.l.b16 %v1616
    %v1823 = vunpack.c.l.b16 %v1617
    %v1824 = vunpack.c.l.b16 %v1618
    %v1825 = vunpack.c.l.b16 %v1619
    %v1826 = vunpack.c.l.b16 %v1620
    %v1827 = vunpack.c.l.b16 %v1621
    %v1828 = vunpack.c.l.b16 %v1622
    %v1829 = vunpack.c.l.b16 %v1623
    %v1830 = vunpack.c.l.b16 %v1624
    %v1831 = vunpack.c.l.b16 %v1625
    %v1832 = vunpack.c.l.b16 %v1626
    %v1833 = vunpack.c.l.b16 %v1627
    %v1834 = vunpack.c.l.b16 %v1628
    %v1835 = vunpack.c.l.b16 %v1629
    %v1836 = vunpack.c.l.b16 %v1630
    %v1837 = vunpack.c.l.b16 %v1631
    %v1838 = vunpack.c.l.b16 %v1632
    %v1839 = vunpack.c.l.b16 %v1633
    %v1840 = vunpack.c.l.b16 %v1634
    %v1841 = vunpack.c.l.b16 %v1635
    %v1842 = vunpack.c.l.b16 %v1636
    %v1843 = vunpack.c.l.b16 %v1637
    %v1844 = vunpack.c.l.b16 %v1638
    %v1845 = vunpack.c.l.b16 %v1639
    %v1846 = vunpack.c.l.b16 %v1640
    %v1847 = vunpack.c.l.b16 %v1641
    %v1848 = vunpack.c.l.b16 %v1642
    %v1849 = vunpack.c.l.b16 %v1643
    %v1850 = vunpack.c.l.b16 %v1644
    %v1851 = vunpack.c.l.b16 %v1645
    %v1852 = vunpack.c.l.b16 %v1646
    %v1853 = vunpack.c.l.b16 %v1647
    %v1854 = vunpack.c.l.b16 %v1648
    %v1855 = vunpack.c.l.b16 %v1649
    %v1856 = vunpack.c.l.b16 %v1650
    %v1857 = vunpack.c.l.b16 %v1651
    %v1858 = vunpack.c.l.b16 %v1652
    %v1859 = vunpack.c.l.b16 %v1653
    %v1860 = vunpack.c.l.b16 %v1654
    %v1861 = vunpack.c.l.b16 %v1655
    %v1862 = vunpack.c.l.b16 %v1656
    %v1863 = vunpack.c.l.b16 %v1657
    %v1864 = vunpack.c.l.b16 %v1658
    %v1865 = vunpack.c.l.b16 %v1659
    %v1866 = vunpack.c.l.b16 %v1660
    %v1867 = vunpack.c.l.b16 %v1661
    %v1868 = vunpack.c.l.b16 %v1662
    %v1869 = vunpack.c.l.b16 %v1663
    %v1870 = vunpack.c.l.b16 %v1664
    %v1871 = vunpack.c.l.b16 %v1665
    %v1872 = vunpack.c.l.b16 %v1666
    %v1873 = vunpack.c.l.b16 %v1667
    %v1874 = vunpack.c.l.b16 %v1668
    %v1875 = vunpack.c.l.b16 %v1669
    %v1876 = vunpack.c.l.b16 %v1670
    %v1877 = vunpack.c.l.b16 %v1671
    %v1878 = vpack.c.b16 %v1783, %v1782
    %v1879 = vpack.c.b16 %v1785, %v1784
    %v1880 = vpack.c.b16 %v1787, %v1786
    %v1881 = vpack.c.b16 %v1789, %v1788
    %v1882 = vpack.c.b16 %v1791, %v1790
    %v1883 = vpack.c.b16 %v1793, %v1792
    %v1884 = vpack.c.b16 %v1795, %v1794
    %v1885 = vpack.c.b16 %v1797, %v1796
    %v1886 = vpack.c.b16 %v1799, %v1798
    %v1887 = vpack.c.b16 %v1801, %v1800
    %v1888 = vpack.c.b16 %v1803, %v1802
    %v1889 = vpack.c.b16 %v1805, %v1804
    %v1890 = vpack.c.b16 %v1807, %v1806
    %v1891 = vpack.c.b16 %v1809, %v1808
    %v1892 = vpack.c.b16 %v1811, %v1810
    %v1893 = vpack.c.b16 %v1813, %v1812
    %v1894 = vpack.c.b16 %v1815, %v1814
    %v1895 = vpack.c.b16 %v1817, %v1816
    %v1896 = vpack.c.b16 %v1819, %v1818
    %v1897 = vpack.c.b16 %v1821, %v1820
    %v1898 = vpack.c.b16 %v1823, %v1822
    %v1899 = vpack.c.b16 %v1825, %v1824
    %v1900 = vpack.c.b16 %v1827, %v1826
    %v1901 = vpack.c.b16 %v1829, %v1828
    %v1902 = vpack.c.b16 %v1831, %v1830
    %v1903 = vpack.c.b16 %v1833, %v1832
    %v1904 = vpack.c.b16 %v1835, %v1834
    %v1905 = vpack.c.b16 %v1837, %v1836
    %v1906 = vpack.c.b16 %v1839, %v1838
    %v1907 = vpack.c.b16 %v1841, %v1840
    %v1908 = vpack.c.b16 %v1843, %v1842
    %v1909 = vpack.c.b16 %v1845, %v1844
    %v1910 = vpack.c.b16 %v1847, %v1846
    %v1911 = vpack.c.b16 %v1849, %v1848
    %v1912 = vpack.c.b16 %v1851, %v1850
    %v1913 = vpack.c.b16 %v1853, %v1852
    %v1914 = vpack.c.b16 %v1855, %v1854
    %v1915 = vpack.c.b16 %v1857, %v1856
    %v1916 = vpack.c.b16 %v1859, %v1858
    %v1917 = vpack.c.b16 %v1861, %v1860
    %v1918 = vpack.c.b16 %v1863, %v1862
    %v1919 = vpack.c.b16 %v1865, %v1864
    %v1920 = vpack.c.b16 %v1867, %v1866
    %v1921 = vpack.c.b16 %v1869, %v1868
    %v1922 = vpack.c.b16 %v1871, %v1870
    %v1923 = vpack.c.b16 %v1873, %v1872
    %v1924 = vpack.c.b16 %v1875, %v1874
    %v1925 = vpack.c.b16 %v1877, %v1876
    %1974 = vmatpush.bf16.msra.mxu0 %v1885
    %1975 = vmatpush.bf16.msra.mxu0 %v1884
    %1976 = vmatpush.bf16.msra.mxu0 %v1883
    %1977 = vmatpush.bf16.msra.mxu0 %v1882
    %1978 = vmatpush.bf16.msra.mxu0 %v1881
    %1979 = vmatpush.bf16.msra.mxu0 %v1880
    %1980 = vmatpush.bf16.msra.mxu0 %v1879
    %1981 = vmatpush.bf16.msra.mxu0 %v1878
    %1982 = vmatmul.bf16.gmra.mxu0 %v473
    %v1983 = vpop.f32.mrf.mxu0
    %v1984 = vadd.f32 %v1684, %v1983
    %v1985 = vpop.f32.mrf.mxu0
    %1986 = vdwg.mxu0
    %1987 = vmatpush.bf16.msra.mxu0 %v1893
    %1988 = vmatpush.bf16.msra.mxu0 %v1892
    %1989 = vmatpush.bf16.msra.mxu0 %v1891
    %1990 = vmatpush.bf16.msra.mxu0 %v1890
    %1991 = vmatpush.bf16.msra.mxu0 %v1889
    %1992 = vmatpush.bf16.msra.mxu0 %v1888
    %1993 = vmatpush.bf16.msra.mxu0 %v1887
    %1994 = vmatpush.bf16.msra.mxu0 %v1886
    %1995 = vmatmul.bf16.gmra.mxu0 %v474
    %v1996 = vpop.f32.mrf.mxu0
    %v1997 = vadd.f32 %v1984, %v1996
    %v1998 = vpop.f32.mrf.mxu0
    %1999 = vdwg.mxu0
    %2000 = vmatpush.bf16.msra.mxu0 %v1901
    %2001 = vmatpush.bf16.msra.mxu0 %v1900
    %2002 = vmatpush.bf16.msra.mxu0 %v1899
    %2003 = vmatpush.bf16.msra.mxu0 %v1898
    %2004 = vmatpush.bf16.msra.mxu0 %v1897
    %2005 = vmatpush.bf16.msra.mxu0 %v1896
    %2006 = vmatpush.bf16.msra.mxu0 %v1895
    %2007 = vmatpush.bf16.msra.mxu0 %v1894
    %2008 = vmatmul.bf16.gmra.mxu0 %v475
    %v2009 = vpop.f32.mrf.mxu0
    %v2010 = vadd.f32 %v1997, %v2009
    %v2011 = vpop.f32.mrf.mxu0
    %2012 = vdwg.mxu0
    %2013 = vmatpush.bf16.msra.mxu0 %v1909
    %2014 = vmatpush.bf16.msra.mxu0 %v1908
    %2015 = vmatpush.bf16.msra.mxu0 %v1907
    %2016 = vmatpush.bf16.msra.mxu0 %v1906
    %2017 = vmatpush.bf16.msra.mxu0 %v1905
    %2018 = vmatpush.bf16.msra.mxu0 %v1904
    %2019 = vmatpush.bf16.msra.mxu0 %v1903
    %2020 = vmatpush.bf16.msra.mxu0 %v1902
    %2021 = vmatmul.bf16.gmra.mxu0 %v476
    %v2022 = vpop.f32.mrf.mxu0
    %v2023 = vadd.f32 %v2010, %v2022
    %v2024 = vpop.f32.mrf.mxu0
    %2025 = vdwg.mxu0
    %2026 = vmatpush.bf16.msra.mxu0 %v1917
    %2027 = vmatpush.bf16.msra.mxu0 %v1916
    %2028 = vmatpush.bf16.msra.mxu0 %v1915
    %2029 = vmatpush.bf16.msra.mxu0 %v1914
    %2030 = vmatpush.bf16.msra.mxu0 %v1913
    %2031 = vmatpush.bf16.msra.mxu0 %v1912
    %2032 = vmatpush.bf16.msra.mxu0 %v1911
    %2033 = vmatpush.bf16.msra.mxu0 %v1910
    %2034 = vmatmul.bf16.gmra.mxu0 %v477
    %v2035 = vpop.f32.mrf.mxu0
    %v2036 = vadd.f32 %v2023, %v2035
    %v2037 = vpop.f32.mrf.mxu0
    %2038 = vdwg.mxu0
    %2039 = vmatpush.bf16.msra.mxu0 %v1925
    %2040 = vmatpush.bf16.msra.mxu0 %v1924
    %2041 = vmatpush.bf16.msra.mxu0 %v1923
    %2042 = vmatpush.bf16.msra.mxu0 %v1922
    %2043 = vmatpush.bf16.msra.mxu0 %v1921
    %2044 = vmatpush.bf16.msra.mxu0 %v1920
    %2045 = vmatpush.bf16.msra.mxu0 %v1919
    %2046 = vmatpush.bf16.msra.mxu0 %v1918
    %2047 = vmatmul.bf16.gmra.mxu0 %v478
    %v2048 = vpop.f32.mrf.mxu0
    %v2049 = vadd.f32 %v2036, %v2048
    %v2050 = vpop.f32.mrf.mxu0
    %2051 = vdwg.mxu0
    %v2052 = vmax.f32 %v2049, 0.0
    %v2054 = vperm.slane %v1677, 0
    %v2057 = vsel %vm959, %v2052, 0
    %2059 = vmatpush.msra.mxu0 0.0
    %2060 = vmatpush.msra.mxu0 0.0
    %2061 = vmatpush.msra.mxu0 0.0
    %2062 = vmatpush.msra.mxu0 0.0
    %2063 = vmatpush.msra.mxu0 0.0
    %2064 = vmatpush.msra.mxu0 0.0
    %2065 = vmatpush.msra.mxu0 0.0
    %2066 = vmatpush.msra.mxu0 0.0
    %2067 = vmatpush.msra.mxu0 0.0
    %2068 = vmatpush.msra.mxu0 0.0
    %2069 = vmatpush.msra.mxu0 0.0
    %2070 = vmatpush.msra.mxu0 0.0
    %2071 = vmatpush.msra.mxu0 %v1676
    %2072 = vmatpush.msra.mxu0 %v1675
    %2073 = vmatpush.msra.mxu0 %v1674
    %2074 = vmatpush.msra.mxu0 %v1673
    %2075 = vmatmul.f32.gmra.mxu0 %v2057
    %v2076 = vpop.f32.mrf.mxu0
    %v2077 = vadd.f32 %v2054, %v2076
    %2078 = vdwg.mxu0
    %v2080 = vperm.slane %v1682, 0
    %2082 = vmatpush.msra.mxu0 0.0
    %2083 = vmatpush.msra.mxu0 0.0
    %2084 = vmatpush.msra.mxu0 0.0
    %2085 = vmatpush.msra.mxu0 0.0
    %2086 = vmatpush.msra.mxu0 0.0
    %2087 = vmatpush.msra.mxu0 0.0
    %2088 = vmatpush.msra.mxu0 0.0
    %2089 = vmatpush.msra.mxu0 0.0
    %2090 = vmatpush.msra.mxu0 0.0
    %2091 = vmatpush.msra.mxu0 0.0
    %2092 = vmatpush.msra.mxu0 0.0
    %2093 = vmatpush.msra.mxu0 0.0
    %2094 = vmatpush.msra.mxu0 %v1681
    %2095 = vmatpush.msra.mxu0 %v1680
    %2096 = vmatpush.msra.mxu0 %v1679
    %2097 = vmatpush.msra.mxu0 %v1678
    %2098 = vmatmul.f32.gmra.mxu0 %v2057
    %v2099 = vpop.f32.mrf.mxu0
    %v2100 = vadd.f32 %v2080, %v2099
    %2101 = vdwg.mxu0
    %v2102 = vmax.f32 %v2100, 0.0
    %vm2103 = vcmp.ne.f32.partialorder %v2100, %v2100
    %v2104 = vadd.f32 %v2100, 0.0
    %v2105 = vand.u32 2147483647, %v2100
    %v2106 = vsub.f32 0.0, %v2105
    %v2107 = vmul.f32 %v2106, 1.442695
    %v2108 = vpow.pop %v2107
    %v2109 = vadd.f32 %v2108, 1.0
    %v2110 = vlog2.pop %v2109
    %v2111 = vmul.f32 %v2110, 0.6931472
    %v2112 = vmul.f32 -0.5, %v2108
    %v2113 = vadd.f32 %v2112, 1.0
    %v2114 = vmul.f32 %v2113, %v2108
    %v2115 = vand.u32 2147483647, %v2108
    %vm2116 = vcmp.lt.f32.partialorder %v2115, 0.0004427343
    %v2117 = vsel %vm2116, %v2114, %v2111
    %v2118 = vadd.f32 %v2102, %v2117
    %v2119 = vsel %vm2103, %v2104, %v2118
    %v2120 = vadd.f32 %v2119, 1e-06
    %v2121 = vld [vmem:[%s11] sm:$0xf]
    %v2122 = vmul.f32 %v2120, %v2121
    %v2123 = vadd.f32 %v2077, %v2122
    %v2124 = vld [vmem:[#allocation19] sm:$0xff]
    %v2125 = vld [vmem:[#allocation19 + $0x8] sm:$0xff]
    %v2126 = vld [vmem:[#allocation19 + $0x10] sm:$0xff]
    %v2127 = vld [vmem:[#allocation19 + $0x18] sm:$0xff]
    %v2128 = vld [vmem:[#allocation19 + $0x20] sm:$0xff]
    %v2129 = vld [vmem:[#allocation19 + $0x28] sm:$0xff]
    %v2130 = vld [vmem:[#allocation19 + $0x30] sm:$0xff]
    %v2131 = vld [vmem:[#allocation19 + $0x38] sm:$0xff]
    %v2132 = vld [vmem:[#allocation19 + $0x40] sm:$0xff]
    %v2133 = vld [vmem:[#allocation19 + $0x48] sm:$0xff]
    %v2134 = vld [vmem:[#allocation19 + $0x50] sm:$0xff]
    %v2135 = vld [vmem:[#allocation19 + $0x58] sm:$0xff]
    %v2136 = vld [vmem:[%s55] sm:$0xff]
    %v2137 = vld [vmem:[%s57] sm:$0xff]
    %v2138 = vld [vmem:[#allocation20] sm:$0xff]
    %v2139 = vld [vmem:[#allocation20 + $0x8] sm:$0xff]
    %v2140 = vld [vmem:[#allocation20 + $0x10] sm:$0xff]
    %v2141 = vld [vmem:[#allocation20 + $0x18] sm:$0xff]
    %v2142 = vld [vmem:[#allocation20 + $0x20] sm:$0xff]
    %v2143 = vld [vmem:[#allocation20 + $0x28] sm:$0xff]
    %v2144 = vld [vmem:[#allocation20 + $0x30] sm:$0xff]
    %v2145 = vld [vmem:[#allocation20 + $0x38] sm:$0xff]
    %v2146 = vld [vmem:[#allocation20 + $0x40] sm:$0xff]
    %v2147 = vld [vmem:[#allocation20 + $0x48] sm:$0xff]
    %v2148 = vld [vmem:[#allocation20 + $0x50] sm:$0xff]
    %v2149 = vld [vmem:[#allocation20 + $0x58] sm:$0xff]
    %v2150 = vld [vmem:[#allocation20 + $0x60] sm:$0xff]
    %v2151 = vld [vmem:[#allocation20 + $0x68] sm:$0xff]
    %v2152 = vld [vmem:[#allocation20 + $0x70] sm:$0xff]
    %v2153 = vld [vmem:[#allocation20 + $0x78] sm:$0xff]
    %v2154 = vld [vmem:[#allocation20 + $0x80] sm:$0xff]
    %v2155 = vld [vmem:[#allocation20 + $0x88] sm:$0xff]
    %v2156 = vld [vmem:[#allocation20 + $0x90] sm:$0xff]
    %v2157 = vld [vmem:[#allocation20 + $0x98] sm:$0xff]
    %v2158 = vld [vmem:[#allocation20 + $0xa0] sm:$0xff]
    %v2159 = vld [vmem:[#allocation20 + $0xa8] sm:$0xff]
    %v2160 = vld [vmem:[#allocation20 + $0xb0] sm:$0xff]
    %v2161 = vld [vmem:[#allocation20 + $0xb8] sm:$0xff]
    %v2162 = vld [vmem:[#allocation20 + $0xc0] sm:$0xff]
    %v2163 = vld [vmem:[#allocation20 + $0xc8] sm:$0xff]
    %v2164 = vld [vmem:[#allocation20 + $0xd0] sm:$0xff]
    %v2165 = vld [vmem:[#allocation20 + $0xd8] sm:$0xff]
    %v2166 = vld [vmem:[#allocation20 + $0xe0] sm:$0xff]
    %v2167 = vld [vmem:[#allocation20 + $0xe8] sm:$0xff]
    %v2168 = vld [vmem:[#allocation20 + $0xf0] sm:$0xff]
    %v2169 = vld [vmem:[#allocation20 + $0xf8] sm:$0xff]
    %v2170 = vld [vmem:[#allocation20 + $0x100] sm:$0xff]
    %v2171 = vld [vmem:[#allocation20 + $0x108] sm:$0xff]
    %v2172 = vld [vmem:[#allocation20 + $0x110] sm:$0xff]
    %v2173 = vld [vmem:[#allocation20 + $0x118] sm:$0xff]
    %v2174 = vld [vmem:[#allocation20 + $0x120] sm:$0xff]
    %v2175 = vld [vmem:[#allocation20 + $0x128] sm:$0xff]
    %v2176 = vld [vmem:[#allocation20 + $0x130] sm:$0xff]
    %v2177 = vld [vmem:[#allocation20 + $0x138] sm:$0xff]
    %v2178 = vld [vmem:[#allocation20 + $0x140] sm:$0xff]
    %v2179 = vld [vmem:[#allocation20 + $0x148] sm:$0xff]
    %v2180 = vld [vmem:[#allocation20 + $0x150] sm:$0xff]
    %v2181 = vld [vmem:[#allocation20 + $0x158] sm:$0xff]
    %v2182 = vld [vmem:[#allocation20 + $0x160] sm:$0xff]
    %v2183 = vld [vmem:[#allocation20 + $0x168] sm:$0xff]
    %v2184 = vld [vmem:[#allocation20 + $0x170] sm:$0xff]
    %v2185 = vld [vmem:[#allocation20 + $0x178] sm:$0xff]
    %v2186 = vld [vmem:[#allocation20 + $0x180] sm:$0xff]
    %v2187 = vld [vmem:[#allocation20 + $0x188] sm:$0xff]
    %v2188 = vld [vmem:[#allocation20 + $0x190] sm:$0xff]
    %v2189 = vld [vmem:[#allocation20 + $0x198] sm:$0xff]
    %v2190 = vld [vmem:[#allocation20 + $0x1a0] sm:$0xff]
    %v2191 = vld [vmem:[#allocation20 + $0x1a8] sm:$0xff]
    %v2192 = vld [vmem:[#allocation20 + $0x1b0] sm:$0xff]
    %v2193 = vld [vmem:[#allocation20 + $0x1b8] sm:$0xff]
    %v2194 = vld [vmem:[#allocation20 + $0x1c0] sm:$0xff]
    %v2195 = vld [vmem:[#allocation20 + $0x1c8] sm:$0xff]
    %v2196 = vld [vmem:[#allocation20 + $0x1d0] sm:$0xff]
    %v2197 = vld [vmem:[#allocation20 + $0x1d8] sm:$0xff]
    %v2198 = vld [vmem:[#allocation20 + $0x1e0] sm:$0xff]
    %v2199 = vld [vmem:[#allocation20 + $0x1e8] sm:$0xff]
    %v2200 = vld [vmem:[#allocation20 + $0x1f0] sm:$0xff]
    %v2201 = vld [vmem:[#allocation20 + $0x1f8] sm:$0xff]
    %v2202 = vld [vmem:[#allocation20 + $0x200] sm:$0xff]
    %v2203 = vld [vmem:[#allocation20 + $0x208] sm:$0xff]
    %v2204 = vld [vmem:[#allocation20 + $0x210] sm:$0xff]
    %v2205 = vld [vmem:[#allocation20 + $0x218] sm:$0xff]
    %v2206 = vld [vmem:[#allocation20 + $0x220] sm:$0xff]
    %v2207 = vld [vmem:[#allocation20 + $0x228] sm:$0xff]
    %v2208 = vld [vmem:[#allocation20 + $0x230] sm:$0xff]
    %v2209 = vld [vmem:[#allocation20 + $0x238] sm:$0xff]
    %v2210 = vld [vmem:[#allocation20 + $0x240] sm:$0xff]
    %v2211 = vld [vmem:[#allocation20 + $0x248] sm:$0xff]
    %v2212 = vld [vmem:[#allocation20 + $0x250] sm:$0xff]
    %v2213 = vld [vmem:[#allocation20 + $0x258] sm:$0xff]
    %v2214 = vld [vmem:[#allocation20 + $0x260] sm:$0xff]
    %v2215 = vld [vmem:[#allocation20 + $0x268] sm:$0xff]
    %v2216 = vld [vmem:[#allocation20 + $0x270] sm:$0xff]
    %v2217 = vld [vmem:[#allocation20 + $0x278] sm:$0xff]
    %v2218 = vld [vmem:[#allocation20 + $0x280] sm:$0xff]
    %v2219 = vld [vmem:[#allocation20 + $0x288] sm:$0xff]
    %v2220 = vld [vmem:[#allocation20 + $0x290] sm:$0xff]
    %v2221 = vld [vmem:[#allocation20 + $0x298] sm:$0xff]
    %v2222 = vld [vmem:[#allocation20 + $0x2a0] sm:$0xff]
    %v2223 = vld [vmem:[#allocation20 + $0x2a8] sm:$0xff]
    %v2224 = vld [vmem:[#allocation20 + $0x2b0] sm:$0xff]
    %v2225 = vld [vmem:[#allocation20 + $0x2b8] sm:$0xff]
    %v2226 = vld [vmem:[#allocation20 + $0x2c0] sm:$0xff]
    %v2227 = vld [vmem:[#allocation20 + $0x2c8] sm:$0xff]
    %v2228 = vld [vmem:[#allocation20 + $0x2d0] sm:$0xff]
    %v2229 = vld [vmem:[#allocation20 + $0x2d8] sm:$0xff]
    %v2230 = vld [vmem:[#allocation20 + $0x2e0] sm:$0xff]
    %v2231 = vld [vmem:[#allocation20 + $0x2e8] sm:$0xff]
    %v2232 = vld [vmem:[#allocation20 + $0x2f0] sm:$0xff]
    %v2233 = vld [vmem:[#allocation20 + $0x2f8] sm:$0xff]
    %v2234 = vld [vmem:[#allocation20 + $0x300] sm:$0xff]
    %v2235 = vld [vmem:[#allocation20 + $0x308] sm:$0xff]
    %v2236 = vld [vmem:[#allocation20 + $0x310] sm:$0xff]
    %v2237 = vld [vmem:[#allocation20 + $0x318] sm:$0xff]
    %v2238 = vld [vmem:[#allocation20 + $0x320] sm:$0xff]
    %v2239 = vld [vmem:[#allocation20 + $0x328] sm:$0xff]
    %v2240 = vld [vmem:[#allocation20 + $0x330] sm:$0xff]
    %v2241 = vld [vmem:[#allocation20 + $0x338] sm:$0xff]
    %v2242 = vld [vmem:[#allocation20 + $0x340] sm:$0xff]
    %v2243 = vld [vmem:[#allocation20 + $0x348] sm:$0xff]
    %v2244 = vld [vmem:[#allocation20 + $0x350] sm:$0xff]
    %v2245 = vld [vmem:[#allocation20 + $0x358] sm:$0xff]
    %v2246 = vld [vmem:[#allocation20 + $0x360] sm:$0xff]
    %v2247 = vld [vmem:[#allocation20 + $0x368] sm:$0xff]
    %v2248 = vld [vmem:[#allocation20 + $0x370] sm:$0xff]
    %v2249 = vld [vmem:[#allocation20 + $0x378] sm:$0xff]
    %v2250 = vld [vmem:[#allocation20 + $0x380] sm:$0xff]
    %v2251 = vld [vmem:[#allocation20 + $0x388] sm:$0xff]
    %v2252 = vld [vmem:[#allocation20 + $0x390] sm:$0xff]
    %v2253 = vld [vmem:[#allocation20 + $0x398] sm:$0xff]
    %v2254 = vld [vmem:[#allocation20 + $0x3a0] sm:$0xff]
    %v2255 = vld [vmem:[#allocation20 + $0x3a8] sm:$0xff]
    %v2256 = vld [vmem:[#allocation20 + $0x3b0] sm:$0xff]
    %v2257 = vld [vmem:[#allocation20 + $0x3b8] sm:$0xff]
    %v2258 = vld [vmem:[#allocation20 + $0x3c0] sm:$0xff]
    %v2259 = vld [vmem:[#allocation20 + $0x3c8] sm:$0xff]
    %v2260 = vld [vmem:[#allocation20 + $0x3d0] sm:$0xff]
    %v2261 = vld [vmem:[#allocation20 + $0x3d8] sm:$0xff]
    %v2262 = vld [vmem:[#allocation20 + $0x3e0] sm:$0xff]
    %v2263 = vld [vmem:[#allocation20 + $0x3e8] sm:$0xff]
    %v2264 = vld [vmem:[#allocation20 + $0x3f0] sm:$0xff]
    %v2265 = vld [vmem:[#allocation20 + $0x3f8] sm:$0xff]
    %v2266 = vld [vmem:[#allocation20 + $0x400] sm:$0xff]
    %v2267 = vld [vmem:[#allocation20 + $0x408] sm:$0xff]
    %v2268 = vld [vmem:[#allocation20 + $0x410] sm:$0xff]
    %v2269 = vld [vmem:[#allocation20 + $0x418] sm:$0xff]
    %v2270 = vld [vmem:[#allocation20 + $0x420] sm:$0xff]
    %v2271 = vld [vmem:[#allocation20 + $0x428] sm:$0xff]
    %v2272 = vld [vmem:[#allocation20 + $0x430] sm:$0xff]
    %v2273 = vld [vmem:[#allocation20 + $0x438] sm:$0xff]
    %v2274 = vld [vmem:[#allocation20 + $0x440] sm:$0xff]
    %v2275 = vld [vmem:[#allocation20 + $0x448] sm:$0xff]
    %v2276 = vld [vmem:[#allocation20 + $0x450] sm:$0xff]
    %v2277 = vld [vmem:[#allocation20 + $0x458] sm:$0xff]
    %v2278 = vld [vmem:[#allocation20 + $0x460] sm:$0xff]
    %v2279 = vld [vmem:[#allocation20 + $0x468] sm:$0xff]
    %v2280 = vld [vmem:[#allocation20 + $0x470] sm:$0xff]
    %v2281 = vld [vmem:[#allocation20 + $0x478] sm:$0xff]
    %v2282 = vld [vmem:[#allocation20 + $0x480] sm:$0xff]
    %v2283 = vld [vmem:[#allocation20 + $0x488] sm:$0xff]
    %v2284 = vld [vmem:[#allocation20 + $0x490] sm:$0xff]
    %v2285 = vld [vmem:[#allocation20 + $0x498] sm:$0xff]
    %v2286 = vld [vmem:[#allocation20 + $0x4a0] sm:$0xff]
    %v2287 = vld [vmem:[#allocation20 + $0x4a8] sm:$0xff]
    %v2288 = vld [vmem:[#allocation20 + $0x4b0] sm:$0xff]
    %v2289 = vld [vmem:[#allocation20 + $0x4b8] sm:$0xff]
    %v2290 = vld [vmem:[#allocation20 + $0x4c0] sm:$0xff]
    %v2291 = vld [vmem:[#allocation20 + $0x4c8] sm:$0xff]
    %v2292 = vld [vmem:[#allocation20 + $0x4d0] sm:$0xff]
    %v2293 = vld [vmem:[#allocation20 + $0x4d8] sm:$0xff]
    %v2294 = vld [vmem:[#allocation20 + $0x4e0] sm:$0xff]
    %v2295 = vld [vmem:[#allocation20 + $0x4e8] sm:$0xff]
    %v2296 = vld [vmem:[#allocation20 + $0x4f0] sm:$0xff]
    %v2297 = vld [vmem:[#allocation20 + $0x4f8] sm:$0xff]
    %v2298 = vld [vmem:[#allocation20 + $0x500] sm:$0xff]
    %v2299 = vld [vmem:[#allocation20 + $0x508] sm:$0xff]
    %v2300 = vld [vmem:[#allocation20 + $0x510] sm:$0xff]
    %v2301 = vld [vmem:[#allocation20 + $0x518] sm:$0xff]
    %v2302 = vld [vmem:[#allocation20 + $0x520] sm:$0xff]
    %v2303 = vld [vmem:[#allocation20 + $0x528] sm:$0xff]
    %v2304 = vld [vmem:[#allocation20 + $0x530] sm:$0xff]
    %v2305 = vld [vmem:[#allocation20 + $0x538] sm:$0xff]
    %v2306 = vld [vmem:[#allocation20 + $0x540] sm:$0xff]
    %v2307 = vld [vmem:[#allocation20 + $0x548] sm:$0xff]
    %v2308 = vld [vmem:[#allocation20 + $0x550] sm:$0xff]
    %v2309 = vld [vmem:[#allocation20 + $0x558] sm:$0xff]
    %v2310 = vld [vmem:[#allocation20 + $0x560] sm:$0xff]
    %v2311 = vld [vmem:[#allocation20 + $0x568] sm:$0xff]
    %v2312 = vld [vmem:[#allocation20 + $0x570] sm:$0xff]
    %v2313 = vld [vmem:[#allocation20 + $0x578] sm:$0xff]
    %v2314 = vld [vmem:[#allocation20 + $0x580] sm:$0xff]
    %v2315 = vld [vmem:[#allocation20 + $0x588] sm:$0xff]
    %v2316 = vld [vmem:[#allocation20 + $0x590] sm:$0xff]
    %v2317 = vld [vmem:[#allocation20 + $0x598] sm:$0xff]
    %v2318 = vld [vmem:[#allocation20 + $0x5a0] sm:$0xff]
    %v2319 = vld [vmem:[#allocation20 + $0x5a8] sm:$0xff]
    %v2320 = vld [vmem:[#allocation20 + $0x5b0] sm:$0xff]
    %v2321 = vld [vmem:[#allocation20 + $0x5b8] sm:$0xff]
    %v2322 = vld [vmem:[#allocation20 + $0x5c0] sm:$0xff]
    %v2323 = vld [vmem:[#allocation20 + $0x5c8] sm:$0xff]
    %v2324 = vld [vmem:[#allocation20 + $0x5d0] sm:$0xff]
    %v2325 = vld [vmem:[#allocation20 + $0x5d8] sm:$0xff]
    %v2326 = vld [vmem:[#allocation20 + $0x5e0] sm:$0xff]
    %v2327 = vld [vmem:[#allocation20 + $0x5e8] sm:$0xff]
    %v2328 = vld [vmem:[#allocation20 + $0x5f0] sm:$0xff]
    %v2329 = vld [vmem:[#allocation20 + $0x5f8] sm:$0xff]
    %v2330 = vld [vmem:[#allocation20 + $0x600] sm:$0xff]
    %v2331 = vld [vmem:[#allocation20 + $0x608] sm:$0xff]
    %v2332 = vld [vmem:[#allocation20 + $0x610] sm:$0xff]
    %v2333 = vld [vmem:[#allocation20 + $0x618] sm:$0xff]
    %v2334 = vld [vmem:[#allocation20 + $0x620] sm:$0xff]
    %v2335 = vld [vmem:[#allocation20 + $0x628] sm:$0xff]
    %v2336 = vld [vmem:[#allocation20 + $0x630] sm:$0xff]
    %v2337 = vld [vmem:[#allocation20 + $0x638] sm:$0xff]
    %v2338 = vld [vmem:[#allocation20 + $0x640] sm:$0xff]
    %v2339 = vld [vmem:[#allocation20 + $0x648] sm:$0xff]
    %v2340 = vld [vmem:[#allocation20 + $0x650] sm:$0xff]
    %v2341 = vld [vmem:[#allocation20 + $0x658] sm:$0xff]
    %v2342 = vld [vmem:[#allocation20 + $0x660] sm:$0xff]
    %v2343 = vld [vmem:[#allocation20 + $0x668] sm:$0xff]
    %v2344 = vld [vmem:[#allocation20 + $0x670] sm:$0xff]
    %v2345 = vld [vmem:[#allocation20 + $0x678] sm:$0xff]
    %v2346 = vld [vmem:[#allocation20 + $0x680] sm:$0xff]
    %v2347 = vld [vmem:[#allocation20 + $0x688] sm:$0xff]
    %v2348 = vld [vmem:[#allocation20 + $0x690] sm:$0xff]
    %v2349 = vld [vmem:[#allocation20 + $0x698] sm:$0xff]
    %v2350 = vld [vmem:[#allocation20 + $0x6a0] sm:$0xff]
    %v2351 = vld [vmem:[#allocation20 + $0x6a8] sm:$0xff]
    %v2352 = vld [vmem:[#allocation20 + $0x6b0] sm:$0xff]
    %v2353 = vld [vmem:[#allocation20 + $0x6b8] sm:$0xff]
    %v2354 = vld [vmem:[#allocation20 + $0x6c0] sm:$0xff]
    %v2355 = vld [vmem:[#allocation20 + $0x6c8] sm:$0xff]
    %v2356 = vld [vmem:[#allocation20 + $0x6d0] sm:$0xff]
    %v2357 = vld [vmem:[#allocation20 + $0x6d8] sm:$0xff]
    %v2358 = vld [vmem:[#allocation20 + $0x6e0] sm:$0xff]
    %v2359 = vld [vmem:[#allocation20 + $0x6e8] sm:$0xff]
    %v2360 = vld [vmem:[#allocation20 + $0x6f0] sm:$0xff]
    %v2361 = vld [vmem:[#allocation20 + $0x6f8] sm:$0xff]
    %v2362 = vld [vmem:[#allocation20 + $0x700] sm:$0xff]
    %v2363 = vld [vmem:[#allocation20 + $0x708] sm:$0xff]
    %v2364 = vld [vmem:[#allocation20 + $0x710] sm:$0xff]
    %v2365 = vld [vmem:[#allocation20 + $0x718] sm:$0xff]
    %v2366 = vld [vmem:[#allocation20 + $0x720] sm:$0xff]
    %v2367 = vld [vmem:[#allocation20 + $0x728] sm:$0xff]
    %v2368 = vld [vmem:[#allocation20 + $0x730] sm:$0xff]
    %v2369 = vld [vmem:[#allocation20 + $0x738] sm:$0xff]
    %v2370 = vld [vmem:[#allocation20 + $0x740] sm:$0xff]
    %v2371 = vld [vmem:[#allocation20 + $0x748] sm:$0xff]
    %v2372 = vld [vmem:[#allocation20 + $0x750] sm:$0xff]
    %v2373 = vld [vmem:[#allocation20 + $0x758] sm:$0xff]
    %v2374 = vld [vmem:[#allocation20 + $0x760] sm:$0xff]
    %v2375 = vld [vmem:[#allocation20 + $0x768] sm:$0xff]
    %v2376 = vld [vmem:[#allocation20 + $0x770] sm:$0xff]
    %v2377 = vld [vmem:[#allocation20 + $0x778] sm:$0xff]
    %v2378 = vld [vmem:[#allocation20 + $0x780] sm:$0xff]
    %v2379 = vld [vmem:[#allocation20 + $0x788] sm:$0xff]
    %v2380 = vld [vmem:[#allocation20 + $0x790] sm:$0xff]
    %v2381 = vld [vmem:[#allocation20 + $0x798] sm:$0xff]
    %v2382 = vld [vmem:[#allocation20 + $0x7a0] sm:$0xff]
    %v2383 = vld [vmem:[#allocation20 + $0x7a8] sm:$0xff]
    %v2384 = vld [vmem:[#allocation20 + $0x7b0] sm:$0xff]
    %v2385 = vld [vmem:[#allocation20 + $0x7b8] sm:$0xff]
    %v2386 = vld [vmem:[#allocation20 + $0x7c0] sm:$0xff]
    %v2387 = vld [vmem:[#allocation20 + $0x7c8] sm:$0xff]
    %v2388 = vld [vmem:[#allocation20 + $0x7d0] sm:$0xff]
    %v2389 = vld [vmem:[#allocation20 + $0x7d8] sm:$0xff]
    %v2390 = vld [vmem:[#allocation20 + $0x7e0] sm:$0xff]
    %v2391 = vld [vmem:[#allocation20 + $0x7e8] sm:$0xff]
    %v2392 = vld [vmem:[#allocation20 + $0x7f0] sm:$0xff]
    %v2393 = vld [vmem:[#allocation20 + $0x7f8] sm:$0xff]
    %v2394 = vld [vmem:[#allocation20 + $0x800] sm:$0xff]
    %v2395 = vld [vmem:[#allocation20 + $0x808] sm:$0xff]
    %v2396 = vld [vmem:[#allocation20 + $0x810] sm:$0xff]
    %v2397 = vld [vmem:[#allocation20 + $0x818] sm:$0xff]
    %v2398 = vld [vmem:[#allocation20 + $0x820] sm:$0xff]
    %v2399 = vld [vmem:[#allocation20 + $0x828] sm:$0xff]
    %v2400 = vld [vmem:[#allocation20 + $0x830] sm:$0xff]
    %v2401 = vld [vmem:[#allocation20 + $0x838] sm:$0xff]
    %v2402 = vld [vmem:[#allocation20 + $0x840] sm:$0xff]
    %v2403 = vld [vmem:[#allocation20 + $0x848] sm:$0xff]
    %v2404 = vld [vmem:[#allocation20 + $0x850] sm:$0xff]
    %v2405 = vld [vmem:[#allocation20 + $0x858] sm:$0xff]
    %v2406 = vld [vmem:[#allocation20 + $0x860] sm:$0xff]
    %v2407 = vld [vmem:[#allocation20 + $0x868] sm:$0xff]
    %v2408 = vld [vmem:[#allocation20 + $0x870] sm:$0xff]
    %v2409 = vld [vmem:[#allocation20 + $0x878] sm:$0xff]
    %v2410 = vld [vmem:[#allocation20 + $0x880] sm:$0xff]
    %v2411 = vld [vmem:[#allocation20 + $0x888] sm:$0xff]
    %v2412 = vld [vmem:[#allocation20 + $0x890] sm:$0xff]
    %v2413 = vld [vmem:[#allocation20 + $0x898] sm:$0xff]
    %v2414 = vld [vmem:[#allocation20 + $0x8a0] sm:$0xff]
    %v2415 = vld [vmem:[#allocation20 + $0x8a8] sm:$0xff]
    %v2416 = vld [vmem:[#allocation20 + $0x8b0] sm:$0xff]
    %v2417 = vld [vmem:[#allocation20 + $0x8b8] sm:$0xff]
    %v2418 = vld [vmem:[#allocation20 + $0x8c0] sm:$0xff]
    %v2419 = vld [vmem:[#allocation20 + $0x8c8] sm:$0xff]
    %v2420 = vld [vmem:[#allocation20 + $0x8d0] sm:$0xff]
    %v2421 = vld [vmem:[#allocation20 + $0x8d8] sm:$0xff]
    %v2422 = vld [vmem:[#allocation20 + $0x8e0] sm:$0xff]
    %v2423 = vld [vmem:[#allocation20 + $0x8e8] sm:$0xff]
    %v2424 = vld [vmem:[#allocation20 + $0x8f0] sm:$0xff]
    %v2425 = vld [vmem:[#allocation20 + $0x8f8] sm:$0xff]
    %v2426 = vld [vmem:[#allocation20 + $0x900] sm:$0xff]
    %v2427 = vld [vmem:[#allocation20 + $0x908] sm:$0xff]
    %v2428 = vld [vmem:[#allocation20 + $0x910] sm:$0xff]
    %v2429 = vld [vmem:[#allocation20 + $0x918] sm:$0xff]
    %v2430 = vld [vmem:[#allocation20 + $0x920] sm:$0xff]
    %v2431 = vld [vmem:[#allocation20 + $0x928] sm:$0xff]
    %v2432 = vld [vmem:[#allocation20 + $0x930] sm:$0xff]
    %v2433 = vld [vmem:[#allocation20 + $0x938] sm:$0xff]
    %v2434 = vld [vmem:[#allocation20 + $0x940] sm:$0xff]
    %v2435 = vld [vmem:[#allocation20 + $0x948] sm:$0xff]
    %v2436 = vld [vmem:[#allocation20 + $0x950] sm:$0xff]
    %v2437 = vld [vmem:[#allocation20 + $0x958] sm:$0xff]
    %v2438 = vld [vmem:[#allocation20 + $0x960] sm:$0xff]
    %v2439 = vld [vmem:[#allocation20 + $0x968] sm:$0xff]
    %v2440 = vld [vmem:[#allocation20 + $0x970] sm:$0xff]
    %v2441 = vld [vmem:[#allocation20 + $0x978] sm:$0xff]
    %v2442 = vld [vmem:[#allocation20 + $0x980] sm:$0xff]
    %v2443 = vld [vmem:[#allocation20 + $0x988] sm:$0xff]
    %v2444 = vld [vmem:[#allocation20 + $0x990] sm:$0xff]
    %v2445 = vld [vmem:[#allocation20 + $0x998] sm:$0xff]
    %v2446 = vld [vmem:[#allocation20 + $0x9a0] sm:$0xff]
    %v2447 = vld [vmem:[#allocation20 + $0x9a8] sm:$0xff]
    %v2448 = vld [vmem:[#allocation20 + $0x9b0] sm:$0xff]
    %v2449 = vld [vmem:[#allocation20 + $0x9b8] sm:$0xff]
    %v2450 = vld [vmem:[#allocation20 + $0x9c0] sm:$0xff]
    %v2451 = vld [vmem:[#allocation20 + $0x9c8] sm:$0xff]
    %v2452 = vld [vmem:[#allocation20 + $0x9d0] sm:$0xff]
    %v2453 = vld [vmem:[#allocation20 + $0x9d8] sm:$0xff]
    %v2454 = vld [vmem:[#allocation20 + $0x9e0] sm:$0xff]
    %v2455 = vld [vmem:[#allocation20 + $0x9e8] sm:$0xff]
    %v2456 = vld [vmem:[#allocation20 + $0x9f0] sm:$0xff]
    %v2457 = vld [vmem:[#allocation20 + $0x9f8] sm:$0xff]
    %v2458 = vld [vmem:[#allocation20 + $0xa00] sm:$0xff]
    %v2459 = vld [vmem:[#allocation20 + $0xa08] sm:$0xff]
    %v2460 = vld [vmem:[#allocation20 + $0xa10] sm:$0xff]
    %v2461 = vld [vmem:[#allocation20 + $0xa18] sm:$0xff]
    %v2462 = vld [vmem:[#allocation20 + $0xa20] sm:$0xff]
    %v2463 = vld [vmem:[#allocation20 + $0xa28] sm:$0xff]
    %v2464 = vld [vmem:[#allocation20 + $0xa30] sm:$0xff]
    %v2465 = vld [vmem:[#allocation20 + $0xa38] sm:$0xff]
    %v2466 = vld [vmem:[#allocation20 + $0xa40] sm:$0xff]
    %v2467 = vld [vmem:[#allocation20 + $0xa48] sm:$0xff]
    %v2468 = vld [vmem:[#allocation20 + $0xa50] sm:$0xff]
    %v2469 = vld [vmem:[#allocation20 + $0xa58] sm:$0xff]
    %v2470 = vld [vmem:[#allocation20 + $0xa60] sm:$0xff]
    %v2471 = vld [vmem:[#allocation20 + $0xa68] sm:$0xff]
    %v2472 = vld [vmem:[#allocation20 + $0xa70] sm:$0xff]
    %v2473 = vld [vmem:[#allocation20 + $0xa78] sm:$0xff]
    %v2474 = vld [vmem:[#allocation20 + $0xa80] sm:$0xff]
    %v2475 = vld [vmem:[#allocation20 + $0xa88] sm:$0xff]
    %v2476 = vld [vmem:[#allocation20 + $0xa90] sm:$0xff]
    %v2477 = vld [vmem:[#allocation20 + $0xa98] sm:$0xff]
    %v2478 = vld [vmem:[#allocation20 + $0xaa0] sm:$0xff]
    %v2479 = vld [vmem:[#allocation20 + $0xaa8] sm:$0xff]
    %v2480 = vld [vmem:[#allocation20 + $0xab0] sm:$0xff]
    %v2481 = vld [vmem:[#allocation20 + $0xab8] sm:$0xff]
    %v2482 = vld [vmem:[#allocation20 + $0xac0] sm:$0xff]
    %v2483 = vld [vmem:[#allocation20 + $0xac8] sm:$0xff]
    %v2484 = vld [vmem:[#allocation20 + $0xad0] sm:$0xff]
    %v2485 = vld [vmem:[#allocation20 + $0xad8] sm:$0xff]
    %v2486 = vld [vmem:[#allocation20 + $0xae0] sm:$0xff]
    %v2487 = vld [vmem:[#allocation20 + $0xae8] sm:$0xff]
    %v2488 = vld [vmem:[#allocation20 + $0xaf0] sm:$0xff]
    %v2489 = vld [vmem:[#allocation20 + $0xaf8] sm:$0xff]
    %v2490 = vld [vmem:[#allocation20 + $0xb00] sm:$0xff]
    %v2491 = vld [vmem:[#allocation20 + $0xb08] sm:$0xff]
    %v2492 = vld [vmem:[#allocation20 + $0xb10] sm:$0xff]
    %v2493 = vld [vmem:[#allocation20 + $0xb18] sm:$0xff]
    %v2494 = vld [vmem:[#allocation20 + $0xb20] sm:$0xff]
    %v2495 = vld [vmem:[#allocation20 + $0xb28] sm:$0xff]
    %v2496 = vld [vmem:[#allocation20 + $0xb30] sm:$0xff]
    %v2497 = vld [vmem:[#allocation20 + $0xb38] sm:$0xff]
    %v2498 = vld [vmem:[#allocation20 + $0xb40] sm:$0xff]
    %v2499 = vld [vmem:[#allocation20 + $0xb48] sm:$0xff]
    %v2500 = vld [vmem:[#allocation20 + $0xb50] sm:$0xff]
    %v2501 = vld [vmem:[#allocation20 + $0xb58] sm:$0xff]
    %v2502 = vld [vmem:[#allocation20 + $0xb60] sm:$0xff]
    %v2503 = vld [vmem:[#allocation20 + $0xb68] sm:$0xff]
    %v2504 = vld [vmem:[#allocation20 + $0xb70] sm:$0xff]
    %v2505 = vld [vmem:[#allocation20 + $0xb78] sm:$0xff]
    %v2506 = vld [vmem:[#allocation20 + $0xb80] sm:$0xff]
    %v2507 = vld [vmem:[#allocation20 + $0xb88] sm:$0xff]
    %v2508 = vld [vmem:[#allocation20 + $0xb90] sm:$0xff]
    %v2509 = vld [vmem:[#allocation20 + $0xb98] sm:$0xff]
    %v2510 = vld [vmem:[#allocation20 + $0xba0] sm:$0xff]
    %v2511 = vld [vmem:[#allocation20 + $0xba8] sm:$0xff]
    %v2512 = vld [vmem:[#allocation20 + $0xbb0] sm:$0xff]
    %v2513 = vld [vmem:[#allocation20 + $0xbb8] sm:$0xff]
    %v2514 = vld [vmem:[#allocation20 + $0xbc0] sm:$0xff]
    %v2515 = vld [vmem:[#allocation20 + $0xbc8] sm:$0xff]
    %v2516 = vld [vmem:[#allocation20 + $0xbd0] sm:$0xff]
    %v2517 = vld [vmem:[#allocation20 + $0xbd8] sm:$0xff]
    %v2518 = vld [vmem:[#allocation20 + $0xbe0] sm:$0xff]
    %v2519 = vld [vmem:[#allocation20 + $0xbe8] sm:$0xff]
    %v2520 = vld [vmem:[#allocation20 + $0xbf0] sm:$0xff]
    %v2521 = vld [vmem:[#allocation20 + $0xbf8] sm:$0xff]
    %v2522 = vld [vmem:[%s61] sm:$0x3f]
    %2524 = vrot.lane.b32.xlu0 %v1575, 8
    %v2525 = vpop.permute.xlu0 %2524
    %2528 = vrot.lane.b32.xlu0 %v2123, 16
    %v2529 = vpop.permute.xlu0 %2528
    %vm2531 = vcmask 64512
    %v2532 = vsel %vm2531, %v1027, %v2525
    %vm2533 = vcmask 130048
    %v2534 = vsel %vm2533, %v2532, %v2529
    %v2535 = vpack.c.bf16 %v2534, %v2534
    %v2548 = vunpack.c.l.b16 %v2124
    %v2549 = vunpack.c.h.b16 %v2124
    %v2550 = vunpack.c.l.b16 %v2125
    %v2551 = vunpack.c.h.b16 %v2125
    %v2552 = vunpack.c.l.b16 %v2126
    %v2553 = vunpack.c.h.b16 %v2126
    %v2554 = vunpack.c.l.b16 %v2127
    %v2555 = vunpack.c.h.b16 %v2127
    %v2556 = vunpack.c.l.b16 %v2128
    %v2557 = vunpack.c.h.b16 %v2128
    %v2558 = vunpack.c.l.b16 %v2129
    %v2559 = vunpack.c.h.b16 %v2129
    %v2560 = vunpack.c.l.b16 %v2130
    %v2561 = vunpack.c.h.b16 %v2130
    %v2562 = vunpack.c.l.b16 %v2131
    %v2563 = vunpack.c.h.b16 %v2131
    %v2564 = vunpack.c.l.b16 %v2132
    %v2565 = vunpack.c.h.b16 %v2132
    %v2566 = vunpack.c.l.b16 %v2133
    %v2567 = vunpack.c.h.b16 %v2133
    %v2568 = vunpack.c.l.b16 %v2134
    %v2569 = vunpack.c.h.b16 %v2134
    %v2570 = vunpack.c.l.b16 %v2135
    %v2571 = vunpack.c.h.b16 %v2135
    %v2572 = vpack.c.b16 %v2556, %v2548
    %v2573 = vpack.c.b16 %v2557, %v2549
    %v2574 = vpack.c.b16 %v2558, %v2550
    %v2575 = vpack.c.b16 %v2559, %v2551
    %v2576 = vpack.c.b16 %v2560, %v2552
    %v2577 = vpack.c.b16 %v2561, %v2553
    %v2578 = vpack.c.b16 %v2562, %v2554
    %v2579 = vpack.c.b16 %v2563, %v2555
    %v2580 = vpack.c.b16 %v2564, %v2564
    %v2581 = vpack.c.b16 %v2565, %v2565
    %v2582 = vpack.c.b16 %v2566, %v2566
    %v2583 = vpack.c.b16 %v2567, %v2567
    %v2584 = vpack.c.b16 %v2568, %v2568
    %v2585 = vpack.c.b16 %v2569, %v2569
    %v2586 = vpack.c.b16 %v2570, %v2570
    %v2587 = vpack.c.b16 %v2571, %v2571
    %vm2596 = vcmask 195584
    %v2598 = vsel %vm2596, %v2535, 0
    %vm2600 = vcmask 1043456
    %v2602 = vsel %vm2600, %v2580, 0
    %v2605 = vsel %vm2600, %v2581, 0
    %v2608 = vsel %vm2600, %v2582, 0
    %v2611 = vsel %vm2600, %v2583, 0
    %v2614 = vsel %vm2600, %v2584, 0
    %v2617 = vsel %vm2600, %v2585, 0
    %v2620 = vsel %vm2600, %v2586, 0
    %v2623 = vsel %vm2600, %v2587, 0
    %2625 = vmatpush.bf16.msra.mxu0 0
    %2626 = vmatpush.bf16.msra.mxu0 0
    %2627 = vmatpush.bf16.msra.mxu0 0
    %2628 = vmatpush.bf16.msra.mxu0 0
    %2629 = vmatpush.bf16.msra.mxu0 0
    %2630 = vmatpush.bf16.msra.mxu0 0
    %2631 = vmatpush.bf16.msra.mxu0 %v2602
    %2632 = vmatpush.bf16.msra.mxu0 %v2572
    %2633 = vmatmul.bf16.gmra.mxu0 %v2598
    %v2634 = vpop.f32.mrf.mxu0
    %v2635 = vadd.f32 0.0, %v2634
    %v2636 = vpop.f32.mrf.mxu0
    %2637 = vdwg.mxu0
    %2638 = vmatpush.bf16.msra.mxu0 0
    %2639 = vmatpush.bf16.msra.mxu0 0
    %2640 = vmatpush.bf16.msra.mxu0 0
    %2641 = vmatpush.bf16.msra.mxu0 0
    %2642 = vmatpush.bf16.msra.mxu0 0
    %2643 = vmatpush.bf16.msra.mxu0 0
    %2644 = vmatpush.bf16.msra.mxu0 %v2605
    %2645 = vmatpush.bf16.msra.mxu0 %v2573
    %2646 = vmatmul.bf16.gmra.mxu0 %v2598
    %v2647 = vpop.f32.mrf.mxu0
    %v2648 = vadd.f32 0.0, %v2647
    %v2649 = vpop.f32.mrf.mxu0
    %2650 = vdwg.mxu0
    %2651 = vmatpush.bf16.msra.mxu0 0
    %2652 = vmatpush.bf16.msra.mxu0 0
    %2653 = vmatpush.bf16.msra.mxu0 0
    %2654 = vmatpush.bf16.msra.mxu0 0
    %2655 = vmatpush.bf16.msra.mxu0 0
    %2656 = vmatpush.bf16.msra.mxu0 0
    %2657 = vmatpush.bf16.msra.mxu0 %v2608
    %2658 = vmatpush.bf16.msra.mxu0 %v2574
    %2659 = vmatmul.bf16.gmra.mxu0 %v2598
    %v2660 = vpop.f32.mrf.mxu0
    %v2661 = vadd.f32 0.0, %v2660
    %v2662 = vpop.f32.mrf.mxu0
    %2663 = vdwg.mxu0
    %2664 = vmatpush.bf16.msra.mxu0 0
    %2665 = vmatpush.bf16.msra.mxu0 0
    %2666 = vmatpush.bf16.msra.mxu0 0
    %2667 = vmatpush.bf16.msra.mxu0 0
    %2668 = vmatpush.bf16.msra.mxu0 0
    %2669 = vmatpush.bf16.msra.mxu0 0
    %2670 = vmatpush.bf16.msra.mxu0 %v2611
    %2671 = vmatpush.bf16.msra.mxu0 %v2575
    %2672 = vmatmul.bf16.gmra.mxu0 %v2598
    %v2673 = vpop.f32.mrf.mxu0
    %v2674 = vadd.f32 0.0, %v2673
    %v2675 = vpop.f32.mrf.mxu0
    %2676 = vdwg.mxu0
    %2677 = vmatpush.bf16.msra.mxu0 0
    %2678 = vmatpush.bf16.msra.mxu0 0
    %2679 = vmatpush.bf16.msra.mxu0 0
    %2680 = vmatpush.bf16.msra.mxu0 0
    %2681 = vmatpush.bf16.msra.mxu0 0
    %2682 = vmatpush.bf16.msra.mxu0 0
    %2683 = vmatpush.bf16.msra.mxu0 %v2614
    %2684 = vmatpush.bf16.msra.mxu0 %v2576
    %2685 = vmatmul.bf16.gmra.mxu0 %v2598
    %v2686 = vpop.f32.mrf.mxu0
    %v2687 = vadd.f32 0.0, %v2686
    %v2688 = vpop.f32.mrf.mxu0
    %2689 = vdwg.mxu0
    %2690 = vmatpush.bf16.msra.mxu0 0
    %2691 = vmatpush.bf16.msra.mxu0 0
    %2692 = vmatpush.bf16.msra.mxu0 0
    %2693 = vmatpush.bf16.msra.mxu0 0
    %2694 = vmatpush.bf16.msra.mxu0 0
    %2695 = vmatpush.bf16.msra.mxu0 0
    %2696 = vmatpush.bf16.msra.mxu0 %v2617
    %2697 = vmatpush.bf16.msra.mxu0 %v2577
    %2698 = vmatmul.bf16.gmra.mxu0 %v2598
    %v2699 = vpop.f32.mrf.mxu0
    %v2700 = vadd.f32 0.0, %v2699
    %v2701 = vpop.f32.mrf.mxu0
    %2702 = vdwg.mxu0
    %2703 = vmatpush.bf16.msra.mxu0 0
    %2704 = vmatpush.bf16.msra.mxu0 0
    %2705 = vmatpush.bf16.msra.mxu0 0
    %2706 = vmatpush.bf16.msra.mxu0 0
    %2707 = vmatpush.bf16.msra.mxu0 0
    %2708 = vmatpush.bf16.msra.mxu0 0
    %2709 = vmatpush.bf16.msra.mxu0 %v2620
    %2710 = vmatpush.bf16.msra.mxu0 %v2578
    %2711 = vmatmul.bf16.gmra.mxu0 %v2598
    %v2712 = vpop.f32.mrf.mxu0
    %v2713 = vadd.f32 0.0, %v2712
    %v2714 = vpop.f32.mrf.mxu0
    %2715 = vdwg.mxu0
    %2716 = vmatpush.bf16.msra.mxu0 0
    %2717 = vmatpush.bf16.msra.mxu0 0
    %2718 = vmatpush.bf16.msra.mxu0 0
    %2719 = vmatpush.bf16.msra.mxu0 0
    %2720 = vmatpush.bf16.msra.mxu0 0
    %2721 = vmatpush.bf16.msra.mxu0 0
    %2722 = vmatpush.bf16.msra.mxu0 %v2623
    %2723 = vmatpush.bf16.msra.mxu0 %v2579
    %2724 = vmatmul.bf16.gmra.mxu0 %v2598
    %v2725 = vpop.f32.mrf.mxu0
    %v2726 = vadd.f32 0.0, %v2725
    %v2727 = vpop.f32.mrf.mxu0
    %2728 = vdwg.mxu0
    %v2729 = vsel %vm2600, %v2635, 0.0
    %v2730 = vrot.slane %v2729, 4
    %v2731 = vadd.f32 %v2729, %v2730
    %v2732 = vrot.slane %v2731, 2
    %v2733 = vadd.f32 %v2731, %v2732
    %v2734 = vrot.slane %v2733, 1
    %v2735 = vadd.f32 %v2733, %v2734
    %v2736 = vsel %vm2600, %v2648, 0.0
    %v2737 = vrot.slane %v2736, 4
    %v2738 = vadd.f32 %v2736, %v2737
    %v2739 = vrot.slane %v2738, 2
    %v2740 = vadd.f32 %v2738, %v2739
    %v2741 = vrot.slane %v2740, 1
    %v2742 = vadd.f32 %v2740, %v2741
    %v2743 = vsel %vm2600, %v2661, 0.0
    %v2744 = vrot.slane %v2743, 4
    %v2745 = vadd.f32 %v2743, %v2744
    %v2746 = vrot.slane %v2745, 2
    %v2747 = vadd.f32 %v2745, %v2746
    %v2748 = vrot.slane %v2747, 1
    %v2749 = vadd.f32 %v2747, %v2748
    %v2750 = vsel %vm2600, %v2674, 0.0
    %v2751 = vrot.slane %v2750, 4
    %v2752 = vadd.f32 %v2750, %v2751
    %v2753 = vrot.slane %v2752, 2
    %v2754 = vadd.f32 %v2752, %v2753
    %v2755 = vrot.slane %v2754, 1
    %v2756 = vadd.f32 %v2754, %v2755
    %v2757 = vsel %vm2600, %v2687, 0.0
    %v2758 = vrot.slane %v2757, 4
    %v2759 = vadd.f32 %v2757, %v2758
    %v2760 = vrot.slane %v2759, 2
    %v2761 = vadd.f32 %v2759, %v2760
    %v2762 = vrot.slane %v2761, 1
    %v2763 = vadd.f32 %v2761, %v2762
    %v2764 = vsel %vm2600, %v2700, 0.0
    %v2765 = vrot.slane %v2764, 4
    %v2766 = vadd.f32 %v2764, %v2765
    %v2767 = vrot.slane %v2766, 2
    %v2768 = vadd.f32 %v2766, %v2767
    %v2769 = vrot.slane %v2768, 1
    %v2770 = vadd.f32 %v2768, %v2769
    %v2771 = vsel %vm2600, %v2713, 0.0
    %v2772 = vrot.slane %v2771, 4
    %v2773 = vadd.f32 %v2771, %v2772
    %v2774 = vrot.slane %v2773, 2
    %v2775 = vadd.f32 %v2773, %v2774
    %v2776 = vrot.slane %v2775, 1
    %v2777 = vadd.f32 %v2775, %v2776
    %v2778 = vsel %vm2600, %v2726, 0.0
    %v2779 = vrot.slane %v2778, 4
    %v2780 = vadd.f32 %v2778, %v2779
    %v2781 = vrot.slane %v2780, 2
    %v2782 = vadd.f32 %v2780, %v2781
    %v2783 = vrot.slane %v2782, 1
    %v2784 = vadd.f32 %v2782, %v2783
    %v2785 = vrcp.pop 4.0
    %v2786 = vmul.f32 4.0, %v2785
    %v2787 = vsub.f32 1.0, %v2786
    %v2788 = vmul.f32 %v2785, %v2787
    %v2789 = vadd.f32 %v2785, %v2788
    %vm2790 = vweird.f32 %v2785
    %v2791 = vsel %vm2790, %v2785, %v2789
    %v2792 = vmul.f32 %v2735, %v2791
    %v2793 = vmul.f32 %v2742, %v2791
    %v2794 = vmul.f32 %v2749, %v2791
    %v2795 = vmul.f32 %v2756, %v2791
    %v2796 = vmul.f32 %v2763, %v2791
    %v2797 = vmul.f32 %v2770, %v2791
    %v2798 = vmul.f32 %v2777, %v2791
    %v2799 = vmul.f32 %v2784, %v2791
    %v2800 = vsub.f32 %v2635, %v2792
    %v2801 = vsub.f32 %v2648, %v2793
    %v2802 = vsub.f32 %v2661, %v2794
    %v2803 = vsub.f32 %v2674, %v2795
    %v2804 = vsub.f32 %v2687, %v2796
    %v2805 = vsub.f32 %v2700, %v2797
    %v2806 = vsub.f32 %v2713, %v2798
    %v2807 = vsub.f32 %v2726, %v2799
    %v2808 = vmul.f32 %v2800, %v2800
    %v2809 = vmul.f32 %v2801, %v2801
    %v2810 = vmul.f32 %v2802, %v2802
    %v2811 = vmul.f32 %v2803, %v2803
    %v2812 = vmul.f32 %v2804, %v2804
    %v2813 = vmul.f32 %v2805, %v2805
    %v2814 = vmul.f32 %v2806, %v2806
    %v2815 = vmul.f32 %v2807, %v2807
    %v2816 = vsel %vm2600, %v2808, 0.0
    %v2817 = vrot.slane %v2816, 4
    %v2818 = vadd.f32 %v2816, %v2817
    %v2819 = vrot.slane %v2818, 2
    %v2820 = vadd.f32 %v2818, %v2819
    %v2821 = vrot.slane %v2820, 1
    %v2822 = vadd.f32 %v2820, %v2821
    %v2823 = vsel %vm2600, %v2809, 0.0
    %v2824 = vrot.slane %v2823, 4
    %v2825 = vadd.f32 %v2823, %v2824
    %v2826 = vrot.slane %v2825, 2
    %v2827 = vadd.f32 %v2825, %v2826
    %v2828 = vrot.slane %v2827, 1
    %v2829 = vadd.f32 %v2827, %v2828
    %v2830 = vsel %vm2600, %v2810, 0.0
    %v2831 = vrot.slane %v2830, 4
    %v2832 = vadd.f32 %v2830, %v2831
    %v2833 = vrot.slane %v2832, 2
    %v2834 = vadd.f32 %v2832, %v2833
    %v2835 = vrot.slane %v2834, 1
    %v2836 = vadd.f32 %v2834, %v2835
    %v2837 = vsel %vm2600, %v2811, 0.0
    %v2838 = vrot.slane %v2837, 4
    %v2839 = vadd.f32 %v2837, %v2838
    %v2840 = vrot.slane %v2839, 2
    %v2841 = vadd.f32 %v2839, %v2840
    %v2842 = vrot.slane %v2841, 1
    %v2843 = vadd.f32 %v2841, %v2842
    %v2844 = vsel %vm2600, %v2812, 0.0
    %v2845 = vrot.slane %v2844, 4
    %v2846 = vadd.f32 %v2844, %v2845
    %v2847 = vrot.slane %v2846, 2
    %v2848 = vadd.f32 %v2846, %v2847
    %v2849 = vrot.slane %v2848, 1
    %v2850 = vadd.f32 %v2848, %v2849
    %v2851 = vsel %vm2600, %v2813, 0.0
    %v2852 = vrot.slane %v2851, 4
    %v2853 = vadd.f32 %v2851, %v2852
    %v2854 = vrot.slane %v2853, 2
    %v2855 = vadd.f32 %v2853, %v2854
    %v2856 = vrot.slane %v2855, 1
    %v2857 = vadd.f32 %v2855, %v2856
    %v2858 = vsel %vm2600, %v2814, 0.0
    %v2859 = vrot.slane %v2858, 4
    %v2860 = vadd.f32 %v2858, %v2859
    %v2861 = vrot.slane %v2860, 2
    %v2862 = vadd.f32 %v2860, %v2861
    %v2863 = vrot.slane %v2862, 1
    %v2864 = vadd.f32 %v2862, %v2863
    %v2865 = vsel %vm2600, %v2815, 0.0
    %v2866 = vrot.slane %v2865, 4
    %v2867 = vadd.f32 %v2865, %v2866
    %v2868 = vrot.slane %v2867, 2
    %v2869 = vadd.f32 %v2867, %v2868
    %v2870 = vrot.slane %v2869, 1
    %v2871 = vadd.f32 %v2869, %v2870
    %v2872 = vmul.f32 %v2822, %v2791
    %v2873 = vmul.f32 %v2829, %v2791
    %v2874 = vmul.f32 %v2836, %v2791
    %v2875 = vmul.f32 %v2843, %v2791
    %v2876 = vmul.f32 %v2850, %v2791
    %v2877 = vmul.f32 %v2857, %v2791
    %v2878 = vmul.f32 %v2864, %v2791
    %v2879 = vmul.f32 %v2871, %v2791
    %v2881 = vperm.slane %v2136, 0
    %v2882 = vperm.slane %v2136, 1
    %v2883 = vperm.slane %v2136, 2
    %v2884 = vperm.slane %v2136, 3
    %v2885 = vperm.slane %v2136, 4
    %v2886 = vperm.slane %v2136, 5
    %v2887 = vperm.slane %v2136, 6
    %v2888 = vperm.slane %v2136, 7
    %v2897 = vmul.f32 %v2881, %v2800
    %v2898 = vmul.f32 %v2882, %v2801
    %v2899 = vmul.f32 %v2883, %v2802
    %v2900 = vmul.f32 %v2884, %v2803
    %v2901 = vmul.f32 %v2885, %v2804
    %v2902 = vmul.f32 %v2886, %v2805
    %v2903 = vmul.f32 %v2887, %v2806
    %v2904 = vmul.f32 %v2888, %v2807
    %v2905 = vadd.f32 %v2872, 1e-05
    %v2906 = vadd.f32 %v2873, 1e-05
    %v2907 = vadd.f32 %v2874, 1e-05
    %v2908 = vadd.f32 %v2875, 1e-05
    %v2909 = vadd.f32 %v2876, 1e-05
    %v2910 = vadd.f32 %v2877, 1e-05
    %v2911 = vadd.f32 %v2878, 1e-05
    %v2912 = vadd.f32 %v2879, 1e-05
    %v2913 = vrsqrt.pop %v2905
    %v2914 = vmul.f32 %v2913, %v2905
    %v2915 = vmul.f32 %v2914, %v2913
    %v2916 = vmul.f32 0.5, %v2915
    %v2917 = vsub.f32 1.5, %v2916
    %v2918 = vmul.f32 %v2913, %v2917
    %vm2919 = vweird.f32 %v2905
    %vm2920 = vweird.f32 %v2913
    %vm2921 = vmor %vm2919, %vm2920
    %v2922 = vsel %vm2921, %v2913, %v2918
    %v2923 = vrsqrt.pop %v2906
    %v2924 = vmul.f32 %v2923, %v2906
    %v2925 = vmul.f32 %v2924, %v2923
    %v2926 = vmul.f32 0.5, %v2925
    %v2927 = vsub.f32 1.5, %v2926
    %v2928 = vmul.f32 %v2923, %v2927
    %vm2929 = vweird.f32 %v2906
    %vm2930 = vweird.f32 %v2923
    %vm2931 = vmor %vm2929, %vm2930
    %v2932 = vsel %vm2931, %v2923, %v2928
    %v2933 = vrsqrt.pop %v2907
    %v2934 = vmul.f32 %v2933, %v2907
    %v2935 = vmul.f32 %v2934, %v2933
    %v2936 = vmul.f32 0.5, %v2935
    %v2937 = vsub.f32 1.5, %v2936
    %v2938 = vmul.f32 %v2933, %v2937
    %vm2939 = vweird.f32 %v2907
    %vm2940 = vweird.f32 %v2933
    %vm2941 = vmor %vm2939, %vm2940
    %v2942 = vsel %vm2941, %v2933, %v2938
    %v2943 = vrsqrt.pop %v2908
    %v2944 = vmul.f32 %v2943, %v2908
    %v2945 = vmul.f32 %v2944, %v2943
    %v2946 = vmul.f32 0.5, %v2945
    %v2947 = vsub.f32 1.5, %v2946
    %v2948 = vmul.f32 %v2943, %v2947
    %vm2949 = vweird.f32 %v2908
    %vm2950 = vweird.f32 %v2943
    %vm2951 = vmor %vm2949, %vm2950
    %v2952 = vsel %vm2951, %v2943, %v2948
    %v2953 = vrsqrt.pop %v2909
    %v2954 = vmul.f32 %v2953, %v2909
    %v2955 = vmul.f32 %v2954, %v2953
    %v2956 = vmul.f32 0.5, %v2955
    %v2957 = vsub.f32 1.5, %v2956
    %v2958 = vmul.f32 %v2953, %v2957
    %vm2959 = vweird.f32 %v2909
    %vm2960 = vweird.f32 %v2953
    %vm2961 = vmor %vm2959, %vm2960
    %v2962 = vsel %vm2961, %v2953, %v2958
    %v2963 = vrsqrt.pop %v2910
    %v2964 = vmul.f32 %v2963, %v2910
    %v2965 = vmul.f32 %v2964, %v2963
    %v2966 = vmul.f32 0.5, %v2965
    %v2967 = vsub.f32 1.5, %v2966
    %v2968 = vmul.f32 %v2963, %v2967
    %vm2969 = vweird.f32 %v2910
    %vm2970 = vweird.f32 %v2963
    %vm2971 = vmor %vm2969, %vm2970
    %v2972 = vsel %vm2971, %v2963, %v2968
    %v2973 = vrsqrt.pop %v2911
    %v2974 = vmul.f32 %v2973, %v2911
    %v2975 = vmul.f32 %v2974, %v2973
    %v2976 = vmul.f32 0.5, %v2975
    %v2977 = vsub.f32 1.5, %v2976
    %v2978 = vmul.f32 %v2973, %v2977
    %vm2979 = vweird.f32 %v2911
    %vm2980 = vweird.f32 %v2973
    %vm2981 = vmor %vm2979, %vm2980
    %v2982 = vsel %vm2981, %v2973, %v2978
    %v2983 = vrsqrt.pop %v2912
    %v2984 = vmul.f32 %v2983, %v2912
    %v2985 = vmul.f32 %v2984, %v2983
    %v2986 = vmul.f32 0.5, %v2985
    %v2987 = vsub.f32 1.5, %v2986
    %v2988 = vmul.f32 %v2983, %v2987
    %vm2989 = vweird.f32 %v2912
    %vm2990 = vweird.f32 %v2983
    %vm2991 = vmor %vm2989, %vm2990
    %v2992 = vsel %vm2991, %v2983, %v2988
    %v2993 = vmul.f32 %v2897, %v2922
    %v2994 = vmul.f32 %v2898, %v2932
    %v2995 = vmul.f32 %v2899, %v2942
    %v2996 = vmul.f32 %v2900, %v2952
    %v2997 = vmul.f32 %v2901, %v2962
    %v2998 = vmul.f32 %v2902, %v2972
    %v2999 = vmul.f32 %v2903, %v2982
    %v3000 = vmul.f32 %v2904, %v2992
    %v3002 = vperm.slane %v2137, 0
    %v3003 = vperm.slane %v2137, 1
    %v3004 = vperm.slane %v2137, 2
    %v3005 = vperm.slane %v2137, 3
    %v3006 = vperm.slane %v2137, 4
    %v3007 = vperm.slane %v2137, 5
    %v3008 = vperm.slane %v2137, 6
    %v3009 = vperm.slane %v2137, 7
    %v3018 = vadd.f32 %v2993, %v3002
    %v3019 = vadd.f32 %v2994, %v3003
    %v3020 = vadd.f32 %v2995, %v3004
    %v3021 = vadd.f32 %v2996, %v3005
    %v3022 = vadd.f32 %v2997, %v3006
    %v3023 = vadd.f32 %v2998, %v3007
    %v3024 = vadd.f32 %v2999, %v3008
    %v3025 = vadd.f32 %v3000, %v3009
    %v3026 = vpack.c.bf16 %v3018, %v3018
    %v3027 = vpack.c.bf16 %v3019, %v3019
    %v3028 = vpack.c.bf16 %v3020, %v3020
    %v3029 = vpack.c.bf16 %v3021, %v3021
    %v3030 = vpack.c.bf16 %v3022, %v3022
    %v3031 = vpack.c.bf16 %v3023, %v3023
    %v3032 = vpack.c.bf16 %v3024, %v3024
    %v3033 = vpack.c.bf16 %v3025, %v3025
    %v3035 = vperm.slane %v2522, 0
    %v3036 = vperm.slane %v2522, 1
    %v3037 = vperm.slane %v2522, 2
    %v3038 = vperm.slane %v2522, 3
    %v3039 = vperm.slane %v2522, 4
    %v3040 = vperm.slane %v2522, 5
    %v3431 = vunpack.c.l.b16 %v2138
    %v3432 = vunpack.c.h.b16 %v2138
    %v3433 = vunpack.c.l.b16 %v2139
    %v3434 = vunpack.c.h.b16 %v2139
    %v3435 = vunpack.c.l.b16 %v2140
    %v3436 = vunpack.c.h.b16 %v2140
    %v3437 = vunpack.c.l.b16 %v2141
    %v3438 = vunpack.c.h.b16 %v2141
    %v3439 = vunpack.c.l.b16 %v2142
    %v3440 = vunpack.c.h.b16 %v2142
    %v3441 = vunpack.c.l.b16 %v2143
    %v3442 = vunpack.c.h.b16 %v2143
    %v3443 = vunpack.c.l.b16 %v2144
    %v3444 = vunpack.c.h.b16 %v2144
    %v3445 = vunpack.c.l.b16 %v2145
    %v3446 = vunpack.c.h.b16 %v2145
    %v3447 = vunpack.c.l.b16 %v2146
    %v3448 = vunpack.c.h.b16 %v2146
    %v3449 = vunpack.c.l.b16 %v2147
    %v3450 = vunpack.c.h.b16 %v2147
    %v3451 = vunpack.c.l.b16 %v2148
    %v3452 = vunpack.c.h.b16 %v2148
    %v3453 = vunpack.c.l.b16 %v2149
    %v3454 = vunpack.c.h.b16 %v2149
    %v3455 = vunpack.c.l.b16 %v2150
    %v3456 = vunpack.c.h.b16 %v2150
    %v3457 = vunpack.c.l.b16 %v2151
    %v3458 = vunpack.c.h.b16 %v2151
    %v3459 = vunpack.c.l.b16 %v2152
    %v3460 = vunpack.c.h.b16 %v2152
    %v3461 = vunpack.c.l.b16 %v2153
    %v3462 = vunpack.c.h.b16 %v2153
    %v3463 = vunpack.c.l.b16 %v2154
    %v3464 = vunpack.c.h.b16 %v2154
    %v3465 = vunpack.c.l.b16 %v2155
    %v3466 = vunpack.c.h.b16 %v2155
    %v3467 = vunpack.c.l.b16 %v2156
    %v3468 = vunpack.c.h.b16 %v2156
    %v3469 = vunpack.c.l.b16 %v2157
    %v3470 = vunpack.c.h.b16 %v2157
    %v3471 = vunpack.c.l.b16 %v2158
    %v3472 = vunpack.c.h.b16 %v2158
    %v3473 = vunpack.c.l.b16 %v2159
    %v3474 = vunpack.c.h.b16 %v2159
    %v3475 = vunpack.c.l.b16 %v2160
    %v3476 = vunpack.c.h.b16 %v2160
    %v3477 = vunpack.c.l.b16 %v2161
    %v3478 = vunpack.c.h.b16 %v2161
    %v3479 = vunpack.c.l.b16 %v2162
    %v3480 = vunpack.c.h.b16 %v2162
    %v3481 = vunpack.c.l.b16 %v2163
    %v3482 = vunpack.c.h.b16 %v2163
    %v3483 = vunpack.c.l.b16 %v2164
    %v3484 = vunpack.c.h.b16 %v2164
    %v3485 = vunpack.c.l.b16 %v2165
    %v3486 = vunpack.c.h.b16 %v2165
    %v3487 = vunpack.c.l.b16 %v2166
    %v3488 = vunpack.c.h.b16 %v2166
    %v3489 = vunpack.c.l.b16 %v2167
    %v3490 = vunpack.c.h.b16 %v2167
    %v3491 = vunpack.c.l.b16 %v2168
    %v3492 = vunpack.c.h.b16 %v2168
    %v3493 = vunpack.c.l.b16 %v2169
    %v3494 = vunpack.c.h.b16 %v2169
    %v3495 = vunpack.c.l.b16 %v2170
    %v3496 = vunpack.c.h.b16 %v2170
    %v3497 = vunpack.c.l.b16 %v2171
    %v3498 = vunpack.c.h.b16 %v2171
    %v3499 = vunpack.c.l.b16 %v2172
    %v3500 = vunpack.c.h.b16 %v2172
    %v3501 = vunpack.c.l.b16 %v2173
    %v3502 = vunpack.c.h.b16 %v2173
    %v3503 = vunpack.c.l.b16 %v2174
    %v3504 = vunpack.c.h.b16 %v2174
    %v3505 = vunpack.c.l.b16 %v2175
    %v3506 = vunpack.c.h.b16 %v2175
    %v3507 = vunpack.c.l.b16 %v2176
    %v3508 = vunpack.c.h.b16 %v2176
    %v3509 = vunpack.c.l.b16 %v2177
    %v3510 = vunpack.c.h.b16 %v2177
    %v3511 = vunpack.c.l.b16 %v2178
    %v3512 = vunpack.c.h.b16 %v2178
    %v3513 = vunpack.c.l.b16 %v2179
    %v3514 = vunpack.c.h.b16 %v2179
    %v3515 = vunpack.c.l.b16 %v2180
    %v3516 = vunpack.c.h.b16 %v2180
    %v3517 = vunpack.c.l.b16 %v2181
    %v3518 = vunpack.c.h.b16 %v2181
    %v3519 = vunpack.c.l.b16 %v2182
    %v3520 = vunpack.c.h.b16 %v2182
    %v3521 = vunpack.c.l.b16 %v2183
    %v3522 = vunpack.c.h.b16 %v2183
    %v3523 = vunpack.c.l.b16 %v2184
    %v3524 = vunpack.c.h.b16 %v2184
    %v3525 = vunpack.c.l.b16 %v2185
    %v3526 = vunpack.c.h.b16 %v2185
    %v3527 = vunpack.c.l.b16 %v2186
    %v3528 = vunpack.c.h.b16 %v2186
    %v3529 = vunpack.c.l.b16 %v2187
    %v3530 = vunpack.c.h.b16 %v2187
    %v3531 = vunpack.c.l.b16 %v2188
    %v3532 = vunpack.c.h.b16 %v2188
    %v3533 = vunpack.c.l.b16 %v2189
    %v3534 = vunpack.c.h.b16 %v2189
    %v3535 = vunpack.c.l.b16 %v2190
    %v3536 = vunpack.c.h.b16 %v2190
    %v3537 = vunpack.c.l.b16 %v2191
    %v3538 = vunpack.c.h.b16 %v2191
    %v3539 = vunpack.c.l.b16 %v2192
    %v3540 = vunpack.c.h.b16 %v2192
    %v3541 = vunpack.c.l.b16 %v2193
    %v3542 = vunpack.c.h.b16 %v2193
    %v3543 = vunpack.c.l.b16 %v2194
    %v3544 = vunpack.c.h.b16 %v2194
    %v3545 = vunpack.c.l.b16 %v2195
    %v3546 = vunpack.c.h.b16 %v2195
    %v3547 = vunpack.c.l.b16 %v2196
    %v3548 = vunpack.c.h.b16 %v2196
    %v3549 = vunpack.c.l.b16 %v2197
    %v3550 = vunpack.c.h.b16 %v2197
    %v3551 = vunpack.c.l.b16 %v2198
    %v3552 = vunpack.c.h.b16 %v2198
    %v3553 = vunpack.c.l.b16 %v2199
    %v3554 = vunpack.c.h.b16 %v2199
    %v3555 = vunpack.c.l.b16 %v2200
    %v3556 = vunpack.c.h.b16 %v2200
    %v3557 = vunpack.c.l.b16 %v2201
    %v3558 = vunpack.c.h.b16 %v2201
    %v3559 = vunpack.c.l.b16 %v2202
    %v3560 = vunpack.c.h.b16 %v2202
    %v3561 = vunpack.c.l.b16 %v2203
    %v3562 = vunpack.c.h.b16 %v2203
    %v3563 = vunpack.c.l.b16 %v2204
    %v3564 = vunpack.c.h.b16 %v2204
    %v3565 = vunpack.c.l.b16 %v2205
    %v3566 = vunpack.c.h.b16 %v2205
    %v3567 = vunpack.c.l.b16 %v2206
    %v3568 = vunpack.c.h.b16 %v2206
    %v3569 = vunpack.c.l.b16 %v2207
    %v3570 = vunpack.c.h.b16 %v2207
    %v3571 = vunpack.c.l.b16 %v2208
    %v3572 = vunpack.c.h.b16 %v2208
    %v3573 = vunpack.c.l.b16 %v2209
    %v3574 = vunpack.c.h.b16 %v2209
    %v3575 = vunpack.c.l.b16 %v2210
    %v3576 = vunpack.c.h.b16 %v2210
    %v3577 = vunpack.c.l.b16 %v2211
    %v3578 = vunpack.c.h.b16 %v2211
    %v3579 = vunpack.c.l.b16 %v2212
    %v3580 = vunpack.c.h.b16 %v2212
    %v3581 = vunpack.c.l.b16 %v2213
    %v3582 = vunpack.c.h.b16 %v2213
    %v3583 = vunpack.c.l.b16 %v2214
    %v3584 = vunpack.c.h.b16 %v2214
    %v3585 = vunpack.c.l.b16 %v2215
    %v3586 = vunpack.c.h.b16 %v2215
    %v3587 = vunpack.c.l.b16 %v2216
    %v3588 = vunpack.c.h.b16 %v2216
    %v3589 = vunpack.c.l.b16 %v2217
    %v3590 = vunpack.c.h.b16 %v2217
    %v3591 = vunpack.c.l.b16 %v2218
    %v3592 = vunpack.c.h.b16 %v2218
    %v3593 = vunpack.c.l.b16 %v2219
    %v3594 = vunpack.c.h.b16 %v2219
    %v3595 = vunpack.c.l.b16 %v2220
    %v3596 = vunpack.c.h.b16 %v2220
    %v3597 = vunpack.c.l.b16 %v2221
    %v3598 = vunpack.c.h.b16 %v2221
    %v3599 = vunpack.c.l.b16 %v2222
    %v3600 = vunpack.c.h.b16 %v2222
    %v3601 = vunpack.c.l.b16 %v2223
    %v3602 = vunpack.c.h.b16 %v2223
    %v3603 = vunpack.c.l.b16 %v2224
    %v3604 = vunpack.c.h.b16 %v2224
    %v3605 = vunpack.c.l.b16 %v2225
    %v3606 = vunpack.c.h.b16 %v2225
    %v3607 = vunpack.c.l.b16 %v2226
    %v3608 = vunpack.c.h.b16 %v2226
    %v3609 = vunpack.c.l.b16 %v2227
    %v3610 = vunpack.c.h.b16 %v2227
    %v3611 = vunpack.c.l.b16 %v2228
    %v3612 = vunpack.c.h.b16 %v2228
    %v3613 = vunpack.c.l.b16 %v2229
    %v3614 = vunpack.c.h.b16 %v2229
    %v3615 = vunpack.c.l.b16 %v2230
    %v3616 = vunpack.c.h.b16 %v2230
    %v3617 = vunpack.c.l.b16 %v2231
    %v3618 = vunpack.c.h.b16 %v2231
    %v3619 = vunpack.c.l.b16 %v2232
    %v3620 = vunpack.c.h.b16 %v2232
    %v3621 = vunpack.c.l.b16 %v2233
    %v3622 = vunpack.c.h.b16 %v2233
    %v3623 = vunpack.c.l.b16 %v2234
    %v3624 = vunpack.c.h.b16 %v2234
    %v3625 = vunpack.c.l.b16 %v2235
    %v3626 = vunpack.c.h.b16 %v2235
    %v3627 = vunpack.c.l.b16 %v2236
    %v3628 = vunpack.c.h.b16 %v2236
    %v3629 = vunpack.c.l.b16 %v2237
    %v3630 = vunpack.c.h.b16 %v2237
    %v3631 = vunpack.c.l.b16 %v2238
    %v3632 = vunpack.c.h.b16 %v2238
    %v3633 = vunpack.c.l.b16 %v2239
    %v3634 = vunpack.c.h.b16 %v2239
    %v3635 = vunpack.c.l.b16 %v2240
    %v3636 = vunpack.c.h.b16 %v2240
    %v3637 = vunpack.c.l.b16 %v2241
    %v3638 = vunpack.c.h.b16 %v2241
    %v3639 = vunpack.c.l.b16 %v2242
    %v3640 = vunpack.c.h.b16 %v2242
    %v3641 = vunpack.c.l.b16 %v2243
    %v3642 = vunpack.c.h.b16 %v2243
    %v3643 = vunpack.c.l.b16 %v2244
    %v3644 = vunpack.c.h.b16 %v2244
    %v3645 = vunpack.c.l.b16 %v2245
    %v3646 = vunpack.c.h.b16 %v2245
    %v3647 = vunpack.c.l.b16 %v2246
    %v3648 = vunpack.c.h.b16 %v2246
    %v3649 = vunpack.c.l.b16 %v2247
    %v3650 = vunpack.c.h.b16 %v2247
    %v3651 = vunpack.c.l.b16 %v2248
    %v3652 = vunpack.c.h.b16 %v2248
    %v3653 = vunpack.c.l.b16 %v2249
    %v3654 = vunpack.c.h.b16 %v2249
    %v3655 = vunpack.c.l.b16 %v2250
    %v3656 = vunpack.c.h.b16 %v2250
    %v3657 = vunpack.c.l.b16 %v2251
    %v3658 = vunpack.c.h.b16 %v2251
    %v3659 = vunpack.c.l.b16 %v2252
    %v3660 = vunpack.c.h.b16 %v2252
    %v3661 = vunpack.c.l.b16 %v2253
    %v3662 = vunpack.c.h.b16 %v2253
    %v3663 = vunpack.c.l.b16 %v2254
    %v3664 = vunpack.c.h.b16 %v2254
    %v3665 = vunpack.c.l.b16 %v2255
    %v3666 = vunpack.c.h.b16 %v2255
    %v3667 = vunpack.c.l.b16 %v2256
    %v3668 = vunpack.c.h.b16 %v2256
    %v3669 = vunpack.c.l.b16 %v2257
    %v3670 = vunpack.c.h.b16 %v2257
    %v3671 = vunpack.c.l.b16 %v2258
    %v3672 = vunpack.c.h.b16 %v2258
    %v3673 = vunpack.c.l.b16 %v2259
    %v3674 = vunpack.c.h.b16 %v2259
    %v3675 = vunpack.c.l.b16 %v2260
    %v3676 = vunpack.c.h.b16 %v2260
    %v3677 = vunpack.c.l.b16 %v2261
    %v3678 = vunpack.c.h.b16 %v2261
    %v3679 = vunpack.c.l.b16 %v2262
    %v3680 = vunpack.c.h.b16 %v2262
    %v3681 = vunpack.c.l.b16 %v2263
    %v3682 = vunpack.c.h.b16 %v2263
    %v3683 = vunpack.c.l.b16 %v2264
    %v3684 = vunpack.c.h.b16 %v2264
    %v3685 = vunpack.c.l.b16 %v2265
    %v3686 = vunpack.c.h.b16 %v2265
    %v3687 = vunpack.c.l.b16 %v2266
    %v3688 = vunpack.c.h.b16 %v2266
    %v3689 = vunpack.c.l.b16 %v2267
    %v3690 = vunpack.c.h.b16 %v2267
    %v3691 = vunpack.c.l.b16 %v2268
    %v3692 = vunpack.c.h.b16 %v2268
    %v3693 = vunpack.c.l.b16 %v2269
    %v3694 = vunpack.c.h.b16 %v2269
    %v3695 = vunpack.c.l.b16 %v2270
    %v3696 = vunpack.c.h.b16 %v2270
    %v3697 = vunpack.c.l.b16 %v2271
    %v3698 = vunpack.c.h.b16 %v2271
    %v3699 = vunpack.c.l.b16 %v2272
    %v3700 = vunpack.c.h.b16 %v2272
    %v3701 = vunpack.c.l.b16 %v2273
    %v3702 = vunpack.c.h.b16 %v2273
    %v3703 = vunpack.c.l.b16 %v2274
    %v3704 = vunpack.c.h.b16 %v2274
    %v3705 = vunpack.c.l.b16 %v2275
    %v3706 = vunpack.c.h.b16 %v2275
    %v3707 = vunpack.c.l.b16 %v2276
    %v3708 = vunpack.c.h.b16 %v2276
    %v3709 = vunpack.c.l.b16 %v2277
    %v3710 = vunpack.c.h.b16 %v2277
    %v3711 = vunpack.c.l.b16 %v2278
    %v3712 = vunpack.c.h.b16 %v2278
    %v3713 = vunpack.c.l.b16 %v2279
    %v3714 = vunpack.c.h.b16 %v2279
    %v3715 = vunpack.c.l.b16 %v2280
    %v3716 = vunpack.c.h.b16 %v2280
    %v3717 = vunpack.c.l.b16 %v2281
    %v3718 = vunpack.c.h.b16 %v2281
    %v3719 = vunpack.c.l.b16 %v2282
    %v3720 = vunpack.c.h.b16 %v2282
    %v3721 = vunpack.c.l.b16 %v2283
    %v3722 = vunpack.c.h.b16 %v2283
    %v3723 = vunpack.c.l.b16 %v2284
    %v3724 = vunpack.c.h.b16 %v2284
    %v3725 = vunpack.c.l.b16 %v2285
    %v3726 = vunpack.c.h.b16 %v2285
    %v3727 = vunpack.c.l.b16 %v2286
    %v3728 = vunpack.c.h.b16 %v2286
    %v3729 = vunpack.c.l.b16 %v2287
    %v3730 = vunpack.c.h.b16 %v2287
    %v3731 = vunpack.c.l.b16 %v2288
    %v3732 = vunpack.c.h.b16 %v2288
    %v3733 = vunpack.c.l.b16 %v2289
    %v3734 = vunpack.c.h.b16 %v2289
    %v3735 = vunpack.c.l.b16 %v2290
    %v3736 = vunpack.c.h.b16 %v2290
    %v3737 = vunpack.c.l.b16 %v2291
    %v3738 = vunpack.c.h.b16 %v2291
    %v3739 = vunpack.c.l.b16 %v2292
    %v3740 = vunpack.c.h.b16 %v2292
    %v3741 = vunpack.c.l.b16 %v2293
    %v3742 = vunpack.c.h.b16 %v2293
    %v3743 = vunpack.c.l.b16 %v2294
    %v3744 = vunpack.c.h.b16 %v2294
    %v3745 = vunpack.c.l.b16 %v2295
    %v3746 = vunpack.c.h.b16 %v2295
    %v3747 = vunpack.c.l.b16 %v2296
    %v3748 = vunpack.c.h.b16 %v2296
    %v3749 = vunpack.c.l.b16 %v2297
    %v3750 = vunpack.c.h.b16 %v2297
    %v3751 = vunpack.c.l.b16 %v2298
    %v3752 = vunpack.c.h.b16 %v2298
    %v3753 = vunpack.c.l.b16 %v2299
    %v3754 = vunpack.c.h.b16 %v2299
    %v3755 = vunpack.c.l.b16 %v2300
    %v3756 = vunpack.c.h.b16 %v2300
    %v3757 = vunpack.c.l.b16 %v2301
    %v3758 = vunpack.c.h.b16 %v2301
    %v3759 = vunpack.c.l.b16 %v2302
    %v3760 = vunpack.c.h.b16 %v2302
    %v3761 = vunpack.c.l.b16 %v2303
    %v3762 = vunpack.c.h.b16 %v2303
    %v3763 = vunpack.c.l.b16 %v2304
    %v3764 = vunpack.c.h.b16 %v2304
    %v3765 = vunpack.c.l.b16 %v2305
    %v3766 = vunpack.c.h.b16 %v2305
    %v3767 = vunpack.c.l.b16 %v2306
    %v3768 = vunpack.c.h.b16 %v2306
    %v3769 = vunpack.c.l.b16 %v2307
    %v3770 = vunpack.c.h.b16 %v2307
    %v3771 = vunpack.c.l.b16 %v2308
    %v3772 = vunpack.c.h.b16 %v2308
    %v3773 = vunpack.c.l.b16 %v2309
    %v3774 = vunpack.c.h.b16 %v2309
    %v3775 = vunpack.c.l.b16 %v2310
    %v3776 = vunpack.c.h.b16 %v2310
    %v3777 = vunpack.c.l.b16 %v2311
    %v3778 = vunpack.c.h.b16 %v2311
    %v3779 = vunpack.c.l.b16 %v2312
    %v3780 = vunpack.c.h.b16 %v2312
    %v3781 = vunpack.c.l.b16 %v2313
    %v3782 = vunpack.c.h.b16 %v2313
    %v3783 = vunpack.c.l.b16 %v2314
    %v3784 = vunpack.c.h.b16 %v2314
    %v3785 = vunpack.c.l.b16 %v2315
    %v3786 = vunpack.c.h.b16 %v2315
    %v3787 = vunpack.c.l.b16 %v2316
    %v3788 = vunpack.c.h.b16 %v2316
    %v3789 = vunpack.c.l.b16 %v2317
    %v3790 = vunpack.c.h.b16 %v2317
    %v3791 = vunpack.c.l.b16 %v2318
    %v3792 = vunpack.c.h.b16 %v2318
    %v3793 = vunpack.c.l.b16 %v2319
    %v3794 = vunpack.c.h.b16 %v2319
    %v3795 = vunpack.c.l.b16 %v2320
    %v3796 = vunpack.c.h.b16 %v2320
    %v3797 = vunpack.c.l.b16 %v2321
    %v3798 = vunpack.c.h.b16 %v2321
    %v3799 = vunpack.c.l.b16 %v2322
    %v3800 = vunpack.c.h.b16 %v2322
    %v3801 = vunpack.c.l.b16 %v2323
    %v3802 = vunpack.c.h.b16 %v2323
    %v3803 = vunpack.c.l.b16 %v2324
    %v3804 = vunpack.c.h.b16 %v2324
    %v3805 = vunpack.c.l.b16 %v2325
    %v3806 = vunpack.c.h.b16 %v2325
    %v3807 = vunpack.c.l.b16 %v2326
    %v3808 = vunpack.c.h.b16 %v2326
    %v3809 = vunpack.c.l.b16 %v2327
    %v3810 = vunpack.c.h.b16 %v2327
    %v3811 = vunpack.c.l.b16 %v2328
    %v3812 = vunpack.c.h.b16 %v2328
    %v3813 = vunpack.c.l.b16 %v2329
    %v3814 = vunpack.c.h.b16 %v2329
    %v3815 = vunpack.c.l.b16 %v2330
    %v3816 = vunpack.c.h.b16 %v2330
    %v3817 = vunpack.c.l.b16 %v2331
    %v3818 = vunpack.c.h.b16 %v2331
    %v3819 = vunpack.c.l.b16 %v2332
    %v3820 = vunpack.c.h.b16 %v2332
    %v3821 = vunpack.c.l.b16 %v2333
    %v3822 = vunpack.c.h.b16 %v2333
    %v3823 = vunpack.c.l.b16 %v2334
    %v3824 = vunpack.c.h.b16 %v2334
    %v3825 = vunpack.c.l.b16 %v2335
    %v3826 = vunpack.c.h.b16 %v2335
    %v3827 = vunpack.c.l.b16 %v2336
    %v3828 = vunpack.c.h.b16 %v2336
    %v3829 = vunpack.c.l.b16 %v2337
    %v3830 = vunpack.c.h.b16 %v2337
    %v3831 = vunpack.c.l.b16 %v2338
    %v3832 = vunpack.c.h.b16 %v2338
    %v3833 = vunpack.c.l.b16 %v2339
    %v3834 = vunpack.c.h.b16 %v2339
    %v3835 = vunpack.c.l.b16 %v2340
    %v3836 = vunpack.c.h.b16 %v2340
    %v3837 = vunpack.c.l.b16 %v2341
    %v3838 = vunpack.c.h.b16 %v2341
    %v3839 = vunpack.c.l.b16 %v2342
    %v3840 = vunpack.c.h.b16 %v2342
    %v3841 = vunpack.c.l.b16 %v2343
    %v3842 = vunpack.c.h.b16 %v2343
    %v3843 = vunpack.c.l.b16 %v2344
    %v3844 = vunpack.c.h.b16 %v2344
    %v3845 = vunpack.c.l.b16 %v2345
    %v3846 = vunpack.c.h.b16 %v2345
    %v3847 = vunpack.c.l.b16 %v2346
    %v3848 = vunpack.c.h.b16 %v2346
    %v3849 = vunpack.c.l.b16 %v2347
    %v3850 = vunpack.c.h.b16 %v2347
    %v3851 = vunpack.c.l.b16 %v2348
    %v3852 = vunpack.c.h.b16 %v2348
    %v3853 = vunpack.c.l.b16 %v2349
    %v3854 = vunpack.c.h.b16 %v2349
    %v3855 = vunpack.c.l.b16 %v2350
    %v3856 = vunpack.c.h.b16 %v2350
    %v3857 = vunpack.c.l.b16 %v2351
    %v3858 = vunpack.c.h.b16 %v2351
    %v3859 = vunpack.c.l.b16 %v2352
    %v3860 = vunpack.c.h.b16 %v2352
    %v3861 = vunpack.c.l.b16 %v2353
    %v3862 = vunpack.c.h.b16 %v2353
    %v3863 = vunpack.c.l.b16 %v2354
    %v3864 = vunpack.c.h.b16 %v2354
    %v3865 = vunpack.c.l.b16 %v2355
    %v3866 = vunpack.c.h.b16 %v2355
    %v3867 = vunpack.c.l.b16 %v2356
    %v3868 = vunpack.c.h.b16 %v2356
    %v3869 = vunpack.c.l.b16 %v2357
    %v3870 = vunpack.c.h.b16 %v2357
    %v3871 = vunpack.c.l.b16 %v2358
    %v3872 = vunpack.c.h.b16 %v2358
    %v3873 = vunpack.c.l.b16 %v2359
    %v3874 = vunpack.c.h.b16 %v2359
    %v3875 = vunpack.c.l.b16 %v2360
    %v3876 = vunpack.c.h.b16 %v2360
    %v3877 = vunpack.c.l.b16 %v2361
    %v3878 = vunpack.c.h.b16 %v2361
    %v3879 = vunpack.c.l.b16 %v2362
    %v3880 = vunpack.c.h.b16 %v2362
    %v3881 = vunpack.c.l.b16 %v2363
    %v3882 = vunpack.c.h.b16 %v2363
    %v3883 = vunpack.c.l.b16 %v2364
    %v3884 = vunpack.c.h.b16 %v2364
    %v3885 = vunpack.c.l.b16 %v2365
    %v3886 = vunpack.c.h.b16 %v2365
    %v3887 = vunpack.c.l.b16 %v2366
    %v3888 = vunpack.c.h.b16 %v2366
    %v3889 = vunpack.c.l.b16 %v2367
    %v3890 = vunpack.c.h.b16 %v2367
    %v3891 = vunpack.c.l.b16 %v2368
    %v3892 = vunpack.c.h.b16 %v2368
    %v3893 = vunpack.c.l.b16 %v2369
    %v3894 = vunpack.c.h.b16 %v2369
    %v3895 = vunpack.c.l.b16 %v2370
    %v3896 = vunpack.c.h.b16 %v2370
    %v3897 = vunpack.c.l.b16 %v2371
    %v3898 = vunpack.c.h.b16 %v2371
    %v3899 = vunpack.c.l.b16 %v2372
    %v3900 = vunpack.c.h.b16 %v2372
    %v3901 = vunpack.c.l.b16 %v2373
    %v3902 = vunpack.c.h.b16 %v2373
    %v3903 = vunpack.c.l.b16 %v2374
    %v3904 = vunpack.c.h.b16 %v2374
    %v3905 = vunpack.c.l.b16 %v2375
    %v3906 = vunpack.c.h.b16 %v2375
    %v3907 = vunpack.c.l.b16 %v2376
    %v3908 = vunpack.c.h.b16 %v2376
    %v3909 = vunpack.c.l.b16 %v2377
    %v3910 = vunpack.c.h.b16 %v2377
    %v3911 = vunpack.c.l.b16 %v2378
    %v3912 = vunpack.c.h.b16 %v2378
    %v3913 = vunpack.c.l.b16 %v2379
    %v3914 = vunpack.c.h.b16 %v2379
    %v3915 = vunpack.c.l.b16 %v2380
    %v3916 = vunpack.c.h.b16 %v2380
    %v3917 = vunpack.c.l.b16 %v2381
    %v3918 = vunpack.c.h.b16 %v2381
    %v3919 = vunpack.c.l.b16 %v2382
    %v3920 = vunpack.c.h.b16 %v2382
    %v3921 = vunpack.c.l.b16 %v2383
    %v3922 = vunpack.c.h.b16 %v2383
    %v3923 = vunpack.c.l.b16 %v2384
    %v3924 = vunpack.c.h.b16 %v2384
    %v3925 = vunpack.c.l.b16 %v2385
    %v3926 = vunpack.c.h.b16 %v2385
    %v3927 = vunpack.c.l.b16 %v2386
    %v3928 = vunpack.c.h.b16 %v2386
    %v3929 = vunpack.c.l.b16 %v2387
    %v3930 = vunpack.c.h.b16 %v2387
    %v3931 = vunpack.c.l.b16 %v2388
    %v3932 = vunpack.c.h.b16 %v2388
    %v3933 = vunpack.c.l.b16 %v2389
    %v3934 = vunpack.c.h.b16 %v2389
    %v3935 = vunpack.c.l.b16 %v2390
    %v3936 = vunpack.c.h.b16 %v2390
    %v3937 = vunpack.c.l.b16 %v2391
    %v3938 = vunpack.c.h.b16 %v2391
    %v3939 = vunpack.c.l.b16 %v2392
    %v3940 = vunpack.c.h.b16 %v2392
    %v3941 = vunpack.c.l.b16 %v2393
    %v3942 = vunpack.c.h.b16 %v2393
    %v3943 = vunpack.c.l.b16 %v2394
    %v3944 = vunpack.c.h.b16 %v2394
    %v3945 = vunpack.c.l.b16 %v2395
    %v3946 = vunpack.c.h.b16 %v2395
    %v3947 = vunpack.c.l.b16 %v2396
    %v3948 = vunpack.c.h.b16 %v2396
    %v3949 = vunpack.c.l.b16 %v2397
    %v3950 = vunpack.c.h.b16 %v2397
    %v3951 = vunpack.c.l.b16 %v2398
    %v3952 = vunpack.c.h.b16 %v2398
    %v3953 = vunpack.c.l.b16 %v2399
    %v3954 = vunpack.c.h.b16 %v2399
    %v3955 = vunpack.c.l.b16 %v2400
    %v3956 = vunpack.c.h.b16 %v2400
    %v3957 = vunpack.c.l.b16 %v2401
    %v3958 = vunpack.c.h.b16 %v2401
    %v3959 = vunpack.c.l.b16 %v2402
    %v3960 = vunpack.c.h.b16 %v2402
    %v3961 = vunpack.c.l.b16 %v2403
    %v3962 = vunpack.c.h.b16 %v2403
    %v3963 = vunpack.c.l.b16 %v2404
    %v3964 = vunpack.c.h.b16 %v2404
    %v3965 = vunpack.c.l.b16 %v2405
    %v3966 = vunpack.c.h.b16 %v2405
    %v3967 = vunpack.c.l.b16 %v2406
    %v3968 = vunpack.c.h.b16 %v2406
    %v3969 = vunpack.c.l.b16 %v2407
    %v3970 = vunpack.c.h.b16 %v2407
    %v3971 = vunpack.c.l.b16 %v2408
    %v3972 = vunpack.c.h.b16 %v2408
    %v3973 = vunpack.c.l.b16 %v2409
    %v3974 = vunpack.c.h.b16 %v2409
    %v3975 = vunpack.c.l.b16 %v2410
    %v3976 = vunpack.c.h.b16 %v2410
    %v3977 = vunpack.c.l.b16 %v2411
    %v3978 = vunpack.c.h.b16 %v2411
    %v3979 = vunpack.c.l.b16 %v2412
    %v3980 = vunpack.c.h.b16 %v2412
    %v3981 = vunpack.c.l.b16 %v2413
    %v3982 = vunpack.c.h.b16 %v2413
    %v3983 = vunpack.c.l.b16 %v2414
    %v3984 = vunpack.c.h.b16 %v2414
    %v3985 = vunpack.c.l.b16 %v2415
    %v3986 = vunpack.c.h.b16 %v2415
    %v3987 = vunpack.c.l.b16 %v2416
    %v3988 = vunpack.c.h.b16 %v2416
    %v3989 = vunpack.c.l.b16 %v2417
    %v3990 = vunpack.c.h.b16 %v2417
    %v3991 = vunpack.c.l.b16 %v2418
    %v3992 = vunpack.c.h.b16 %v2418
    %v3993 = vunpack.c.l.b16 %v2419
    %v3994 = vunpack.c.h.b16 %v2419
    %v3995 = vunpack.c.l.b16 %v2420
    %v3996 = vunpack.c.h.b16 %v2420
    %v3997 = vunpack.c.l.b16 %v2421
    %v3998 = vunpack.c.h.b16 %v2421
    %v3999 = vunpack.c.l.b16 %v2422
    %v4000 = vunpack.c.h.b16 %v2422
    %v4001 = vunpack.c.l.b16 %v2423
    %v4002 = vunpack.c.h.b16 %v2423
    %v4003 = vunpack.c.l.b16 %v2424
    %v4004 = vunpack.c.h.b16 %v2424
    %v4005 = vunpack.c.l.b16 %v2425
    %v4006 = vunpack.c.h.b16 %v2425
    %v4007 = vunpack.c.l.b16 %v2426
    %v4008 = vunpack.c.h.b16 %v2426
    %v4009 = vunpack.c.l.b16 %v2427
    %v4010 = vunpack.c.h.b16 %v2427
    %v4011 = vunpack.c.l.b16 %v2428
    %v4012 = vunpack.c.h.b16 %v2428
    %v4013 = vunpack.c.l.b16 %v2429
    %v4014 = vunpack.c.h.b16 %v2429
    %v4015 = vunpack.c.l.b16 %v2430
    %v4016 = vunpack.c.h.b16 %v2430
    %v4017 = vunpack.c.l.b16 %v2431
    %v4018 = vunpack.c.h.b16 %v2431
    %v4019 = vunpack.c.l.b16 %v2432
    %v4020 = vunpack.c.h.b16 %v2432
    %v4021 = vunpack.c.l.b16 %v2433
    %v4022 = vunpack.c.h.b16 %v2433
    %v4023 = vunpack.c.l.b16 %v2434
    %v4024 = vunpack.c.h.b16 %v2434
    %v4025 = vunpack.c.l.b16 %v2435
    %v4026 = vunpack.c.h.b16 %v2435
    %v4027 = vunpack.c.l.b16 %v2436
    %v4028 = vunpack.c.h.b16 %v2436
    %v4029 = vunpack.c.l.b16 %v2437
    %v4030 = vunpack.c.h.b16 %v2437
    %v4031 = vunpack.c.l.b16 %v2438
    %v4032 = vunpack.c.h.b16 %v2438
    %v4033 = vunpack.c.l.b16 %v2439
    %v4034 = vunpack.c.h.b16 %v2439
    %v4035 = vunpack.c.l.b16 %v2440
    %v4036 = vunpack.c.h.b16 %v2440
    %v4037 = vunpack.c.l.b16 %v2441
    %v4038 = vunpack.c.h.b16 %v2441
    %v4039 = vunpack.c.l.b16 %v2442
    %v4040 = vunpack.c.h.b16 %v2442
    %v4041 = vunpack.c.l.b16 %v2443
    %v4042 = vunpack.c.h.b16 %v2443
    %v4043 = vunpack.c.l.b16 %v2444
    %v4044 = vunpack.c.h.b16 %v2444
    %v4045 = vunpack.c.l.b16 %v2445
    %v4046 = vunpack.c.h.b16 %v2445
    %v4047 = vunpack.c.l.b16 %v2446
    %v4048 = vunpack.c.h.b16 %v2446
    %v4049 = vunpack.c.l.b16 %v2447
    %v4050 = vunpack.c.h.b16 %v2447
    %v4051 = vunpack.c.l.b16 %v2448
    %v4052 = vunpack.c.h.b16 %v2448
    %v4053 = vunpack.c.l.b16 %v2449
    %v4054 = vunpack.c.h.b16 %v2449
    %v4055 = vunpack.c.l.b16 %v2450
    %v4056 = vunpack.c.h.b16 %v2450
    %v4057 = vunpack.c.l.b16 %v2451
    %v4058 = vunpack.c.h.b16 %v2451
    %v4059 = vunpack.c.l.b16 %v2452
    %v4060 = vunpack.c.h.b16 %v2452
    %v4061 = vunpack.c.l.b16 %v2453
    %v4062 = vunpack.c.h.b16 %v2453
    %v4063 = vunpack.c.l.b16 %v2454
    %v4064 = vunpack.c.h.b16 %v2454
    %v4065 = vunpack.c.l.b16 %v2455
    %v4066 = vunpack.c.h.b16 %v2455
    %v4067 = vunpack.c.l.b16 %v2456
    %v4068 = vunpack.c.h.b16 %v2456
    %v4069 = vunpack.c.l.b16 %v2457
    %v4070 = vunpack.c.h.b16 %v2457
    %v4071 = vunpack.c.l.b16 %v2458
    %v4072 = vunpack.c.h.b16 %v2458
    %v4073 = vunpack.c.l.b16 %v2459
    %v4074 = vunpack.c.h.b16 %v2459
    %v4075 = vunpack.c.l.b16 %v2460
    %v4076 = vunpack.c.h.b16 %v2460
    %v4077 = vunpack.c.l.b16 %v2461
    %v4078 = vunpack.c.h.b16 %v2461
    %v4079 = vunpack.c.l.b16 %v2462
    %v4080 = vunpack.c.h.b16 %v2462
    %v4081 = vunpack.c.l.b16 %v2463
    %v4082 = vunpack.c.h.b16 %v2463
    %v4083 = vunpack.c.l.b16 %v2464
    %v4084 = vunpack.c.h.b16 %v2464
    %v4085 = vunpack.c.l.b16 %v2465
    %v4086 = vunpack.c.h.b16 %v2465
    %v4087 = vunpack.c.l.b16 %v2466
    %v4088 = vunpack.c.h.b16 %v2466
    %v4089 = vunpack.c.l.b16 %v2467
    %v4090 = vunpack.c.h.b16 %v2467
    %v4091 = vunpack.c.l.b16 %v2468
    %v4092 = vunpack.c.h.b16 %v2468
    %v4093 = vunpack.c.l.b16 %v2469
    %v4094 = vunpack.c.h.b16 %v2469
    %v4095 = vunpack.c.l.b16 %v2470
    %v4096 = vunpack.c.h.b16 %v2470
    %v4097 = vunpack.c.l.b16 %v2471
    %v4098 = vunpack.c.h.b16 %v2471
    %v4099 = vunpack.c.l.b16 %v2472
    %v4100 = vunpack.c.h.b16 %v2472
    %v4101 = vunpack.c.l.b16 %v2473
    %v4102 = vunpack.c.h.b16 %v2473
    %v4103 = vunpack.c.l.b16 %v2474
    %v4104 = vunpack.c.h.b16 %v2474
    %v4105 = vunpack.c.l.b16 %v2475
    %v4106 = vunpack.c.h.b16 %v2475
    %v4107 = vunpack.c.l.b16 %v2476
    %v4108 = vunpack.c.h.b16 %v2476
    %v4109 = vunpack.c.l.b16 %v2477
    %v4110 = vunpack.c.h.b16 %v2477
    %v4111 = vunpack.c.l.b16 %v2478
    %v4112 = vunpack.c.h.b16 %v2478
    %v4113 = vunpack.c.l.b16 %v2479
    %v4114 = vunpack.c.h.b16 %v2479
    %v4115 = vunpack.c.l.b16 %v2480
    %v4116 = vunpack.c.h.b16 %v2480
    %v4117 = vunpack.c.l.b16 %v2481
    %v4118 = vunpack.c.h.b16 %v2481
    %v4119 = vunpack.c.l.b16 %v2482
    %v4120 = vunpack.c.h.b16 %v2482
    %v4121 = vunpack.c.l.b16 %v2483
    %v4122 = vunpack.c.h.b16 %v2483
    %v4123 = vunpack.c.l.b16 %v2484
    %v4124 = vunpack.c.h.b16 %v2484
    %v4125 = vunpack.c.l.b16 %v2485
    %v4126 = vunpack.c.h.b16 %v2485
    %v4127 = vunpack.c.l.b16 %v2486
    %v4128 = vunpack.c.h.b16 %v2486
    %v4129 = vunpack.c.l.b16 %v2487
    %v4130 = vunpack.c.h.b16 %v2487
    %v4131 = vunpack.c.l.b16 %v2488
    %v4132 = vunpack.c.h.b16 %v2488
    %v4133 = vunpack.c.l.b16 %v2489
    %v4134 = vunpack.c.h.b16 %v2489
    %v4135 = vunpack.c.l.b16 %v2490
    %v4136 = vunpack.c.h.b16 %v2490
    %v4137 = vunpack.c.l.b16 %v2491
    %v4138 = vunpack.c.h.b16 %v2491
    %v4139 = vunpack.c.l.b16 %v2492
    %v4140 = vunpack.c.h.b16 %v2492
    %v4141 = vunpack.c.l.b16 %v2493
    %v4142 = vunpack.c.h.b16 %v2493
    %v4143 = vunpack.c.l.b16 %v2494
    %v4144 = vunpack.c.h.b16 %v2494
    %v4145 = vunpack.c.l.b16 %v2495
    %v4146 = vunpack.c.h.b16 %v2495
    %v4147 = vunpack.c.l.b16 %v2496
    %v4148 = vunpack.c.h.b16 %v2496
    %v4149 = vunpack.c.l.b16 %v2497
    %v4150 = vunpack.c.h.b16 %v2497
    %v4151 = vunpack.c.l.b16 %v2498
    %v4152 = vunpack.c.h.b16 %v2498
    %v4153 = vunpack.c.l.b16 %v2499
    %v4154 = vunpack.c.h.b16 %v2499
    %v4155 = vunpack.c.l.b16 %v2500
    %v4156 = vunpack.c.h.b16 %v2500
    %v4157 = vunpack.c.l.b16 %v2501
    %v4158 = vunpack.c.h.b16 %v2501
    %v4159 = vunpack.c.l.b16 %v2502
    %v4160 = vunpack.c.h.b16 %v2502
    %v4161 = vunpack.c.l.b16 %v2503
    %v4162 = vunpack.c.h.b16 %v2503
    %v4163 = vunpack.c.l.b16 %v2504
    %v4164 = vunpack.c.h.b16 %v2504
    %v4165 = vunpack.c.l.b16 %v2505
    %v4166 = vunpack.c.h.b16 %v2505
    %v4167 = vunpack.c.l.b16 %v2506
    %v4168 = vunpack.c.h.b16 %v2506
    %v4169 = vunpack.c.l.b16 %v2507
    %v4170 = vunpack.c.h.b16 %v2507
    %v4171 = vunpack.c.l.b16 %v2508
    %v4172 = vunpack.c.h.b16 %v2508
    %v4173 = vunpack.c.l.b16 %v2509
    %v4174 = vunpack.c.h.b16 %v2509
    %v4175 = vunpack.c.l.b16 %v2510
    %v4176 = vunpack.c.h.b16 %v2510
    %v4177 = vunpack.c.l.b16 %v2511
    %v4178 = vunpack.c.h.b16 %v2511
    %v4179 = vunpack.c.l.b16 %v2512
    %v4180 = vunpack.c.h.b16 %v2512
    %v4181 = vunpack.c.l.b16 %v2513
    %v4182 = vunpack.c.h.b16 %v2513
    %v4183 = vunpack.c.l.b16 %v2514
    %v4184 = vunpack.c.h.b16 %v2514
    %v4185 = vunpack.c.l.b16 %v2515
    %v4186 = vunpack.c.h.b16 %v2515
    %v4187 = vunpack.c.l.b16 %v2516
    %v4188 = vunpack.c.h.b16 %v2516
    %v4189 = vunpack.c.l.b16 %v2517
    %v4190 = vunpack.c.h.b16 %v2517
    %v4191 = vunpack.c.l.b16 %v2518
    %v4192 = vunpack.c.h.b16 %v2518
    %v4193 = vunpack.c.l.b16 %v2519
    %v4194 = vunpack.c.h.b16 %v2519
    %v4195 = vunpack.c.l.b16 %v2520
    %v4196 = vunpack.c.h.b16 %v2520
    %v4197 = vunpack.c.l.b16 %v2521
    %v4198 = vunpack.c.h.b16 %v2521
    %v4199 = vpack.c.b16 %v3437, %v3431
    %v4200 = vpack.c.b16 %v3438, %v3432
    %v4201 = vpack.c.b16 %v3439, %v3433
    %v4202 = vpack.c.b16 %v3440, %v3434
    %v4203 = vpack.c.b16 %v3441, %v3435
    %v4204 = vpack.c.b16 %v3442, %v3436
    %v4205 = vpack.c.b16 %v3449, %v3443
    %v4206 = vpack.c.b16 %v3450, %v3444
    %v4207 = vpack.c.b16 %v3451, %v3445
    %v4208 = vpack.c.b16 %v3452, %v3446
    %v4209 = vpack.c.b16 %v3453, %v3447
    %v4210 = vpack.c.b16 %v3454, %v3448
    %v4211 = vpack.c.b16 %v3461, %v3455
    %v4212 = vpack.c.b16 %v3462, %v3456
    %v4213 = vpack.c.b16 %v3463, %v3457
    %v4214 = vpack.c.b16 %v3464, %v3458
    %v4215 = vpack.c.b16 %v3465, %v3459
    %v4216 = vpack.c.b16 %v3466, %v3460
    %v4217 = vpack.c.b16 %v3473, %v3467
    %v4218 = vpack.c.b16 %v3474, %v3468
    %v4219 = vpack.c.b16 %v3475, %v3469
    %v4220 = vpack.c.b16 %v3476, %v3470
    %v4221 = vpack.c.b16 %v3477, %v3471
    %v4222 = vpack.c.b16 %v3478, %v3472
    %v4223 = vpack.c.b16 %v3485, %v3479
    %v4224 = vpack.c.b16 %v3486, %v3480
    %v4225 = vpack.c.b16 %v3487, %v3481
    %v4226 = vpack.c.b16 %v3488, %v3482
    %v4227 = vpack.c.b16 %v3489, %v3483
    %v4228 = vpack.c.b16 %v3490, %v3484
    %v4229 = vpack.c.b16 %v3497, %v3491
    %v4230 = vpack.c.b16 %v3498, %v3492
    %v4231 = vpack.c.b16 %v3499, %v3493
    %v4232 = vpack.c.b16 %v3500, %v3494
    %v4233 = vpack.c.b16 %v3501, %v3495
    %v4234 = vpack.c.b16 %v3502, %v3496
    %v4235 = vpack.c.b16 %v3509, %v3503
    %v4236 = vpack.c.b16 %v3510, %v3504
    %v4237 = vpack.c.b16 %v3511, %v3505
    %v4238 = vpack.c.b16 %v3512, %v3506
    %v4239 = vpack.c.b16 %v3513, %v3507
    %v4240 = vpack.c.b16 %v3514, %v3508
    %v4241 = vpack.c.b16 %v3521, %v3515
    %v4242 = vpack.c.b16 %v3522, %v3516
    %v4243 = vpack.c.b16 %v3523, %v3517
    %v4244 = vpack.c.b16 %v3524, %v3518
    %v4245 = vpack.c.b16 %v3525, %v3519
    %v4246 = vpack.c.b16 %v3526, %v3520
    %v4247 = vpack.c.b16 %v3533, %v3527
    %v4248 = vpack.c.b16 %v3534, %v3528
    %v4249 = vpack.c.b16 %v3535, %v3529
    %v4250 = vpack.c.b16 %v3536, %v3530
    %v4251 = vpack.c.b16 %v3537, %v3531
    %v4252 = vpack.c.b16 %v3538, %v3532
    %v4253 = vpack.c.b16 %v3545, %v3539
    %v4254 = vpack.c.b16 %v3546, %v3540
    %v4255 = vpack.c.b16 %v3547, %v3541
    %v4256 = vpack.c.b16 %v3548, %v3542
    %v4257 = vpack.c.b16 %v3549, %v3543
    %v4258 = vpack.c.b16 %v3550, %v3544
    %v4259 = vpack.c.b16 %v3557, %v3551
    %v4260 = vpack.c.b16 %v3558, %v3552
    %v4261 = vpack.c.b16 %v3559, %v3553
    %v4262 = vpack.c.b16 %v3560, %v3554
    %v4263 = vpack.c.b16 %v3561, %v3555
    %v4264 = vpack.c.b16 %v3562, %v3556
    %v4265 = vpack.c.b16 %v3569, %v3563
    %v4266 = vpack.c.b16 %v3570, %v3564
    %v4267 = vpack.c.b16 %v3571, %v3565
    %v4268 = vpack.c.b16 %v3572, %v3566
    %v4269 = vpack.c.b16 %v3573, %v3567
    %v4270 = vpack.c.b16 %v3574, %v3568
    %v4271 = vpack.c.b16 %v3581, %v3575
    %v4272 = vpack.c.b16 %v3582, %v3576
    %v4273 = vpack.c.b16 %v3583, %v3577
    %v4274 = vpack.c.b16 %v3584, %v3578
    %v4275 = vpack.c.b16 %v3585, %v3579
    %v4276 = vpack.c.b16 %v3586, %v3580
    %v4277 = vpack.c.b16 %v3593, %v3587
    %v4278 = vpack.c.b16 %v3594, %v3588
    %v4279 = vpack.c.b16 %v3595, %v3589
    %v4280 = vpack.c.b16 %v3596, %v3590
    %v4281 = vpack.c.b16 %v3597, %v3591
    %v4282 = vpack.c.b16 %v3598, %v3592
    %v4283 = vpack.c.b16 %v3605, %v3599
    %v4284 = vpack.c.b16 %v3606, %v3600
    %v4285 = vpack.c.b16 %v3607, %v3601
    %v4286 = vpack.c.b16 %v3608, %v3602
    %v4287 = vpack.c.b16 %v3609, %v3603
    %v4288 = vpack.c.b16 %v3610, %v3604
    %v4289 = vpack.c.b16 %v3617, %v3611
    %v4290 = vpack.c.b16 %v3618, %v3612
    %v4291 = vpack.c.b16 %v3619, %v3613
    %v4292 = vpack.c.b16 %v3620, %v3614
    %v4293 = vpack.c.b16 %v3621, %v3615
    %v4294 = vpack.c.b16 %v3622, %v3616
    %v4295 = vpack.c.b16 %v3629, %v3623
    %v4296 = vpack.c.b16 %v3630, %v3624
    %v4297 = vpack.c.b16 %v3631, %v3625
    %v4298 = vpack.c.b16 %v3632, %v3626
    %v4299 = vpack.c.b16 %v3633, %v3627
    %v4300 = vpack.c.b16 %v3634, %v3628
    %v4301 = vpack.c.b16 %v3641, %v3635
    %v4302 = vpack.c.b16 %v3642, %v3636
    %v4303 = vpack.c.b16 %v3643, %v3637
    %v4304 = vpack.c.b16 %v3644, %v3638
    %v4305 = vpack.c.b16 %v3645, %v3639
    %v4306 = vpack.c.b16 %v3646, %v3640
    %v4307 = vpack.c.b16 %v3653, %v3647
    %v4308 = vpack.c.b16 %v3654, %v3648
    %v4309 = vpack.c.b16 %v3655, %v3649
    %v4310 = vpack.c.b16 %v3656, %v3650
    %v4311 = vpack.c.b16 %v3657, %v3651
    %v4312 = vpack.c.b16 %v3658, %v3652
    %v4313 = vpack.c.b16 %v3665, %v3659
    %v4314 = vpack.c.b16 %v3666, %v3660
    %v4315 = vpack.c.b16 %v3667, %v3661
    %v4316 = vpack.c.b16 %v3668, %v3662
    %v4317 = vpack.c.b16 %v3669, %v3663
    %v4318 = vpack.c.b16 %v3670, %v3664
    %v4319 = vpack.c.b16 %v3677, %v3671
    %v4320 = vpack.c.b16 %v3678, %v3672
    %v4321 = vpack.c.b16 %v3679, %v3673
    %v4322 = vpack.c.b16 %v3680, %v3674
    %v4323 = vpack.c.b16 %v3681, %v3675
    %v4324 = vpack.c.b16 %v3682, %v3676
    %v4325 = vpack.c.b16 %v3689, %v3683
    %v4326 = vpack.c.b16 %v3690, %v3684
    %v4327 = vpack.c.b16 %v3691, %v3685
    %v4328 = vpack.c.b16 %v3692, %v3686
    %v4329 = vpack.c.b16 %v3693, %v3687
    %v4330 = vpack.c.b16 %v3694, %v3688
    %v4331 = vpack.c.b16 %v3701, %v3695
    %v4332 = vpack.c.b16 %v3702, %v3696
    %v4333 = vpack.c.b16 %v3703, %v3697
    %v4334 = vpack.c.b16 %v3704, %v3698
    %v4335 = vpack.c.b16 %v3705, %v3699
    %v4336 = vpack.c.b16 %v3706, %v3700
    %v4337 = vpack.c.b16 %v3713, %v3707
    %v4338 = vpack.c.b16 %v3714, %v3708
    %v4339 = vpack.c.b16 %v3715, %v3709
    %v4340 = vpack.c.b16 %v3716, %v3710
    %v4341 = vpack.c.b16 %v3717, %v3711
    %v4342 = vpack.c.b16 %v3718, %v3712
    %v4343 = vpack.c.b16 %v3725, %v3719
    %v4344 = vpack.c.b16 %v3726, %v3720
    %v4345 = vpack.c.b16 %v3727, %v3721
    %v4346 = vpack.c.b16 %v3728, %v3722
    %v4347 = vpack.c.b16 %v3729, %v3723
    %v4348 = vpack.c.b16 %v3730, %v3724
    %v4349 = vpack.c.b16 %v3737, %v3731
    %v4350 = vpack.c.b16 %v3738, %v3732
    %v4351 = vpack.c.b16 %v3739, %v3733
    %v4352 = vpack.c.b16 %v3740, %v3734
    %v4353 = vpack.c.b16 %v3741, %v3735
    %v4354 = vpack.c.b16 %v3742, %v3736
    %v4355 = vpack.c.b16 %v3749, %v3743
    %v4356 = vpack.c.b16 %v3750, %v3744
    %v4357 = vpack.c.b16 %v3751, %v3745
    %v4358 = vpack.c.b16 %v3752, %v3746
    %v4359 = vpack.c.b16 %v3753, %v3747
    %v4360 = vpack.c.b16 %v3754, %v3748
    %v4361 = vpack.c.b16 %v3761, %v3755
    %v4362 = vpack.c.b16 %v3762, %v3756
    %v4363 = vpack.c.b16 %v3763, %v3757
    %v4364 = vpack.c.b16 %v3764, %v3758
    %v4365 = vpack.c.b16 %v3765, %v3759
    %v4366 = vpack.c.b16 %v3766, %v3760
    %v4367 = vpack.c.b16 %v3773, %v3767
    %v4368 = vpack.c.b16 %v3774, %v3768
    %v4369 = vpack.c.b16 %v3775, %v3769
    %v4370 = vpack.c.b16 %v3776, %v3770
    %v4371 = vpack.c.b16 %v3777, %v3771
    %v4372 = vpack.c.b16 %v3778, %v3772
    %v4373 = vpack.c.b16 %v3785, %v3779
    %v4374 = vpack.c.b16 %v3786, %v3780
    %v4375 = vpack.c.b16 %v3787, %v3781
    %v4376 = vpack.c.b16 %v3788, %v3782
    %v4377 = vpack.c.b16 %v3789, %v3783
    %v4378 = vpack.c.b16 %v3790, %v3784
    %v4379 = vpack.c.b16 %v3797, %v3791
    %v4380 = vpack.c.b16 %v3798, %v3792
    %v4381 = vpack.c.b16 %v3799, %v3793
    %v4382 = vpack.c.b16 %v3800, %v3794
    %v4383 = vpack.c.b16 %v3801, %v3795
    %v4384 = vpack.c.b16 %v3802, %v3796
    %v4385 = vpack.c.b16 %v3809, %v3803
    %v4386 = vpack.c.b16 %v3810, %v3804
    %v4387 = vpack.c.b16 %v3811, %v3805
    %v4388 = vpack.c.b16 %v3812, %v3806
    %v4389 = vpack.c.b16 %v3813, %v3807
    %v4390 = vpack.c.b16 %v3814, %v3808
    %v4391 = vpack.c.b16 %v3821, %v3815
    %v4392 = vpack.c.b16 %v3822, %v3816
    %v4393 = vpack.c.b16 %v3823, %v3817
    %v4394 = vpack.c.b16 %v3824, %v3818
    %v4395 = vpack.c.b16 %v3825, %v3819
    %v4396 = vpack.c.b16 %v3826, %v3820
    %v4397 = vpack.c.b16 %v3833, %v3827
    %v4398 = vpack.c.b16 %v3834, %v3828
    %v4399 = vpack.c.b16 %v3835, %v3829
    %v4400 = vpack.c.b16 %v3836, %v3830
    %v4401 = vpack.c.b16 %v3837, %v3831
    %v4402 = vpack.c.b16 %v3838, %v3832
    %v4403 = vpack.c.b16 %v3845, %v3839
    %v4404 = vpack.c.b16 %v3846, %v3840
    %v4405 = vpack.c.b16 %v3847, %v3841
    %v4406 = vpack.c.b16 %v3848, %v3842
    %v4407 = vpack.c.b16 %v3849, %v3843
    %v4408 = vpack.c.b16 %v3850, %v3844
    %v4409 = vpack.c.b16 %v3857, %v3851
    %v4410 = vpack.c.b16 %v3858, %v3852
    %v4411 = vpack.c.b16 %v3859, %v3853
    %v4412 = vpack.c.b16 %v3860, %v3854
    %v4413 = vpack.c.b16 %v3861, %v3855
    %v4414 = vpack.c.b16 %v3862, %v3856
    %v4415 = vpack.c.b16 %v3869, %v3863
    %v4416 = vpack.c.b16 %v3870, %v3864
    %v4417 = vpack.c.b16 %v3871, %v3865
    %v4418 = vpack.c.b16 %v3872, %v3866
    %v4419 = vpack.c.b16 %v3873, %v3867
    %v4420 = vpack.c.b16 %v3874, %v3868
    %v4421 = vpack.c.b16 %v3881, %v3875
    %v4422 = vpack.c.b16 %v3882, %v3876
    %v4423 = vpack.c.b16 %v3883, %v3877
    %v4424 = vpack.c.b16 %v3884, %v3878
    %v4425 = vpack.c.b16 %v3885, %v3879
    %v4426 = vpack.c.b16 %v3886, %v3880
    %v4427 = vpack.c.b16 %v3893, %v3887
    %v4428 = vpack.c.b16 %v3894, %v3888
    %v4429 = vpack.c.b16 %v3895, %v3889
    %v4430 = vpack.c.b16 %v3896, %v3890
    %v4431 = vpack.c.b16 %v3897, %v3891
    %v4432 = vpack.c.b16 %v3898, %v3892
    %v4433 = vpack.c.b16 %v3905, %v3899
    %v4434 = vpack.c.b16 %v3906, %v3900
    %v4435 = vpack.c.b16 %v3907, %v3901
    %v4436 = vpack.c.b16 %v3908, %v3902
    %v4437 = vpack.c.b16 %v3909, %v3903
    %v4438 = vpack.c.b16 %v3910, %v3904
    %v4439 = vpack.c.b16 %v3917, %v3911
    %v4440 = vpack.c.b16 %v3918, %v3912
    %v4441 = vpack.c.b16 %v3919, %v3913
    %v4442 = vpack.c.b16 %v3920, %v3914
    %v4443 = vpack.c.b16 %v3921, %v3915
    %v4444 = vpack.c.b16 %v3922, %v3916
    %v4445 = vpack.c.b16 %v3929, %v3923
    %v4446 = vpack.c.b16 %v3930, %v3924
    %v4447 = vpack.c.b16 %v3931, %v3925
    %v4448 = vpack.c.b16 %v3932, %v3926
    %v4449 = vpack.c.b16 %v3933, %v3927
    %v4450 = vpack.c.b16 %v3934, %v3928
    %v4451 = vpack.c.b16 %v3941, %v3935
    %v4452 = vpack.c.b16 %v3942, %v3936
    %v4453 = vpack.c.b16 %v3943, %v3937
    %v4454 = vpack.c.b16 %v3944, %v3938
    %v4455 = vpack.c.b16 %v3945, %v3939
    %v4456 = vpack.c.b16 %v3946, %v3940
    %v4457 = vpack.c.b16 %v3953, %v3947
    %v4458 = vpack.c.b16 %v3954, %v3948
    %v4459 = vpack.c.b16 %v3955, %v3949
    %v4460 = vpack.c.b16 %v3956, %v3950
    %v4461 = vpack.c.b16 %v3957, %v3951
    %v4462 = vpack.c.b16 %v3958, %v3952
    %v4463 = vpack.c.b16 %v3965, %v3959
    %v4464 = vpack.c.b16 %v3966, %v3960
    %v4465 = vpack.c.b16 %v3967, %v3961
    %v4466 = vpack.c.b16 %v3968, %v3962
    %v4467 = vpack.c.b16 %v3969, %v3963
    %v4468 = vpack.c.b16 %v3970, %v3964
    %v4469 = vpack.c.b16 %v3977, %v3971
    %v4470 = vpack.c.b16 %v3978, %v3972
    %v4471 = vpack.c.b16 %v3979, %v3973
    %v4472 = vpack.c.b16 %v3980, %v3974
    %v4473 = vpack.c.b16 %v3981, %v3975
    %v4474 = vpack.c.b16 %v3982, %v3976
    %v4475 = vpack.c.b16 %v3989, %v3983
    %v4476 = vpack.c.b16 %v3990, %v3984
    %v4477 = vpack.c.b16 %v3991, %v3985
    %v4478 = vpack.c.b16 %v3992, %v3986
    %v4479 = vpack.c.b16 %v3993, %v3987
    %v4480 = vpack.c.b16 %v3994, %v3988
    %v4481 = vpack.c.b16 %v4001, %v3995
    %v4482 = vpack.c.b16 %v4002, %v3996
    %v4483 = vpack.c.b16 %v4003, %v3997
    %v4484 = vpack.c.b16 %v4004, %v3998
    %v4485 = vpack.c.b16 %v4005, %v3999
    %v4486 = vpack.c.b16 %v4006, %v4000
    %v4487 = vpack.c.b16 %v4013, %v4007
    %v4488 = vpack.c.b16 %v4014, %v4008
    %v4489 = vpack.c.b16 %v4015, %v4009
    %v4490 = vpack.c.b16 %v4016, %v4010
    %v4491 = vpack.c.b16 %v4017, %v4011
    %v4492 = vpack.c.b16 %v4018, %v4012
    %v4493 = vpack.c.b16 %v4025, %v4019
    %v4494 = vpack.c.b16 %v4026, %v4020
    %v4495 = vpack.c.b16 %v4027, %v4021
    %v4496 = vpack.c.b16 %v4028, %v4022
    %v4497 = vpack.c.b16 %v4029, %v4023
    %v4498 = vpack.c.b16 %v4030, %v4024
    %v4499 = vpack.c.b16 %v4037, %v4031
    %v4500 = vpack.c.b16 %v4038, %v4032
    %v4501 = vpack.c.b16 %v4039, %v4033
    %v4502 = vpack.c.b16 %v4040, %v4034
    %v4503 = vpack.c.b16 %v4041, %v4035
    %v4504 = vpack.c.b16 %v4042, %v4036
    %v4505 = vpack.c.b16 %v4049, %v4043
    %v4506 = vpack.c.b16 %v4050, %v4044
    %v4507 = vpack.c.b16 %v4051, %v4045
    %v4508 = vpack.c.b16 %v4052, %v4046
    %v4509 = vpack.c.b16 %v4053, %v4047
    %v4510 = vpack.c.b16 %v4054, %v4048
    %v4511 = vpack.c.b16 %v4061, %v4055
    %v4512 = vpack.c.b16 %v4062, %v4056
    %v4513 = vpack.c.b16 %v4063, %v4057
    %v4514 = vpack.c.b16 %v4064, %v4058
    %v4515 = vpack.c.b16 %v4065, %v4059
    %v4516 = vpack.c.b16 %v4066, %v4060
    %v4517 = vpack.c.b16 %v4073, %v4067
    %v4518 = vpack.c.b16 %v4074, %v4068
    %v4519 = vpack.c.b16 %v4075, %v4069
    %v4520 = vpack.c.b16 %v4076, %v4070
    %v4521 = vpack.c.b16 %v4077, %v4071
    %v4522 = vpack.c.b16 %v4078, %v4072
    %v4523 = vpack.c.b16 %v4085, %v4079
    %v4524 = vpack.c.b16 %v4086, %v4080
    %v4525 = vpack.c.b16 %v4087, %v4081
    %v4526 = vpack.c.b16 %v4088, %v4082
    %v4527 = vpack.c.b16 %v4089, %v4083
    %v4528 = vpack.c.b16 %v4090, %v4084
    %v4529 = vpack.c.b16 %v4097, %v4091
    %v4530 = vpack.c.b16 %v4098, %v4092
    %v4531 = vpack.c.b16 %v4099, %v4093
    %v4532 = vpack.c.b16 %v4100, %v4094
    %v4533 = vpack.c.b16 %v4101, %v4095
    %v4534 = vpack.c.b16 %v4102, %v4096
    %v4535 = vpack.c.b16 %v4109, %v4103
    %v4536 = vpack.c.b16 %v4110, %v4104
    %v4537 = vpack.c.b16 %v4111, %v4105
    %v4538 = vpack.c.b16 %v4112, %v4106
    %v4539 = vpack.c.b16 %v4113, %v4107
    %v4540 = vpack.c.b16 %v4114, %v4108
    %v4541 = vpack.c.b16 %v4121, %v4115
    %v4542 = vpack.c.b16 %v4122, %v4116
    %v4543 = vpack.c.b16 %v4123, %v4117
    %v4544 = vpack.c.b16 %v4124, %v4118
    %v4545 = vpack.c.b16 %v4125, %v4119
    %v4546 = vpack.c.b16 %v4126, %v4120
    %v4547 = vpack.c.b16 %v4133, %v4127
    %v4548 = vpack.c.b16 %v4134, %v4128
    %v4549 = vpack.c.b16 %v4135, %v4129
    %v4550 = vpack.c.b16 %v4136, %v4130
    %v4551 = vpack.c.b16 %v4137, %v4131
    %v4552 = vpack.c.b16 %v4138, %v4132
    %v4553 = vpack.c.b16 %v4145, %v4139
    %v4554 = vpack.c.b16 %v4146, %v4140
    %v4555 = vpack.c.b16 %v4147, %v4141
    %v4556 = vpack.c.b16 %v4148, %v4142
    %v4557 = vpack.c.b16 %v4149, %v4143
    %v4558 = vpack.c.b16 %v4150, %v4144
    %v4559 = vpack.c.b16 %v4157, %v4151
    %v4560 = vpack.c.b16 %v4158, %v4152
    %v4561 = vpack.c.b16 %v4159, %v4153
    %v4562 = vpack.c.b16 %v4160, %v4154
    %v4563 = vpack.c.b16 %v4161, %v4155
    %v4564 = vpack.c.b16 %v4162, %v4156
    %v4565 = vpack.c.b16 %v4169, %v4163
    %v4566 = vpack.c.b16 %v4170, %v4164
    %v4567 = vpack.c.b16 %v4171, %v4165
    %v4568 = vpack.c.b16 %v4172, %v4166
    %v4569 = vpack.c.b16 %v4173, %v4167
    %v4570 = vpack.c.b16 %v4174, %v4168
    %v4571 = vpack.c.b16 %v4181, %v4175
    %v4572 = vpack.c.b16 %v4182, %v4176
    %v4573 = vpack.c.b16 %v4183, %v4177
    %v4574 = vpack.c.b16 %v4184, %v4178
    %v4575 = vpack.c.b16 %v4185, %v4179
    %v4576 = vpack.c.b16 %v4186, %v4180
    %v4577 = vpack.c.b16 %v4193, %v4187
    %v4578 = vpack.c.b16 %v4194, %v4188
    %v4579 = vpack.c.b16 %v4195, %v4189
    %v4580 = vpack.c.b16 %v4196, %v4190
    %v4581 = vpack.c.b16 %v4197, %v4191
    %v4582 = vpack.c.b16 %v4198, %v4192
    %4967 = vmatpush.bf16.msra.mxu0 %v4241
    %4968 = vmatpush.bf16.msra.mxu0 %v4235
    %4969 = vmatpush.bf16.msra.mxu0 %v4229
    %4970 = vmatpush.bf16.msra.mxu0 %v4223
    %4971 = vmatpush.bf16.msra.mxu0 %v4217
    %4972 = vmatpush.bf16.msra.mxu0 %v4211
    %4973 = vmatpush.bf16.msra.mxu0 %v4205
    %4974 = vmatpush.bf16.msra.mxu0 %v4199
    %4975 = vmatmul.bf16.gmra.mxu0 %v3026
    %v4976 = vpop.f32.mrf.mxu0
    %v4977 = vadd.f32 %v3035, %v4976
    %v4978 = vpop.f32.mrf.mxu0
    %4979 = vdwg.mxu0
    %4980 = vmatpush.bf16.msra.mxu0 %v4289
    %4981 = vmatpush.bf16.msra.mxu0 %v4283
    %4982 = vmatpush.bf16.msra.mxu0 %v4277
    %4983 = vmatpush.bf16.msra.mxu0 %v4271
    %4984 = vmatpush.bf16.msra.mxu0 %v4265
    %4985 = vmatpush.bf16.msra.mxu0 %v4259
    %4986 = vmatpush.bf16.msra.mxu0 %v4253
    %4987 = vmatpush.bf16.msra.mxu0 %v4247
    %4988 = vmatmul.bf16.gmra.mxu0 %v3027
    %v4989 = vpop.f32.mrf.mxu0
    %v4990 = vadd.f32 %v4977, %v4989
    %v4991 = vpop.f32.mrf.mxu0
    %4992 = vdwg.mxu0
    %4993 = vmatpush.bf16.msra.mxu0 %v4337
    %4994 = vmatpush.bf16.msra.mxu0 %v4331
    %4995 = vmatpush.bf16.msra.mxu0 %v4325
    %4996 = vmatpush.bf16.msra.mxu0 %v4319
    %4997 = vmatpush.bf16.msra.mxu0 %v4313
    %4998 = vmatpush.bf16.msra.mxu0 %v4307
    %4999 = vmatpush.bf16.msra.mxu0 %v4301
    %5000 = vmatpush.bf16.msra.mxu0 %v4295
    %5001 = vmatmul.bf16.gmra.mxu0 %v3028
    %v5002 = vpop.f32.mrf.mxu0
    %v5003 = vadd.f32 %v4990, %v5002
    %v5004 = vpop.f32.mrf.mxu0
    %5005 = vdwg.mxu0
    %5006 = vmatpush.bf16.msra.mxu0 %v4385
    %5007 = vmatpush.bf16.msra.mxu0 %v4379
    %5008 = vmatpush.bf16.msra.mxu0 %v4373
    %5009 = vmatpush.bf16.msra.mxu0 %v4367
    %5010 = vmatpush.bf16.msra.mxu0 %v4361
    %5011 = vmatpush.bf16.msra.mxu0 %v4355
    %5012 = vmatpush.bf16.msra.mxu0 %v4349
    %5013 = vmatpush.bf16.msra.mxu0 %v4343
    %5014 = vmatmul.bf16.gmra.mxu0 %v3029
    %v5015 = vpop.f32.mrf.mxu0
    %v5016 = vadd.f32 %v5003, %v5015
    %v5017 = vpop.f32.mrf.mxu0
    %5018 = vdwg.mxu0
    %5019 = vmatpush.bf16.msra.mxu0 %v4433
    %5020 = vmatpush.bf16.msra.mxu0 %v4427
    %5021 = vmatpush.bf16.msra.mxu0 %v4421
    %5022 = vmatpush.bf16.msra.mxu0 %v4415
    %5023 = vmatpush.bf16.msra.mxu0 %v4409
    %5024 = vmatpush.bf16.msra.mxu0 %v4403
    %5025 = vmatpush.bf16.msra.mxu0 %v4397
    %5026 = vmatpush.bf16.msra.mxu0 %v4391
    %5027 = vmatmul.bf16.gmra.mxu0 %v3030
    %v5028 = vpop.f32.mrf.mxu0
    %v5029 = vadd.f32 %v5016, %v5028
    %v5030 = vpop.f32.mrf.mxu0
    %5031 = vdwg.mxu0
    %5032 = vmatpush.bf16.msra.mxu0 %v4481
    %5033 = vmatpush.bf16.msra.mxu0 %v4475
    %5034 = vmatpush.bf16.msra.mxu0 %v4469
    %5035 = vmatpush.bf16.msra.mxu0 %v4463
    %5036 = vmatpush.bf16.msra.mxu0 %v4457
    %5037 = vmatpush.bf16.msra.mxu0 %v4451
    %5038 = vmatpush.bf16.msra.mxu0 %v4445
    %5039 = vmatpush.bf16.msra.mxu0 %v4439
    %5040 = vmatmul.bf16.gmra.mxu0 %v3031
    %v5041 = vpop.f32.mrf.mxu0
    %v5042 = vadd.f32 %v5029, %v5041
    %v5043 = vpop.f32.mrf.mxu0
    %5044 = vdwg.mxu0
    %5045 = vmatpush.bf16.msra.mxu0 %v4529
    %5046 = vmatpush.bf16.msra.mxu0 %v4523
    %5047 = vmatpush.bf16.msra.mxu0 %v4517
    %5048 = vmatpush.bf16.msra.mxu0 %v4511
    %5049 = vmatpush.bf16.msra.mxu0 %v4505
    %5050 = vmatpush.bf16.msra.mxu0 %v4499
    %5051 = vmatpush.bf16.msra.mxu0 %v4493
    %5052 = vmatpush.bf16.msra.mxu0 %v4487
    %5053 = vmatmul.bf16.gmra.mxu0 %v3032
    %v5054 = vpop.f32.mrf.mxu0
    %v5055 = vadd.f32 %v5042, %v5054
    %v5056 = vpop.f32.mrf.mxu0
    %5057 = vdwg.mxu0
    %5058 = vmatpush.bf16.msra.mxu0 %v4577
    %5059 = vmatpush.bf16.msra.mxu0 %v4571
    %5060 = vmatpush.bf16.msra.mxu0 %v4565
    %5061 = vmatpush.bf16.msra.mxu0 %v4559
    %5062 = vmatpush.bf16.msra.mxu0 %v4553
    %5063 = vmatpush.bf16.msra.mxu0 %v4547
    %5064 = vmatpush.bf16.msra.mxu0 %v4541
    %5065 = vmatpush.bf16.msra.mxu0 %v4535
    %5066 = vmatmul.bf16.gmra.mxu0 %v3033
    %v5067 = vpop.f32.mrf.mxu0
    %v5068 = vadd.f32 %v5055, %v5067
    %v5069 = vpop.f32.mrf.mxu0
    %5070 = vdwg.mxu0
    %5071 = vmatpush.bf16.msra.mxu0 %v4242
    %5072 = vmatpush.bf16.msra.mxu0 %v4236
    %5073 = vmatpush.bf16.msra.mxu0 %v4230
    %5074 = vmatpush.bf16.msra.mxu0 %v4224
    %5075 = vmatpush.bf16.msra.mxu0 %v4218
    %5076 = vmatpush.bf16.msra.mxu0 %v4212
    %5077 = vmatpush.bf16.msra.mxu0 %v4206
    %5078 = vmatpush.bf16.msra.mxu0 %v4200
    %5079 = vmatmul.bf16.gmra.mxu0 %v3026
    %v5080 = vpop.f32.mrf.mxu0
    %v5081 = vadd.f32 %v3036, %v5080
    %v5082 = vpop.f32.mrf.mxu0
    %5083 = vdwg.mxu0
    %5084 = vmatpush.bf16.msra.mxu0 %v4290
    %5085 = vmatpush.bf16.msra.mxu0 %v4284
    %5086 = vmatpush.bf16.msra.mxu0 %v4278
    %5087 = vmatpush.bf16.msra.mxu0 %v4272
    %5088 = vmatpush.bf16.msra.mxu0 %v4266
    %5089 = vmatpush.bf16.msra.mxu0 %v4260
    %5090 = vmatpush.bf16.msra.mxu0 %v4254
    %5091 = vmatpush.bf16.msra.mxu0 %v4248
    %5092 = vmatmul.bf16.gmra.mxu0 %v3027
    %v5093 = vpop.f32.mrf.mxu0
    %v5094 = vadd.f32 %v5081, %v5093
    %v5095 = vpop.f32.mrf.mxu0
    %5096 = vdwg.mxu0
    %5097 = vmatpush.bf16.msra.mxu0 %v4338
    %5098 = vmatpush.bf16.msra.mxu0 %v4332
    %5099 = vmatpush.bf16.msra.mxu0 %v4326
    %5100 = vmatpush.bf16.msra.mxu0 %v4320
    %5101 = vmatpush.bf16.msra.mxu0 %v4314
    %5102 = vmatpush.bf16.msra.mxu0 %v4308
    %5103 = vmatpush.bf16.msra.mxu0 %v4302
    %5104 = vmatpush.bf16.msra.mxu0 %v4296
    %5105 = vmatmul.bf16.gmra.mxu0 %v3028
    %v5106 = vpop.f32.mrf.mxu0
    %v5107 = vadd.f32 %v5094, %v5106
    %v5108 = vpop.f32.mrf.mxu0
    %5109 = vdwg.mxu0
    %5110 = vmatpush.bf16.msra.mxu0 %v4386
    %5111 = vmatpush.bf16.msra.mxu0 %v4380
    %5112 = vmatpush.bf16.msra.mxu0 %v4374
    %5113 = vmatpush.bf16.msra.mxu0 %v4368
    %5114 = vmatpush.bf16.msra.mxu0 %v4362
    %5115 = vmatpush.bf16.msra.mxu0 %v4356
    %5116 = vmatpush.bf16.msra.mxu0 %v4350
    %5117 = vmatpush.bf16.msra.mxu0 %v4344
    %5118 = vmatmul.bf16.gmra.mxu0 %v3029
    %v5119 = vpop.f32.mrf.mxu0
    %v5120 = vadd.f32 %v5107, %v5119
    %v5121 = vpop.f32.mrf.mxu0
    %5122 = vdwg.mxu0
    %5123 = vmatpush.bf16.msra.mxu0 %v4434
    %5124 = vmatpush.bf16.msra.mxu0 %v4428
    %5125 = vmatpush.bf16.msra.mxu0 %v4422
    %5126 = vmatpush.bf16.msra.mxu0 %v4416
    %5127 = vmatpush.bf16.msra.mxu0 %v4410
    %5128 = vmatpush.bf16.msra.mxu0 %v4404
    %5129 = vmatpush.bf16.msra.mxu0 %v4398
    %5130 = vmatpush.bf16.msra.mxu0 %v4392
    %5131 = vmatmul.bf16.gmra.mxu0 %v3030
    %v5132 = vpop.f32.mrf.mxu0
    %v5133 = vadd.f32 %v5120, %v5132
    %v5134 = vpop.f32.mrf.mxu0
    %5135 = vdwg.mxu0
    %5136 = vmatpush.bf16.msra.mxu0 %v4482
    %5137 = vmatpush.bf16.msra.mxu0 %v4476
    %5138 = vmatpush.bf16.msra.mxu0 %v4470
    %5139 = vmatpush.bf16.msra.mxu0 %v4464
    %5140 = vmatpush.bf16.msra.mxu0 %v4458
    %5141 = vmatpush.bf16.msra.mxu0 %v4452
    %5142 = vmatpush.bf16.msra.mxu0 %v4446
    %5143 = vmatpush.bf16.msra.mxu0 %v4440
    %5144 = vmatmul.bf16.gmra.mxu0 %v3031
    %v5145 = vpop.f32.mrf.mxu0
    %v5146 = vadd.f32 %v5133, %v5145
    %v5147 = vpop.f32.mrf.mxu0
    %5148 = vdwg.mxu0
    %5149 = vmatpush.bf16.msra.mxu0 %v4530
    %5150 = vmatpush.bf16.msra.mxu0 %v4524
    %5151 = vmatpush.bf16.msra.mxu0 %v4518
    %5152 = vmatpush.bf16.msra.mxu0 %v4512
    %5153 = vmatpush.bf16.msra.mxu0 %v4506
    %5154 = vmatpush.bf16.msra.mxu0 %v4500
    %5155 = vmatpush.bf16.msra.mxu0 %v4494
    %5156 = vmatpush.bf16.msra.mxu0 %v4488
    %5157 = vmatmul.bf16.gmra.mxu0 %v3032
    %v5158 = vpop.f32.mrf.mxu0
    %v5159 = vadd.f32 %v5146, %v5158
    %v5160 = vpop.f32.mrf.mxu0
    %5161 = vdwg.mxu0
    %5162 = vmatpush.bf16.msra.mxu0 %v4578
    %5163 = vmatpush.bf16.msra.mxu0 %v4572
    %5164 = vmatpush.bf16.msra.mxu0 %v4566
    %5165 = vmatpush.bf16.msra.mxu0 %v4560
    %5166 = vmatpush.bf16.msra.mxu0 %v4554
    %5167 = vmatpush.bf16.msra.mxu0 %v4548
    %5168 = vmatpush.bf16.msra.mxu0 %v4542
    %5169 = vmatpush.bf16.msra.mxu0 %v4536
    %5170 = vmatmul.bf16.gmra.mxu0 %v3033
    %v5171 = vpop.f32.mrf.mxu0
    %v5172 = vadd.f32 %v5159, %v5171
    %v5173 = vpop.f32.mrf.mxu0
    %5174 = vdwg.mxu0
    %5175 = vmatpush.bf16.msra.mxu0 %v4243
    %5176 = vmatpush.bf16.msra.mxu0 %v4237
    %5177 = vmatpush.bf16.msra.mxu0 %v4231
    %5178 = vmatpush.bf16.msra.mxu0 %v4225
    %5179 = vmatpush.bf16.msra.mxu0 %v4219
    %5180 = vmatpush.bf16.msra.mxu0 %v4213
    %5181 = vmatpush.bf16.msra.mxu0 %v4207
    %5182 = vmatpush.bf16.msra.mxu0 %v4201
    %5183 = vmatmul.bf16.gmra.mxu0 %v3026
    %v5184 = vpop.f32.mrf.mxu0
    %v5185 = vadd.f32 %v3037, %v5184
    %v5186 = vpop.f32.mrf.mxu0
    %5187 = vdwg.mxu0
    %5188 = vmatpush.bf16.msra.mxu0 %v4291
    %5189 = vmatpush.bf16.msra.mxu0 %v4285
    %5190 = vmatpush.bf16.msra.mxu0 %v4279
    %5191 = vmatpush.bf16.msra.mxu0 %v4273
    %5192 = vmatpush.bf16.msra.mxu0 %v4267
    %5193 = vmatpush.bf16.msra.mxu0 %v4261
    %5194 = vmatpush.bf16.msra.mxu0 %v4255
    %5195 = vmatpush.bf16.msra.mxu0 %v4249
    %5196 = vmatmul.bf16.gmra.mxu0 %v3027
    %v5197 = vpop.f32.mrf.mxu0
    %v5198 = vadd.f32 %v5185, %v5197
    %v5199 = vpop.f32.mrf.mxu0
    %5200 = vdwg.mxu0
    %5201 = vmatpush.bf16.msra.mxu0 %v4339
    %5202 = vmatpush.bf16.msra.mxu0 %v4333
    %5203 = vmatpush.bf16.msra.mxu0 %v4327
    %5204 = vmatpush.bf16.msra.mxu0 %v4321
    %5205 = vmatpush.bf16.msra.mxu0 %v4315
    %5206 = vmatpush.bf16.msra.mxu0 %v4309
    %5207 = vmatpush.bf16.msra.mxu0 %v4303
    %5208 = vmatpush.bf16.msra.mxu0 %v4297
    %5209 = vmatmul.bf16.gmra.mxu0 %v3028
    %v5210 = vpop.f32.mrf.mxu0
    %v5211 = vadd.f32 %v5198, %v5210
    %v5212 = vpop.f32.mrf.mxu0
    %5213 = vdwg.mxu0
    %5214 = vmatpush.bf16.msra.mxu0 %v4387
    %5215 = vmatpush.bf16.msra.mxu0 %v4381
    %5216 = vmatpush.bf16.msra.mxu0 %v4375
    %5217 = vmatpush.bf16.msra.mxu0 %v4369
    %5218 = vmatpush.bf16.msra.mxu0 %v4363
    %5219 = vmatpush.bf16.msra.mxu0 %v4357
    %5220 = vmatpush.bf16.msra.mxu0 %v4351
    %5221 = vmatpush.bf16.msra.mxu0 %v4345
    %5222 = vmatmul.bf16.gmra.mxu0 %v3029
    %v5223 = vpop.f32.mrf.mxu0
    %v5224 = vadd.f32 %v5211, %v5223
    %v5225 = vpop.f32.mrf.mxu0
    %5226 = vdwg.mxu0
    %5227 = vmatpush.bf16.msra.mxu0 %v4435
    %5228 = vmatpush.bf16.msra.mxu0 %v4429
    %5229 = vmatpush.bf16.msra.mxu0 %v4423
    %5230 = vmatpush.bf16.msra.mxu0 %v4417
    %5231 = vmatpush.bf16.msra.mxu0 %v4411
    %5232 = vmatpush.bf16.msra.mxu0 %v4405
    %5233 = vmatpush.bf16.msra.mxu0 %v4399
    %5234 = vmatpush.bf16.msra.mxu0 %v4393
    %5235 = vmatmul.bf16.gmra.mxu0 %v3030
    %v5236 = vpop.f32.mrf.mxu0
    %v5237 = vadd.f32 %v5224, %v5236
    %v5238 = vpop.f32.mrf.mxu0
    %5239 = vdwg.mxu0
    %5240 = vmatpush.bf16.msra.mxu0 %v4483
    %5241 = vmatpush.bf16.msra.mxu0 %v4477
    %5242 = vmatpush.bf16.msra.mxu0 %v4471
    %5243 = vmatpush.bf16.msra.mxu0 %v4465
    %5244 = vmatpush.bf16.msra.mxu0 %v4459
    %5245 = vmatpush.bf16.msra.mxu0 %v4453
    %5246 = vmatpush.bf16.msra.mxu0 %v4447
    %5247 = vmatpush.bf16.msra.mxu0 %v4441
    %5248 = vmatmul.bf16.gmra.mxu0 %v3031
    %v5249 = vpop.f32.mrf.mxu0
    %v5250 = vadd.f32 %v5237, %v5249
    %v5251 = vpop.f32.mrf.mxu0
    %5252 = vdwg.mxu0
    %5253 = vmatpush.bf16.msra.mxu0 %v4531
    %5254 = vmatpush.bf16.msra.mxu0 %v4525
    %5255 = vmatpush.bf16.msra.mxu0 %v4519
    %5256 = vmatpush.bf16.msra.mxu0 %v4513
    %5257 = vmatpush.bf16.msra.mxu0 %v4507
    %5258 = vmatpush.bf16.msra.mxu0 %v4501
    %5259 = vmatpush.bf16.msra.mxu0 %v4495
    %5260 = vmatpush.bf16.msra.mxu0 %v4489
    %5261 = vmatmul.bf16.gmra.mxu0 %v3032
    %v5262 = vpop.f32.mrf.mxu0
    %v5263 = vadd.f32 %v5250, %v5262
    %v5264 = vpop.f32.mrf.mxu0
    %5265 = vdwg.mxu0
    %5266 = vmatpush.bf16.msra.mxu0 %v4579
    %5267 = vmatpush.bf16.msra.mxu0 %v4573
    %5268 = vmatpush.bf16.msra.mxu0 %v4567
    %5269 = vmatpush.bf16.msra.mxu0 %v4561
    %5270 = vmatpush.bf16.msra.mxu0 %v4555
    %5271 = vmatpush.bf16.msra.mxu0 %v4549
    %5272 = vmatpush.bf16.msra.mxu0 %v4543
    %5273 = vmatpush.bf16.msra.mxu0 %v4537
    %5274 = vmatmul.bf16.gmra.mxu0 %v3033
    %v5275 = vpop.f32.mrf.mxu0
    %v5276 = vadd.f32 %v5263, %v5275
    %v5277 = vpop.f32.mrf.mxu0
    %5278 = vdwg.mxu0
    %5279 = vmatpush.bf16.msra.mxu0 %v4244
    %5280 = vmatpush.bf16.msra.mxu0 %v4238
    %5281 = vmatpush.bf16.msra.mxu0 %v4232
    %5282 = vmatpush.bf16.msra.mxu0 %v4226
    %5283 = vmatpush.bf16.msra.mxu0 %v4220
    %5284 = vmatpush.bf16.msra.mxu0 %v4214
    %5285 = vmatpush.bf16.msra.mxu0 %v4208
    %5286 = vmatpush.bf16.msra.mxu0 %v4202
    %5287 = vmatmul.bf16.gmra.mxu0 %v3026
    %v5288 = vpop.f32.mrf.mxu0
    %v5289 = vadd.f32 %v3038, %v5288
    %v5290 = vpop.f32.mrf.mxu0
    %5291 = vdwg.mxu0
    %5292 = vmatpush.bf16.msra.mxu0 %v4292
    %5293 = vmatpush.bf16.msra.mxu0 %v4286
    %5294 = vmatpush.bf16.msra.mxu0 %v4280
    %5295 = vmatpush.bf16.msra.mxu0 %v4274
    %5296 = vmatpush.bf16.msra.mxu0 %v4268
    %5297 = vmatpush.bf16.msra.mxu0 %v4262
    %5298 = vmatpush.bf16.msra.mxu0 %v4256
    %5299 = vmatpush.bf16.msra.mxu0 %v4250
    %5300 = vmatmul.bf16.gmra.mxu0 %v3027
    %v5301 = vpop.f32.mrf.mxu0
    %v5302 = vadd.f32 %v5289, %v5301
    %v5303 = vpop.f32.mrf.mxu0
    %5304 = vdwg.mxu0
    %5305 = vmatpush.bf16.msra.mxu0 %v4340
    %5306 = vmatpush.bf16.msra.mxu0 %v4334
    %5307 = vmatpush.bf16.msra.mxu0 %v4328
    %5308 = vmatpush.bf16.msra.mxu0 %v4322
    %5309 = vmatpush.bf16.msra.mxu0 %v4316
    %5310 = vmatpush.bf16.msra.mxu0 %v4310
    %5311 = vmatpush.bf16.msra.mxu0 %v4304
    %5312 = vmatpush.bf16.msra.mxu0 %v4298
    %5313 = vmatmul.bf16.gmra.mxu0 %v3028
    %v5314 = vpop.f32.mrf.mxu0
    %v5315 = vadd.f32 %v5302, %v5314
    %v5316 = vpop.f32.mrf.mxu0
    %5317 = vdwg.mxu0
    %5318 = vmatpush.bf16.msra.mxu0 %v4388
    %5319 = vmatpush.bf16.msra.mxu0 %v4382
    %5320 = vmatpush.bf16.msra.mxu0 %v4376
    %5321 = vmatpush.bf16.msra.mxu0 %v4370
    %5322 = vmatpush.bf16.msra.mxu0 %v4364
    %5323 = vmatpush.bf16.msra.mxu0 %v4358
    %5324 = vmatpush.bf16.msra.mxu0 %v4352
    %5325 = vmatpush.bf16.msra.mxu0 %v4346
    %5326 = vmatmul.bf16.gmra.mxu0 %v3029
    %v5327 = vpop.f32.mrf.mxu0
    %v5328 = vadd.f32 %v5315, %v5327
    %v5329 = vpop.f32.mrf.mxu0
    %5330 = vdwg.mxu0
    %5331 = vmatpush.bf16.msra.mxu0 %v4436
    %5332 = vmatpush.bf16.msra.mxu0 %v4430
    %5333 = vmatpush.bf16.msra.mxu0 %v4424
    %5334 = vmatpush.bf16.msra.mxu0 %v4418
    %5335 = vmatpush.bf16.msra.mxu0 %v4412
    %5336 = vmatpush.bf16.msra.mxu0 %v4406
    %5337 = vmatpush.bf16.msra.mxu0 %v4400
    %5338 = vmatpush.bf16.msra.mxu0 %v4394
    %5339 = vmatmul.bf16.gmra.mxu0 %v3030
    %v5340 = vpop.f32.mrf.mxu0
    %v5341 = vadd.f32 %v5328, %v5340
    %v5342 = vpop.f32.mrf.mxu0
    %5343 = vdwg.mxu0
    %5344 = vmatpush.bf16.msra.mxu0 %v4484
    %5345 = vmatpush.bf16.msra.mxu0 %v4478
    %5346 = vmatpush.bf16.msra.mxu0 %v4472
    %5347 = vmatpush.bf16.msra.mxu0 %v4466
    %5348 = vmatpush.bf16.msra.mxu0 %v4460
    %5349 = vmatpush.bf16.msra.mxu0 %v4454
    %5350 = vmatpush.bf16.msra.mxu0 %v4448
    %5351 = vmatpush.bf16.msra.mxu0 %v4442
    %5352 = vmatmul.bf16.gmra.mxu0 %v3031
    %v5353 = vpop.f32.mrf.mxu0
    %v5354 = vadd.f32 %v5341, %v5353
    %v5355 = vpop.f32.mrf.mxu0
    %5356 = vdwg.mxu0
    %5357 = vmatpush.bf16.msra.mxu0 %v4532
    %5358 = vmatpush.bf16.msra.mxu0 %v4526
    %5359 = vmatpush.bf16.msra.mxu0 %v4520
    %5360 = vmatpush.bf16.msra.mxu0 %v4514
    %5361 = vmatpush.bf16.msra.mxu0 %v4508
    %5362 = vmatpush.bf16.msra.mxu0 %v4502
    %5363 = vmatpush.bf16.msra.mxu0 %v4496
    %5364 = vmatpush.bf16.msra.mxu0 %v4490
    %5365 = vmatmul.bf16.gmra.mxu0 %v3032
    %v5366 = vpop.f32.mrf.mxu0
    %v5367 = vadd.f32 %v5354, %v5366
    %v5368 = vpop.f32.mrf.mxu0
    %5369 = vdwg.mxu0
    %5370 = vmatpush.bf16.msra.mxu0 %v4580
    %5371 = vmatpush.bf16.msra.mxu0 %v4574
    %5372 = vmatpush.bf16.msra.mxu0 %v4568
    %5373 = vmatpush.bf16.msra.mxu0 %v4562
    %5374 = vmatpush.bf16.msra.mxu0 %v4556
    %5375 = vmatpush.bf16.msra.mxu0 %v4550
    %5376 = vmatpush.bf16.msra.mxu0 %v4544
    %5377 = vmatpush.bf16.msra.mxu0 %v4538
    %5378 = vmatmul.bf16.gmra.mxu0 %v3033
    %v5379 = vpop.f32.mrf.mxu0
    %v5380 = vadd.f32 %v5367, %v5379
    %v5381 = vpop.f32.mrf.mxu0
    %5382 = vdwg.mxu0
    %5383 = vmatpush.bf16.msra.mxu0 %v4245
    %5384 = vmatpush.bf16.msra.mxu0 %v4239
    %5385 = vmatpush.bf16.msra.mxu0 %v4233
    %5386 = vmatpush.bf16.msra.mxu0 %v4227
    %5387 = vmatpush.bf16.msra.mxu0 %v4221
    %5388 = vmatpush.bf16.msra.mxu0 %v4215
    %5389 = vmatpush.bf16.msra.mxu0 %v4209
    %5390 = vmatpush.bf16.msra.mxu0 %v4203
    %5391 = vmatmul.bf16.gmra.mxu0 %v3026
    %v5392 = vpop.f32.mrf.mxu0
    %v5393 = vadd.f32 %v3039, %v5392
    %v5394 = vpop.f32.mrf.mxu0
    %5395 = vdwg.mxu0
    %5396 = vmatpush.bf16.msra.mxu0 %v4293
    %5397 = vmatpush.bf16.msra.mxu0 %v4287
    %5398 = vmatpush.bf16.msra.mxu0 %v4281
    %5399 = vmatpush.bf16.msra.mxu0 %v4275
    %5400 = vmatpush.bf16.msra.mxu0 %v4269
    %5401 = vmatpush.bf16.msra.mxu0 %v4263
    %5402 = vmatpush.bf16.msra.mxu0 %v4257
    %5403 = vmatpush.bf16.msra.mxu0 %v4251
    %5404 = vmatmul.bf16.gmra.mxu0 %v3027
    %v5405 = vpop.f32.mrf.mxu0
    %v5406 = vadd.f32 %v5393, %v5405
    %v5407 = vpop.f32.mrf.mxu0
    %5408 = vdwg.mxu0
    %5409 = vmatpush.bf16.msra.mxu0 %v4341
    %5410 = vmatpush.bf16.msra.mxu0 %v4335
    %5411 = vmatpush.bf16.msra.mxu0 %v4329
    %5412 = vmatpush.bf16.msra.mxu0 %v4323
    %5413 = vmatpush.bf16.msra.mxu0 %v4317
    %5414 = vmatpush.bf16.msra.mxu0 %v4311
    %5415 = vmatpush.bf16.msra.mxu0 %v4305
    %5416 = vmatpush.bf16.msra.mxu0 %v4299
    %5417 = vmatmul.bf16.gmra.mxu0 %v3028
    %v5418 = vpop.f32.mrf.mxu0
    %v5419 = vadd.f32 %v5406, %v5418
    %v5420 = vpop.f32.mrf.mxu0
    %5421 = vdwg.mxu0
    %5422 = vmatpush.bf16.msra.mxu0 %v4389
    %5423 = vmatpush.bf16.msra.mxu0 %v4383
    %5424 = vmatpush.bf16.msra.mxu0 %v4377
    %5425 = vmatpush.bf16.msra.mxu0 %v4371
    %5426 = vmatpush.bf16.msra.mxu0 %v4365
    %5427 = vmatpush.bf16.msra.mxu0 %v4359
    %5428 = vmatpush.bf16.msra.mxu0 %v4353
    %5429 = vmatpush.bf16.msra.mxu0 %v4347
    %5430 = vmatmul.bf16.gmra.mxu0 %v3029
    %v5431 = vpop.f32.mrf.mxu0
    %v5432 = vadd.f32 %v5419, %v5431
    %v5433 = vpop.f32.mrf.mxu0
    %5434 = vdwg.mxu0
    %5435 = vmatpush.bf16.msra.mxu0 %v4437
    %5436 = vmatpush.bf16.msra.mxu0 %v4431
    %5437 = vmatpush.bf16.msra.mxu0 %v4425
    %5438 = vmatpush.bf16.msra.mxu0 %v4419
    %5439 = vmatpush.bf16.msra.mxu0 %v4413
    %5440 = vmatpush.bf16.msra.mxu0 %v4407
    %5441 = vmatpush.bf16.msra.mxu0 %v4401
    %5442 = vmatpush.bf16.msra.mxu0 %v4395
    %5443 = vmatmul.bf16.gmra.mxu0 %v3030
    %v5444 = vpop.f32.mrf.mxu0
    %v5445 = vadd.f32 %v5432, %v5444
    %v5446 = vpop.f32.mrf.mxu0
    %5447 = vdwg.mxu0
    %5448 = vmatpush.bf16.msra.mxu0 %v4485
    %5449 = vmatpush.bf16.msra.mxu0 %v4479
    %5450 = vmatpush.bf16.msra.mxu0 %v4473
    %5451 = vmatpush.bf16.msra.mxu0 %v4467
    %5452 = vmatpush.bf16.msra.mxu0 %v4461
    %5453 = vmatpush.bf16.msra.mxu0 %v4455
    %5454 = vmatpush.bf16.msra.mxu0 %v4449
    %5455 = vmatpush.bf16.msra.mxu0 %v4443
    %5456 = vmatmul.bf16.gmra.mxu0 %v3031
    %v5457 = vpop.f32.mrf.mxu0
    %v5458 = vadd.f32 %v5445, %v5457
    %v5459 = vpop.f32.mrf.mxu0
    %5460 = vdwg.mxu0
    %5461 = vmatpush.bf16.msra.mxu0 %v4533
    %5462 = vmatpush.bf16.msra.mxu0 %v4527
    %5463 = vmatpush.bf16.msra.mxu0 %v4521
    %5464 = vmatpush.bf16.msra.mxu0 %v4515
    %5465 = vmatpush.bf16.msra.mxu0 %v4509
    %5466 = vmatpush.bf16.msra.mxu0 %v4503
    %5467 = vmatpush.bf16.msra.mxu0 %v4497
    %5468 = vmatpush.bf16.msra.mxu0 %v4491
    %5469 = vmatmul.bf16.gmra.mxu0 %v3032
    %v5470 = vpop.f32.mrf.mxu0
    %v5471 = vadd.f32 %v5458, %v5470
    %v5472 = vpop.f32.mrf.mxu0
    %5473 = vdwg.mxu0
    %5474 = vmatpush.bf16.msra.mxu0 %v4581
    %5475 = vmatpush.bf16.msra.mxu0 %v4575
    %5476 = vmatpush.bf16.msra.mxu0 %v4569
    %5477 = vmatpush.bf16.msra.mxu0 %v4563
    %5478 = vmatpush.bf16.msra.mxu0 %v4557
    %5479 = vmatpush.bf16.msra.mxu0 %v4551
    %5480 = vmatpush.bf16.msra.mxu0 %v4545
    %5481 = vmatpush.bf16.msra.mxu0 %v4539
    %5482 = vmatmul.bf16.gmra.mxu0 %v3033
    %v5483 = vpop.f32.mrf.mxu0
    %v5484 = vadd.f32 %v5471, %v5483
    %v5485 = vpop.f32.mrf.mxu0
    %5486 = vdwg.mxu0
    %5487 = vmatpush.bf16.msra.mxu0 %v4246
    %5488 = vmatpush.bf16.msra.mxu0 %v4240
    %5489 = vmatpush.bf16.msra.mxu0 %v4234
    %5490 = vmatpush.bf16.msra.mxu0 %v4228
    %5491 = vmatpush.bf16.msra.mxu0 %v4222
    %5492 = vmatpush.bf16.msra.mxu0 %v4216
    %5493 = vmatpush.bf16.msra.mxu0 %v4210
    %5494 = vmatpush.bf16.msra.mxu0 %v4204
    %5495 = vmatmul.bf16.gmra.mxu0 %v3026
    %v5496 = vpop.f32.mrf.mxu0
    %v5497 = vadd.f32 %v3040, %v5496
    %v5498 = vpop.f32.mrf.mxu0
    %5499 = vdwg.mxu0
    %5500 = vmatpush.bf16.msra.mxu0 %v4294
    %5501 = vmatpush.bf16.msra.mxu0 %v4288
    %5502 = vmatpush.bf16.msra.mxu0 %v4282
    %5503 = vmatpush.bf16.msra.mxu0 %v4276
    %5504 = vmatpush.bf16.msra.mxu0 %v4270
    %5505 = vmatpush.bf16.msra.mxu0 %v4264
    %5506 = vmatpush.bf16.msra.mxu0 %v4258
    %5507 = vmatpush.bf16.msra.mxu0 %v4252
    %5508 = vmatmul.bf16.gmra.mxu0 %v3027
    %v5509 = vpop.f32.mrf.mxu0
    %v5510 = vadd.f32 %v5497, %v5509
    %v5511 = vpop.f32.mrf.mxu0
    %5512 = vdwg.mxu0
    %5513 = vmatpush.bf16.msra.mxu0 %v4342
    %5514 = vmatpush.bf16.msra.mxu0 %v4336
    %5515 = vmatpush.bf16.msra.mxu0 %v4330
    %5516 = vmatpush.bf16.msra.mxu0 %v4324
    %5517 = vmatpush.bf16.msra.mxu0 %v4318
    %5518 = vmatpush.bf16.msra.mxu0 %v4312
    %5519 = vmatpush.bf16.msra.mxu0 %v4306
    %5520 = vmatpush.bf16.msra.mxu0 %v4300
    %5521 = vmatmul.bf16.gmra.mxu0 %v3028
    %v5522 = vpop.f32.mrf.mxu0
    %v5523 = vadd.f32 %v5510, %v5522
    %v5524 = vpop.f32.mrf.mxu0
    %5525 = vdwg.mxu0
    %5526 = vmatpush.bf16.msra.mxu0 %v4390
    %5527 = vmatpush.bf16.msra.mxu0 %v4384
    %5528 = vmatpush.bf16.msra.mxu0 %v4378
    %5529 = vmatpush.bf16.msra.mxu0 %v4372
    %5530 = vmatpush.bf16.msra.mxu0 %v4366
    %5531 = vmatpush.bf16.msra.mxu0 %v4360
    %5532 = vmatpush.bf16.msra.mxu0 %v4354
    %5533 = vmatpush.bf16.msra.mxu0 %v4348
    %5534 = vmatmul.bf16.gmra.mxu0 %v3029
    %v5535 = vpop.f32.mrf.mxu0
    %v5536 = vadd.f32 %v5523, %v5535
    %v5537 = vpop.f32.mrf.mxu0
    %5538 = vdwg.mxu0
    %5539 = vmatpush.bf16.msra.mxu0 %v4438
    %5540 = vmatpush.bf16.msra.mxu0 %v4432
    %5541 = vmatpush.bf16.msra.mxu0 %v4426
    %5542 = vmatpush.bf16.msra.mxu0 %v4420
    %5543 = vmatpush.bf16.msra.mxu0 %v4414
    %5544 = vmatpush.bf16.msra.mxu0 %v4408
    %5545 = vmatpush.bf16.msra.mxu0 %v4402
    %5546 = vmatpush.bf16.msra.mxu0 %v4396
    %5547 = vmatmul.bf16.gmra.mxu0 %v3030
    %v5548 = vpop.f32.mrf.mxu0
    %v5549 = vadd.f32 %v5536, %v5548
    %v5550 = vpop.f32.mrf.mxu0
    %5551 = vdwg.mxu0
    %5552 = vmatpush.bf16.msra.mxu0 %v4486
    %5553 = vmatpush.bf16.msra.mxu0 %v4480
    %5554 = vmatpush.bf16.msra.mxu0 %v4474
    %5555 = vmatpush.bf16.msra.mxu0 %v4468
    %5556 = vmatpush.bf16.msra.mxu0 %v4462
    %5557 = vmatpush.bf16.msra.mxu0 %v4456
    %5558 = vmatpush.bf16.msra.mxu0 %v4450
    %5559 = vmatpush.bf16.msra.mxu0 %v4444
    %5560 = vmatmul.bf16.gmra.mxu0 %v3031
    %v5561 = vpop.f32.mrf.mxu0
    %v5562 = vadd.f32 %v5549, %v5561
    %v5563 = vpop.f32.mrf.mxu0
    %5564 = vdwg.mxu0
    %5565 = vmatpush.bf16.msra.mxu0 %v4534
    %5566 = vmatpush.bf16.msra.mxu0 %v4528
    %5567 = vmatpush.bf16.msra.mxu0 %v4522
    %5568 = vmatpush.bf16.msra.mxu0 %v4516
    %5569 = vmatpush.bf16.msra.mxu0 %v4510
    %5570 = vmatpush.bf16.msra.mxu0 %v4504
    %5571 = vmatpush.bf16.msra.mxu0 %v4498
    %5572 = vmatpush.bf16.msra.mxu0 %v4492
    %5573 = vmatmul.bf16.gmra.mxu0 %v3032
    %v5574 = vpop.f32.mrf.mxu0
    %v5575 = vadd.f32 %v5562, %v5574
    %v5576 = vpop.f32.mrf.mxu0
    %5577 = vdwg.mxu0
    %5578 = vmatpush.bf16.msra.mxu0 %v4582
    %5579 = vmatpush.bf16.msra.mxu0 %v4576
    %5580 = vmatpush.bf16.msra.mxu0 %v4570
    %5581 = vmatpush.bf16.msra.mxu0 %v4564
    %5582 = vmatpush.bf16.msra.mxu0 %v4558
    %5583 = vmatpush.bf16.msra.mxu0 %v4552
    %5584 = vmatpush.bf16.msra.mxu0 %v4546
    %5585 = vmatpush.bf16.msra.mxu0 %v4540
    %5586 = vmatmul.bf16.gmra.mxu0 %v3033
    %v5587 = vpop.f32.mrf.mxu0
    %v5588 = vadd.f32 %v5575, %v5587
    %v5589 = vpop.f32.mrf.mxu0
    %5590 = vdwg.mxu0
    %v5591 = vxor.u32 %v5068, 2147483648
    %v5592 = vxor.u32 %v5172, 2147483648
    %v5593 = vxor.u32 %v5276, 2147483648
    %v5594 = vxor.u32 %v5380, 2147483648
    %v5595 = vxor.u32 %v5484, 2147483648
    %v5596 = vxor.u32 %v5588, 2147483648
    %v5597 = vmul.f32 %v5591, 1.442695
    %v5598 = vpow.pop %v5597
    %v5599 = vmul.f32 %v5592, 1.442695
    %v5600 = vpow.pop %v5599
    %v5601 = vmul.f32 %v5593, 1.442695
    %v5602 = vpow.pop %v5601
    %v5603 = vmul.f32 %v5594, 1.442695
    %v5604 = vpow.pop %v5603
    %v5605 = vmul.f32 %v5595, 1.442695
    %v5606 = vpow.pop %v5605
    %v5607 = vmul.f32 %v5596, 1.442695
    %v5608 = vpow.pop %v5607
    %v5609 = vadd.f32 %v5598, 1.0
    %v5610 = vadd.f32 %v5600, 1.0
    %v5611 = vadd.f32 %v5602, 1.0
    %v5612 = vadd.f32 %v5604, 1.0
    %v5613 = vadd.f32 %v5606, 1.0
    %v5614 = vadd.f32 %v5608, 1.0
    %v5615 = vrcp.pop %v5609
    %v5616 = vmul.f32 %v5609, %v5615
    %v5617 = vsub.f32 1.0, %v5616
    %v5618 = vmul.f32 %v5615, %v5617
    %v5619 = vadd.f32 %v5615, %v5618
    %vm5620 = vweird.f32 %v5609
    %vm5621 = vweird.f32 %v5615
    %vm5622 = vmor %vm5620, %vm5621
    %v5623 = vsel %vm5622, %v5615, %v5619
    %v5624 = vand.u32 2147483647, %v5609
    %vm5625 = vcmp.eq.f32.partialorder %v5624, 8.507059e+37
    %v5626 = vand.u32 %v5609, 2147483648
    %v5627 = vor.u32 1.1754944e-38, %v5626
    %v5628 = vsel %vm5625, %v5627, %v5623
    %v5629 = vmul.f32 1.0, %v5628
    %v5630 = vrcp.pop %v5610
    %v5631 = vmul.f32 %v5610, %v5630
    %v5632 = vsub.f32 1.0, %v5631
    %v5633 = vmul.f32 %v5630, %v5632
    %v5634 = vadd.f32 %v5630, %v5633
    %vm5635 = vweird.f32 %v5610
    %vm5636 = vweird.f32 %v5630
    %vm5637 = vmor %vm5635, %vm5636
    %v5638 = vsel %vm5637, %v5630, %v5634
    %v5639 = vand.u32 2147483647, %v5610
    %vm5640 = vcmp.eq.f32.partialorder %v5639, 8.507059e+37
    %v5641 = vand.u32 %v5610, 2147483648
    %v5642 = vor.u32 1.1754944e-38, %v5641
    %v5643 = vsel %vm5640, %v5642, %v5638
    %v5644 = vmul.f32 1.0, %v5643
    %v5645 = vrcp.pop %v5611
    %v5646 = vmul.f32 %v5611, %v5645
    %v5647 = vsub.f32 1.0, %v5646
    %v5648 = vmul.f32 %v5645, %v5647
    %v5649 = vadd.f32 %v5645, %v5648
    %vm5650 = vweird.f32 %v5611
    %vm5651 = vweird.f32 %v5645
    %vm5652 = vmor %vm5650, %vm5651
    %v5653 = vsel %vm5652, %v5645, %v5649
    %v5654 = vand.u32 2147483647, %v5611
    %vm5655 = vcmp.eq.f32.partialorder %v5654, 8.507059e+37
    %v5656 = vand.u32 %v5611, 2147483648
    %v5657 = vor.u32 1.1754944e-38, %v5656
    %v5658 = vsel %vm5655, %v5657, %v5653
    %v5659 = vmul.f32 1.0, %v5658
    %v5660 = vrcp.pop %v5612
    %v5661 = vmul.f32 %v5612, %v5660
    %v5662 = vsub.f32 1.0, %v5661
    %v5663 = vmul.f32 %v5660, %v5662
    %v5664 = vadd.f32 %v5660, %v5663
    %vm5665 = vweird.f32 %v5612
    %vm5666 = vweird.f32 %v5660
    %vm5667 = vmor %vm5665, %vm5666
    %v5668 = vsel %vm5667, %v5660, %v5664
    %v5669 = vand.u32 2147483647, %v5612
    %vm5670 = vcmp.eq.f32.partialorder %v5669, 8.507059e+37
    %v5671 = vand.u32 %v5612, 2147483648
    %v5672 = vor.u32 1.1754944e-38, %v5671
    %v5673 = vsel %vm5670, %v5672, %v5668
    %v5674 = vmul.f32 1.0, %v5673
    %v5675 = vrcp.pop %v5613
    %v5676 = vmul.f32 %v5613, %v5675
    %v5677 = vsub.f32 1.0, %v5676
    %v5678 = vmul.f32 %v5675, %v5677
    %v5679 = vadd.f32 %v5675, %v5678
    %vm5680 = vweird.f32 %v5613
    %vm5681 = vweird.f32 %v5675
    %vm5682 = vmor %vm5680, %vm5681
    %v5683 = vsel %vm5682, %v5675, %v5679
    %v5684 = vand.u32 2147483647, %v5613
    %vm5685 = vcmp.eq.f32.partialorder %v5684, 8.507059e+37
    %v5686 = vand.u32 %v5613, 2147483648
    %v5687 = vor.u32 1.1754944e-38, %v5686
    %v5688 = vsel %vm5685, %v5687, %v5683
    %v5689 = vmul.f32 1.0, %v5688
    %v5690 = vrcp.pop %v5614
    %v5691 = vmul.f32 %v5614, %v5690
    %v5692 = vsub.f32 1.0, %v5691
    %v5693 = vmul.f32 %v5690, %v5692
    %v5694 = vadd.f32 %v5690, %v5693
    %vm5695 = vweird.f32 %v5614
    %vm5696 = vweird.f32 %v5690
    %vm5697 = vmor %vm5695, %vm5696
    %v5698 = vsel %vm5697, %v5690, %v5694
    %v5699 = vand.u32 2147483647, %v5614
    %vm5700 = vcmp.eq.f32.partialorder %v5699, 8.507059e+37
    %v5701 = vand.u32 %v5614, 2147483648
    %v5702 = vor.u32 1.1754944e-38, %v5701
    %v5703 = vsel %vm5700, %v5702, %v5698
    %v5704 = vmul.f32 1.0, %v5703
    %v5711 = vrot.slane %v5644, 4
    %v5712 = vrot.slane %v5674, 4
    %v5713 = vrot.slane %v5704, 4
    %v5714 = vsel %vm2600, %v5629, %v5711
    %v5715 = vsel %vm2600, %v5659, %v5712
    %v5716 = vsel %vm2600, %v5689, %v5713
    %5720 = vst [vmem:[%s87] sm:$0xff] %v5714
    %5721 = vst [vmem:[%s87 + $0x8] sm:$0xff] %v5715
    %5722 = vst [vmem:[%s87 + $0x10] sm:$0xff] %v5716
    %v5723 = vld [vmem:[#allocation22] sm:$0x1]
    %v5724 = vld [vmem:[%s65] sm:$0x1]
    %v5725 = vld [vmem:[#allocation23] sm:$0x1]
    %v5726 = vld [vmem:[%s69] sm:$0x1]
    %v5727 = vld [vmem:[%s3] sm:$0xf]
    %v5729 = vperm.slane %v5724, 0
    %vm5731 = vcmask 7168
    %v5733 = vsel %vm5731, %v5727, 0
    %vm5735 = vcmask 1040384
    %v5737 = vsel %vm5735, %v5723, 0
    %5739 = vmatpush.msra.mxu0 0.0
    %5740 = vmatpush.msra.mxu0 0.0
    %5741 = vmatpush.msra.mxu0 0.0
    %5742 = vmatpush.msra.mxu0 0.0
    %5743 = vmatpush.msra.mxu0 0.0
    %5744 = vmatpush.msra.mxu0 0.0
    %5745 = vmatpush.msra.mxu0 0.0
    %5746 = vmatpush.msra.mxu0 0.0
    %5747 = vmatpush.msra.mxu0 0.0
    %5748 = vmatpush.msra.mxu0 0.0
    %5749 = vmatpush.msra.mxu0 0.0
    %5750 = vmatpush.msra.mxu0 0.0
    %5751 = vmatpush.msra.mxu0 0.0
    %5752 = vmatpush.msra.mxu0 0.0
    %5753 = vmatpush.msra.mxu0 0.0
    %5754 = vmatpush.msra.mxu0 %v5737
    %5755 = vmatmul.f32.gmra.mxu0 %v5733
    %v5756 = vpop.f32.mrf.mxu0
    %v5757 = vadd.f32 %v5729, %v5756
    %5758 = vdwg.mxu0
    %v5760 = vperm.slane %v5726, 0
    %v5763 = vsel %vm5735, %v5725, 0
    %5765 = vmatpush.msra.mxu0 0.0
    %5766 = vmatpush.msra.mxu0 0.0
    %5767 = vmatpush.msra.mxu0 0.0
    %5768 = vmatpush.msra.mxu0 0.0
    %5769 = vmatpush.msra.mxu0 0.0
    %5770 = vmatpush.msra.mxu0 0.0
    %5771 = vmatpush.msra.mxu0 0.0
    %5772 = vmatpush.msra.mxu0 0.0
    %5773 = vmatpush.msra.mxu0 0.0
    %5774 = vmatpush.msra.mxu0 0.0
    %5775 = vmatpush.msra.mxu0 0.0
    %5776 = vmatpush.msra.mxu0 0.0
    %5777 = vmatpush.msra.mxu0 0.0
    %5778 = vmatpush.msra.mxu0 0.0
    %5779 = vmatpush.msra.mxu0 0.0
    %5780 = vmatpush.msra.mxu0 %v5763
    %5781 = vmatmul.f32.gmra.mxu0 %v5733
    %v5782 = vpop.f32.mrf.mxu0
    %v5783 = vadd.f32 %v5760, %v5782
    %5784 = vdwg.mxu0
    %v5785 = vmax.f32 %v5783, 0.0
    %vm5786 = vcmp.ne.f32.partialorder %v5783, %v5783
    %v5787 = vadd.f32 %v5783, 0.0
    %v5788 = vand.u32 2147483647, %v5783
    %v5789 = vsub.f32 0.0, %v5788
    %v5790 = vmul.f32 %v5789, 1.442695
    %v5791 = vpow.pop %v5790
    %v5792 = vadd.f32 %v5791, 1.0
    %v5793 = vlog2.pop %v5792
    %v5794 = vmul.f32 %v5793, 0.6931472
    %v5795 = vmul.f32 -0.5, %v5791
    %v5796 = vadd.f32 %v5795, 1.0
    %v5797 = vmul.f32 %v5796, %v5791
    %v5798 = vand.u32 2147483647, %v5791
    %vm5799 = vcmp.lt.f32.partialorder %v5798, 0.0004427343
    %v5800 = vsel %vm5799, %v5797, %v5794
    %v5801 = vadd.f32 %v5785, %v5800
    %v5802 = vsel %vm5786, %v5787, %v5801
    %v5803 = vadd.f32 %v5802, 1e-06
    %v5804 = vld [vmem:[%s13] sm:$0xf]
    %v5805 = vmul.f32 %v5803, %v5804
    %v5806 = vadd.f32 %v5757, %v5805
    %v5807 = vld [vmem:[#allocation25] sm:$0x7]
    %v5808 = vld [vmem:[%s73] sm:$0x1]
    %v5809 = vld [vmem:[#allocation26] sm:$0x7]
    %v5810 = vld [vmem:[%s77] sm:$0x1]
    %v5811 = vld [vmem:[#allocation3] sm:$0xf]
    %v5813 = vperm.slane %v5808, 0
    %vm5815 = vcmask 23552
    %v5817 = vsel %vm5815, %v5811, 0
    %vm5819 = vcmask 1042432
    %v5821 = vsel %vm5819, %v5807, 0
    %5823 = vmatpush.msra.mxu0 0.0
    %5824 = vmatpush.msra.mxu0 0.0
    %5825 = vmatpush.msra.mxu0 0.0
    %5826 = vmatpush.msra.mxu0 0.0
    %5827 = vmatpush.msra.mxu0 0.0
    %5828 = vmatpush.msra.mxu0 0.0
    %5829 = vmatpush.msra.mxu0 0.0
    %5830 = vmatpush.msra.mxu0 0.0
    %5831 = vmatpush.msra.mxu0 0.0
    %5832 = vmatpush.msra.mxu0 0.0
    %5833 = vmatpush.msra.mxu0 0.0
    %5834 = vmatpush.msra.mxu0 0.0
    %5835 = vmatpush.msra.mxu0 0.0
    %5836 = vmatpush.msra.mxu0 0.0
    %5837 = vmatpush.msra.mxu0 0.0
    %5838 = vmatpush.msra.mxu0 %v5821
    %5839 = vmatmul.f32.gmra.mxu0 %v5817
    %v5840 = vpop.f32.mrf.mxu0
    %v5841 = vadd.f32 %v5813, %v5840
    %5842 = vdwg.mxu0
    %v5844 = vperm.slane %v5810, 0
    %v5847 = vsel %vm5819, %v5809, 0
    %5849 = vmatpush.msra.mxu0 0.0
    %5850 = vmatpush.msra.mxu0 0.0
    %5851 = vmatpush.msra.mxu0 0.0
    %5852 = vmatpush.msra.mxu0 0.0
    %5853 = vmatpush.msra.mxu0 0.0
    %5854 = vmatpush.msra.mxu0 0.0
    %5855 = vmatpush.msra.mxu0 0.0
    %5856 = vmatpush.msra.mxu0 0.0
    %5857 = vmatpush.msra.mxu0 0.0
    %5858 = vmatpush.msra.mxu0 0.0
    %5859 = vmatpush.msra.mxu0 0.0
    %5860 = vmatpush.msra.mxu0 0.0
    %5861 = vmatpush.msra.mxu0 0.0
    %5862 = vmatpush.msra.mxu0 0.0
    %5863 = vmatpush.msra.mxu0 0.0
    %5864 = vmatpush.msra.mxu0 %v5847
    %5865 = vmatmul.f32.gmra.mxu0 %v5817
    %v5866 = vpop.f32.mrf.mxu0
    %v5867 = vadd.f32 %v5844, %v5866
    %5868 = vdwg.mxu0
    %v5869 = vmax.f32 %v5867, 0.0
    %vm5870 = vcmp.ne.f32.partialorder %v5867, %v5867
    %v5871 = vadd.f32 %v5867, 0.0
    %v5872 = vand.u32 2147483647, %v5867
    %v5873 = vsub.f32 0.0, %v5872
    %v5874 = vmul.f32 %v5873, 1.442695
    %v5875 = vpow.pop %v5874
    %v5876 = vadd.f32 %v5875, 1.0
    %v5877 = vlog2.pop %v5876
    %v5878 = vmul.f32 %v5877, 0.6931472
    %v5879 = vmul.f32 -0.5, %v5875
    %v5880 = vadd.f32 %v5879, 1.0
    %v5881 = vmul.f32 %v5880, %v5875
    %v5882 = vand.u32 2147483647, %v5875
    %vm5883 = vcmp.lt.f32.partialorder %v5882, 0.0004427343
    %v5884 = vsel %vm5883, %v5881, %v5878
    %v5885 = vadd.f32 %v5869, %v5884
    %v5886 = vsel %vm5870, %v5871, %v5885
    %v5887 = vadd.f32 %v5886, 1e-06
    %v5888 = vld [vmem:[%s15] sm:$0xf]
    %v5889 = vmul.f32 %v5887, %v5888
    %v5890 = vadd.f32 %v5841, %v5889
    %v5891 = vld [vmem:[#allocation28] sm:$0xff]
    %v5892 = vld [vmem:[#allocation2] sm:$0x1]
    %v5894 = vperm.slane %v5892, 0
    %v5896 = vsel %vm2531, %v1575, 0
    %5898 = vmatpush.msra.mxu0 0.0
    %5899 = vmatpush.msra.mxu0 0.0
    %5900 = vmatpush.msra.mxu0 0.0
    %5901 = vmatpush.msra.mxu0 0.0
    %5902 = vmatpush.msra.mxu0 0.0
    %5903 = vmatpush.msra.mxu0 0.0
    %5904 = vmatpush.msra.mxu0 0.0
    %5905 = vmatpush.msra.mxu0 0.0
    %5906 = vmatpush.msra.mxu0 0.0
    %5907 = vmatpush.msra.mxu0 0.0
    %5908 = vmatpush.msra.mxu0 0.0
    %5909 = vmatpush.msra.mxu0 0.0
    %5910 = vmatpush.msra.mxu0 0.0
    %5911 = vmatpush.msra.mxu0 0.0
    %5912 = vmatpush.msra.mxu0 0.0
    %5913 = vmatpush.msra.mxu0 %v5891
    %5914 = vmatmul.f32.gmra.mxu0 %v5896
    %v5915 = vpop.f32.mrf.mxu0
    %v5916 = vadd.f32 %v5894, %v5915
    %5917 = vdwg.mxu0
    %v5919 = vsel %vm2531, %v5806, 0
    %5921 = vmatpush.msra.mxu0 0.0
    %5922 = vmatpush.msra.mxu0 0.0
    %5923 = vmatpush.msra.mxu0 0.0
    %5924 = vmatpush.msra.mxu0 0.0
    %5925 = vmatpush.msra.mxu0 0.0
    %5926 = vmatpush.msra.mxu0 0.0
    %5927 = vmatpush.msra.mxu0 0.0
    %5928 = vmatpush.msra.mxu0 0.0
    %5929 = vmatpush.msra.mxu0 0.0
    %5930 = vmatpush.msra.mxu0 0.0
    %5931 = vmatpush.msra.mxu0 0.0
    %5932 = vmatpush.msra.mxu0 0.0
    %5933 = vmatpush.msra.mxu0 0.0
    %5934 = vmatpush.msra.mxu0 0.0
    %5935 = vmatpush.msra.mxu0 0.0
    %5936 = vmatpush.msra.mxu0 %v5891
    %5937 = vmatmul.f32.gmra.mxu0 %v5919
    %v5938 = vpop.f32.mrf.mxu0
    %v5939 = vadd.f32 %v5894, %v5938
    %5940 = vdwg.mxu0
    %v5941 = vxor.u32 %v5916, 2147483648
    %v5942 = vmul.f32 %v5941, 1.442695
    %v5943 = vpow.pop %v5942
    %v5944 = vadd.f32 %v5943, 1.0
    %v5945 = vrcp.pop %v5944
    %v5946 = vmul.f32 %v5944, %v5945
    %v5947 = vsub.f32 1.0, %v5946
    %v5948 = vmul.f32 %v5945, %v5947
    %v5949 = vadd.f32 %v5945, %v5948
    %vm5950 = vweird.f32 %v5944
    %vm5951 = vweird.f32 %v5945
    %vm5952 = vmor %vm5950, %vm5951
    %v5953 = vsel %vm5952, %v5945, %v5949
    %v5954 = vand.u32 2147483647, %v5944
    %vm5955 = vcmp.eq.f32.partialorder %v5954, 8.507059e+37
    %v5956 = vand.u32 %v5944, 2147483648
    %v5957 = vor.u32 1.1754944e-38, %v5956
    %v5958 = vsel %vm5955, %v5957, %v5953
    %v5959 = vmul.f32 1.0, %v5958
    %v5960 = vxor.u32 %v5939, 2147483648
    %v5961 = vmul.f32 %v5960, 1.442695
    %v5962 = vpow.pop %v5961
    %v5963 = vadd.f32 %v5962, 1.0
    %v5964 = vrcp.pop %v5963
    %v5965 = vmul.f32 %v5963, %v5964
    %v5966 = vsub.f32 1.0, %v5965
    %v5967 = vmul.f32 %v5964, %v5966
    %v5968 = vadd.f32 %v5964, %v5967
    %vm5969 = vweird.f32 %v5963
    %vm5970 = vweird.f32 %v5964
    %vm5971 = vmor %vm5969, %vm5970
    %v5972 = vsel %vm5971, %v5964, %v5968
    %v5973 = vand.u32 2147483647, %v5963
    %vm5974 = vcmp.eq.f32.partialorder %v5973, 8.507059e+37
    %v5975 = vand.u32 %v5963, 2147483648
    %v5976 = vor.u32 1.1754944e-38, %v5975
    %v5977 = vsel %vm5974, %v5976, %v5972
    %v5978 = vmul.f32 1.0, %v5977
    %v5979 = vld [vmem:[#allocation29] sm:$0xff]
    %v5980 = vld [vmem:[%s85] sm:$0x1]
    %v5982 = vperm.slane %v5980, 0
    %v5984 = vsel %vm2531, %v2123, 0
    %5986 = vmatpush.msra.mxu0 0.0
    %5987 = vmatpush.msra.mxu0 0.0
    %5988 = vmatpush.msra.mxu0 0.0
    %5989 = vmatpush.msra.mxu0 0.0
    %5990 = vmatpush.msra.mxu0 0.0
    %5991 = vmatpush.msra.mxu0 0.0
    %5992 = vmatpush.msra.mxu0 0.0
    %5993 = vmatpush.msra.mxu0 0.0
    %5994 = vmatpush.msra.mxu0 0.0
    %5995 = vmatpush.msra.mxu0 0.0
    %5996 = vmatpush.msra.mxu0 0.0
    %5997 = vmatpush.msra.mxu0 0.0
    %5998 = vmatpush.msra.mxu0 0.0
    %5999 = vmatpush.msra.mxu0 0.0
    %6000 = vmatpush.msra.mxu0 0.0
    %6001 = vmatpush.msra.mxu0 %v5979
    %6002 = vmatmul.f32.gmra.mxu0 %v5984
    %v6003 = vpop.f32.mrf.mxu0
    %v6004 = vadd.f32 %v5982, %v6003
    %6005 = vdwg.mxu0
    %v6007 = vsel %vm2531, %v5890, 0
    %6009 = vmatpush.msra.mxu0 0.0
    %6010 = vmatpush.msra.mxu0 0.0
    %6011 = vmatpush.msra.mxu0 0.0
    %6012 = vmatpush.msra.mxu0 0.0
    %6013 = vmatpush.msra.mxu0 0.0
    %6014 = vmatpush.msra.mxu0 0.0
    %6015 = vmatpush.msra.mxu0 0.0
    %6016 = vmatpush.msra.mxu0 0.0
    %6017 = vmatpush.msra.mxu0 0.0
    %6018 = vmatpush.msra.mxu0 0.0
    %6019 = vmatpush.msra.mxu0 0.0
    %6020 = vmatpush.msra.mxu0 0.0
    %6021 = vmatpush.msra.mxu0 0.0
    %6022 = vmatpush.msra.mxu0 0.0
    %6023 = vmatpush.msra.mxu0 0.0
    %6024 = vmatpush.msra.mxu0 %v5979
    %6025 = vmatmul.f32.gmra.mxu0 %v6007
    %v6026 = vpop.f32.mrf.mxu0
    %v6027 = vadd.f32 %v5982, %v6026
    %6028 = vdwg.mxu0
    %6030 = vrot.lane.b32.xlu0 %v1024, 8
    %v6031 = vpop.permute.xlu0 %6030
    %6034 = vrot.lane.b32.xlu0 %v1027, 16
    %v6035 = vpop.permute.xlu0 %6034
    %6038 = vrot.lane.b32.xlu0 %v1529, 24
    %v6039 = vpop.permute.xlu0 %6038
    %6042 = vrot.lane.b32.xlu0 %v1572, 32
    %v6043 = vpop.permute.xlu0 %6042
    %6045 = vrot.lane.b32.xlu0 %v1575, 40
    %v6046 = vpop.permute.xlu0 %6045
    %6049 = vrot.lane.b32.xlu0 %v5757, 48
    %v6050 = vpop.permute.xlu0 %6049
    %6053 = vrot.lane.b32.xlu0 %v5803, 56
    %v6054 = vpop.permute.xlu0 %6053
    %6056 = vrot.lane.b32.xlu0 %v5806, 64
    %v6057 = vpop.permute.xlu0 %6056
    %6060 = vrot.lane.b32.xlu0 %v5959, 72
    %v6061 = vpop.permute.xlu0 %6060
    %6064 = vrot.lane.b32.xlu0 %v5978, 73
    %v6065 = vpop.permute.xlu0 %6064
    %6068 = vrot.lane.b32.xlu0 %v2077, 74
    %v6069 = vpop.permute.xlu0 %6068
    %6072 = vrot.lane.b32.xlu0 %v2120, 82
    %v6073 = vpop.permute.xlu0 %6072
    %6075 = vrot.lane.b32.xlu0 %v2123, 90
    %v6076 = vpop.permute.xlu0 %6075
    %6079 = vrot.lane.b32.xlu0 %v5841, 98
    %v6080 = vpop.permute.xlu0 %6079
    %6083 = vrot.lane.b32.xlu0 %v5887, 106
    %v6084 = vpop.permute.xlu0 %6083
    %v6086 = vsel %vm2531, %v981, %v6031
    %v6087 = vsel %vm2533, %v6086, %v6035
    %v6088 = vsel %vm2596, %v6087, %v6039
    %v6089 = vsel %vm959, %v6088, %v6043
    %vm6090 = vcmask 326656
    %v6091 = vsel %vm6090, %v6089, %v6046
    %vm6092 = vcmask 392192
    %v6093 = vsel %vm6092, %v6091, %v6050
    %vm6094 = vcmask 457728
    %v6095 = vsel %vm6094, %v6093, %v6054
    %vm6096 = vcmask 523264
    %v6097 = vsel %vm6096, %v6095, %v6057
    %vm6098 = vcmask 588800
    %v6099 = vsel %vm6098, %v6097, %v6061
    %vm6100 = vcmask 596992
    %v6101 = vsel %vm6100, %v6099, %v6065
    %vm6102 = vcmask 605184
    %v6103 = vsel %vm6102, %v6101, %v6069
    %vm6104 = vcmask 670720
    %v6105 = vsel %vm6104, %v6103, %v6073
    %vm6106 = vcmask 736256
    %v6107 = vsel %vm6106, %v6105, %v6076
    %vm6108 = vcmask 801792
    %v6109 = vsel %vm6108, %v6107, %v6080
    %vm6110 = vcmask 867328
    %v6111 = vsel %vm6110, %v6109, %v6084
    %6113 = vrot.lane.b32.xlu0 %v6004, 8
    %v6114 = vpop.permute.xlu0 %6113
    %6117 = vrot.lane.b32.xlu0 %v6027, 11
    %v6118 = vpop.permute.xlu0 %6117
    %v6120 = vsel %vm2531, %v5890, %v6114
    %vm6121 = vcmask 89088
    %v6122 = vsel %vm6121, %v6120, %v6118
    %6124 = vrot.lane.b32.xlu0 %v6122, 114
    %v6125 = vpop.permute.xlu0 %6124
    %vm6127 = vcmask 932864
    %v6128 = vsel %vm6127, %v6111, %v6125
    %6129 = vst [vmem:[%s89] sm:$0xf] %v6128
    // Predicated region
    $region246: #{_forward_impl.1} parent=1 // pred_check
      _
    $region247: #{_forward_impl.1} parent=1 // pred_check_branch
      %6131 = sbr.rel (0) target = $region249
    $region248: #{_forward_impl.1} parent=1 // pred_region
      _
    $region249: #{_forward_impl.1} parent=1 // pred_fallthru
      _
    // Predicated region
    $region250: #{_forward_impl.1} parent=1 // pred_check
      _
    $region251: #{_forward_impl.1} parent=1 // pred_check_branch
      %6133 = sbr.rel (0) target = $region253
    $region252: #{_forward_impl.1} parent=1 // pred_region
      _
    $region253: #{_forward_impl.1} parent=1 // pred_fallthru
      _
    // Predicated region
    $region254: #{_forward_impl.1} parent=1 // pred_check
      _
    $region255: #{_forward_impl.1} parent=1 // pred_check_branch
      %6135 = sbr.rel (0) target = $region257
    $region256: #{_forward_impl.1} parent=1 // pred_region
      _
    $region257: #{_forward_impl.1} parent=1 // pred_fallthru
      _
    // Predicated region
    $region258: #{_forward_impl.1} parent=1 // pred_check
      _
    $region259: #{_forward_impl.1} parent=1 // pred_check_branch
      %6137 = sbr.rel (0) target = $region261
    $region260: #{_forward_impl.1} parent=1 // pred_region
      _
    $region261: #{_forward_impl.1} parent=1 // pred_fallthru
      _
    %6138 = vsyncpa [#allocation4], 1
    %6139 = vsyncpa [#allocation6], 1
    %6140 = vsyncpa [#allocation9], 1
    %6141 = vsyncpa [#allocation12], 1
    %6142 = vsyncpa [#allocation15], 1
    %6143 = vsyncpa [#allocation18], 1
    %6144 = vsyncpa [#allocation21], 1
    %6145 = vsyncpa [#allocation24], 1
    %6146 = vsyncpa [#allocation27], 1
    %6147 = vsyncpa [#allocation30], 1

</llo_original>
